<compile_context>
chip_gen: v7x
topology: tpu7x:2x2x1
jax: 0.10.0
libtpu: 0.0.40
codegen_flags: <defaults>
</compile_context>

<pallas_src>
import jax
import jax.numpy as jnp
from jax.experimental import pallas as pl
from jax.experimental.pallas import tpu as pltpu

NUM_JOINT = 20
INPUT_FEATURE = 6
NUM_FEATURE = 16
NUM_GRAPH = 3
BN_EPS = 1e-5


# --------------------------------------------------------------------------- #
# Fused Pallas kernel: all 4 GraphConvolution layers + residuals.
# Activations are (B, V*C) with the V*C product on the lane axis.
# --------------------------------------------------------------------------- #
def gclayers_kernel(x_ref, m1_ref, m234_ref, bias_ref, gamma_ref, beta_ref,
                    s_ref, st_ref, o_ref):
  B = x_ref.shape[0]
  inv_n = 1.0 / float(B * NUM_JOINT)           # BN count = B * V (per channel)

  S = s_ref[...]                               # (V*F, F)   column selector
  ST = st_ref[...]                             # (F, V*F)   row broadcaster

  def gc(x, M, l):
    # One fused layer: matmul + bias + BatchNorm(train) + ReLU.
    # NOTE: operands kept f32 here; bf16 inputs with f32 accumulation is a
    # further (v6e/v7x) option if looser accuracy is acceptable.
    y = jnp.dot(x, M, preferred_element_type=jnp.float32)      # (B, V*F)
    y = y + bias_ref[l]                                         # (1, V*F)

    # Single-pass batch statistics (E[x], E[x^2]) over the (B, V) axes.
    ysum = jnp.sum(y, axis=0, keepdims=True)                    # (1, V*F)
    ysq = jnp.sum(y * y, axis=0, keepdims=True)                 # (1, V*F)
    sum_o = jnp.dot(ysum, S, preferred_element_type=jnp.float32)    # (1, F)
    sumsq_o = jnp.dot(ysq, S, preferred_element_type=jnp.float32)   # (1, F)
    mean_o = sum_o * inv_n
    var_o = jnp.maximum(sumsq_o * inv_n - mean_o * mean_o, 0.0)
    scale_o = gamma_ref[l] * jax.lax.rsqrt(var_o + BN_EPS)      # (1, F)
    shift_o = beta_ref[l] - mean_o * scale_o                    # (1, F)
    # Re-broadcast per-channel scale/shift back to the (V*F) lane layout.
    scale_vo = jnp.dot(scale_o, ST, preferred_element_type=jnp.float32)
    shift_vo = jnp.dot(shift_o, ST, preferred_element_type=jnp.float32)
    return jnp.maximum(y * scale_vo + shift_vo, 0.0)

  x0 = x_ref[...]
  o1 = gc(x0, m1_ref[...], 0)
  o2 = gc(o1, m234_ref[0], 1)
  o3 = gc(o2, m234_ref[1], 2) + o1
  o4 = gc(o3, m234_ref[2], 3) + o2
  o_ref[...] = o4.astype(o_ref.dtype)


def _gclayers_pallas(x2, m1, m234, bias, gamma, beta, S, ST):
  B, vc = x2.shape
  vf = m1.shape[1]
  F = NUM_FEATURE

  flops = 2 * B * vc * vf + 3 * 2 * B * vf * vf + 4 * 2 * B * vf
  bytes_accessed = 4 * (B * vc + B * vf + vc * vf + 3 * vf * vf
                        + 4 * vf + 8 * F + 2 * vf * F)
  transcendentals = 4 * F

  return pl.pallas_call(
      gclayers_kernel,
      out_shape=jax.ShapeDtypeStruct((B, vf), jnp.float32),
      grid_spec=pltpu.PrefetchScalarGridSpec(
          num_scalar_prefetch=0,
          grid=(1,),
          in_specs=[
              pl.BlockSpec((B, vc), lambda i: (0, 0)),            # x (B, V*Cin)
              pl.BlockSpec((vc, vf), lambda i: (0, 0)),           # M1
              pl.BlockSpec((3, vf, vf), lambda i: (0, 0, 0)),     # M2..M4
              pl.BlockSpec((4, 1, vf), lambda i: (0, 0, 0)),      # biases
              pl.BlockSpec((4, 1, F), lambda i: (0, 0, 0)),       # bn gamma
              pl.BlockSpec((4, 1, F), lambda i: (0, 0, 0)),       # bn beta
              pl.BlockSpec((vf, F), lambda i: (0, 0)),            # selector S
              pl.BlockSpec((F, vf), lambda i: (0, 0)),            # selector S^T
          ],
          out_specs=pl.BlockSpec((B, vf), lambda i: (0, 0)),
      ),
      compiler_params=pltpu.CompilerParams(
          dimension_semantics=("arbitrary",)),
      cost_estimate=pl.CostEstimate(
          flops=flops,
          transcendentals=transcendentals,
          bytes_accessed=bytes_accessed),
  )(x2, m1, m234, bias, gamma, beta, S, ST)


# --------------------------------------------------------------------------- #
# GCLayers forward (wrapper / glue)
# --------------------------------------------------------------------------- #
def init_params(key, num_graph=NUM_GRAPH, num_feature=NUM_FEATURE,
                input_feature=INPUT_FEATURE, num_joint=NUM_JOINT):
  """Deterministic parameter init for the 4 GraphConvolution layers."""
  in_feats = [input_feature, num_feature, num_feature, num_feature]
  params = []
  for li in range(4):
    key, kw, kb = jax.random.split(key, 3)
    cin, cout = in_feats[li], num_feature
    w = 0.1 * jax.random.normal(kw, (num_graph, cout, cin), jnp.float32)
    b = 0.05 * jax.random.normal(kb, (num_graph, cout), jnp.float32)
    params.append(dict(
        mask=jnp.ones((num_graph, num_joint, num_joint), jnp.float32),
        w=w,
        b=b,
        gamma=jnp.ones((cout,), jnp.float32),   # BatchNorm2d default init
        beta=jnp.zeros((cout,), jnp.float32),
    ))
  return params


@jax.jit
def gclayers_forward(adj, x_nctv, params):
  """adj: (G, V, V); x: (N, C, T, V) -> (N, num_feature, T, V)."""
  N, C, T, V = x_nctv.shape
  F = NUM_FEATURE
  B = N * T

  # NCHW -> (B, V*C) lane-dense node layout, B = N*T.
  x2 = jnp.transpose(x_nctv, (0, 2, 3, 1)).reshape(B, V * C)

  # Precompute the combined per-layer operators M_l, summed biases, BN params.
  Ms, biases, gammas, betas = [], [], [], []
  for p in params:
    A = adj * p["mask"]                                   # (G, V, V)
    W = p["w"]                                            # (G, F, Cin)
    cin = W.shape[2]
    M = jnp.einsum("guv,goc->ucvo", A, W).reshape(V * cin, V * F)
    b_sum = jnp.sum(p["b"], axis=0)                       # (F,)
    bias_vo = jnp.broadcast_to(b_sum[None, :], (V, F)).reshape(1, V * F)
    Ms.append(M)
    biases.append(bias_vo)
    gammas.append(p["gamma"][None, :])
    betas.append(p["beta"][None, :])

  m1 = Ms[0]                                              # (V*Cin, V*F)
  m234 = jnp.stack(Ms[1:4], axis=0)                       # (3, V*F, V*F)
  bias = jnp.stack(biases, axis=0)                        # (4, 1, V*F)
  gamma = jnp.stack(gammas, axis=0)                       # (4, 1, F)
  beta = jnp.stack(betas, axis=0)                         # (4, 1, F)

  # BN channel selector: S[v*F+o, o'] = (o == o'); ST = S^T.
  eye = jnp.eye(F, dtype=jnp.float32)
  S = jnp.tile(eye, (V, 1))                               # (V*F, F)
  ST = jnp.tile(eye, (1, V))                              # (F, V*F)

  o4 = _gclayers_pallas(x2, m1, m234, bias, gamma, beta, S, ST)

  # (B, V*F) -> (N, T, V, F) -> (N, F, T, V)
  return jnp.transpose(o4.reshape(N, T, V, F), (0, 3, 1, 2))


# --------------------------------------------------------------------------- #
# Pure-JAX reference (correctness check against the fused kernel)
# --------------------------------------------------------------------------- #
def gc_ref(adj, p, x_nctv):
  A = adj * p["mask"]
  G = A.shape[0]
  y = None
  for g in range(G):
    xa = jnp.einsum("nctu,uv->nctv", x_nctv, A[g])
    yg = jnp.einsum("oc,nctv->notv", p["w"][g], xa) + p["b"][g][None, :, None, None]
    y = yg if y is None else y + yg
  mean = jnp.mean(y, axis=(0, 2, 3), keepdims=True)
  var = jnp.mean(jnp.square(y - mean), axis=(0, 2, 3), keepdims=True)
  yn = (y - mean) * jax.lax.rsqrt(var + BN_EPS)
  yn = yn * p["gamma"][None, :, None, None] + p["beta"][None, :, None, None]
  return jnp.maximum(yn, 0.0)


def gclayers_ref(adj, x_nctv, params):
  o1 = gc_ref(adj, params[0], x_nctv)
  o2 = gc_ref(adj, params[1], o1)
  o3 = gc_ref(adj, params[2], o2) + o1
  o4 = gc_ref(adj, params[3], o3) + o2
  return o4


# --------------------------------------------------------------------------- #
if __name__ == "__main__":
  key = jax.random.PRNGKey(0)
  k_adj, k_x, k_p = jax.random.split(key, 3)

  N, C, T, V, G = 2, INPUT_FEATURE, 8, NUM_JOINT, NUM_GRAPH

  adj = jax.random.uniform(k_adj, (G, V, V), jnp.float32)
  x = jax.random.normal(k_x, (N, C, T, V), jnp.float32)
  params = init_params(k_p)

  out = jax.block_until_ready(gclayers_forward(adj, x, params))

  ref = gclayers_ref(adj, x, params)
  assert out.shape == (N, NUM_FEATURE, T, V), out.shape
  max_err = float(jnp.max(jnp.abs(out - ref)))
  assert jnp.allclose(out, ref, atol=1e-3, rtol=1e-3), max_err

  print("KERNEL_OK")
</pallas_src>

<mosaic_0001>
module attributes {stable_mosaic.version = 11 : i64} {
  func.func @gclayers_kernel(%arg0: i32, %arg1: memref<16x120xf32, #tpu.memory_space<vmem>>, %arg2: memref<120x320xf32, #tpu.memory_space<vmem>>, %arg3: memref<3x320x320xf32, #tpu.memory_space<vmem>>, %arg4: memref<4x1x320xf32, #tpu.memory_space<vmem>>, %arg5: memref<4x1x16xf32, #tpu.memory_space<vmem>>, %arg6: memref<4x1x16xf32, #tpu.memory_space<vmem>>, %arg7: memref<320x16xf32, #tpu.memory_space<vmem>>, %arg8: memref<16x320xf32, #tpu.memory_space<vmem>>, %arg9: memref<16x320xf32, #tpu.memory_space<vmem>>) attributes {dimension_semantics = [#tpu.dimension_semantics<arbitrary>], iteration_bounds = array<i64: 1>, scalar_prefetch = 0 : i64, scratch_operands = 0 : i64, tpu.core_type = #tpu.core_type<tc>, window_params = [{pipeline_mode = #tpu.pipeline_mode<synchronous>, transform_indices = @transform_0, window_bounds = array<i64: 16, 120>}, {pipeline_mode = #tpu.pipeline_mode<synchronous>, transform_indices = @transform_1, window_bounds = array<i64: 120, 320>}, {pipeline_mode = #tpu.pipeline_mode<synchronous>, transform_indices = @transform_2, window_bounds = array<i64: 3, 320, 320>}, {pipeline_mode = #tpu.pipeline_mode<synchronous>, transform_indices = @transform_3, window_bounds = array<i64: 4, 1, 320>}, {pipeline_mode = #tpu.pipeline_mode<synchronous>, transform_indices = @transform_4, window_bounds = array<i64: 4, 1, 16>}, {pipeline_mode = #tpu.pipeline_mode<synchronous>, transform_indices = @transform_5, window_bounds = array<i64: 4, 1, 16>}, {pipeline_mode = #tpu.pipeline_mode<synchronous>, transform_indices = @transform_6, window_bounds = array<i64: 320, 16>}, {pipeline_mode = #tpu.pipeline_mode<synchronous>, transform_indices = @transform_7, window_bounds = array<i64: 16, 320>}, {pipeline_mode = #tpu.pipeline_mode<synchronous>, transform_indices = @transform_8, window_bounds = array<i64: 16, 320>}]} {
    %c0 = arith.constant 0 : index
    %c0_0 = arith.constant 0 : index
    %0 = vector.load %arg7[%c0, %c0_0] : memref<320x16xf32, #tpu.memory_space<vmem>>, vector<320x16xf32>
    %c0_1 = arith.constant 0 : index
    %c0_2 = arith.constant 0 : index
    %1 = vector.load %arg8[%c0_1, %c0_2] : memref<16x320xf32, #tpu.memory_space<vmem>>, vector<16x320xf32>
    %c0_3 = arith.constant 0 : index
    %c0_4 = arith.constant 0 : index
    %2 = vector.load %arg1[%c0_3, %c0_4] : memref<16x120xf32, #tpu.memory_space<vmem>>, vector<16x120xf32>
    %c0_5 = arith.constant 0 : index
    %c0_6 = arith.constant 0 : index
    %3 = vector.load %arg2[%c0_5, %c0_6] : memref<120x320xf32, #tpu.memory_space<vmem>>, vector<120x320xf32>
    %cst = arith.constant dense<0.000000e+00> : vector<16x320xf32>
    %4 = tpu.matmul %2, %3, %cst {dimension_numbers = #tpu.dot_dimension_numbers<[1], [0], [0], [1], [0, 0, 1, 1], [], []>} : vector<16x120xf32>, vector<120x320xf32>, vector<16x320xf32> -> vector<16x320xf32>
    %c0_7 = arith.constant 0 : index
    %c0_8 = arith.constant 0 : index
    %c0_9 = arith.constant 0 : index
    %5 = vector.load %arg4[%c0_7, %c0_8, %c0_9] : memref<4x1x320xf32, #tpu.memory_space<vmem>>, vector<1x1x320xf32>
    %6 = vector.shape_cast %5 : vector<1x1x320xf32> to vector<1x320xf32>
    %7 = vector.broadcast %6 : vector<1x320xf32> to vector<16x320xf32>
    %8 = arith.addf %4, %7 : vector<16x320xf32>
    %cst_10 = arith.constant dense<0.000000e+00> : vector<320xf32>
    %9 = vector.multi_reduction <add>, %8, %cst_10 [0] : vector<16x320xf32> to vector<320xf32>
    %10 = vector.shape_cast %9 : vector<320xf32> to vector<1x320xf32>
    %11 = arith.mulf %8, %8 : vector<16x320xf32>
    %cst_11 = arith.constant dense<0.000000e+00> : vector<320xf32>
    %12 = vector.multi_reduction <add>, %11, %cst_11 [0] : vector<16x320xf32> to vector<320xf32>
    %13 = vector.shape_cast %12 : vector<320xf32> to vector<1x320xf32>
    %cst_12 = arith.constant dense<0.000000e+00> : vector<1x16xf32>
    %14 = tpu.matmul %10, %0, %cst_12 {dimension_numbers = #tpu.dot_dimension_numbers<[1], [0], [0], [1], [0, 0, 1, 1], [], []>} : vector<1x320xf32>, vector<320x16xf32>, vector<1x16xf32> -> vector<1x16xf32>
    %cst_13 = arith.constant dense<0.000000e+00> : vector<1x16xf32>
    %15 = tpu.matmul %13, %0, %cst_13 {dimension_numbers = #tpu.dot_dimension_numbers<[1], [0], [0], [1], [0, 0, 1, 1], [], []>} : vector<1x320xf32>, vector<320x16xf32>, vector<1x16xf32> -> vector<1x16xf32>
    %cst_14 = arith.constant 3.125000e-03 : f32
    %16 = vector.broadcast %cst_14 : f32 to vector<1x16xf32>
    %17 = arith.mulf %14, %16 : vector<1x16xf32>
    %cst_15 = arith.constant 3.125000e-03 : f32
    %18 = vector.broadcast %cst_15 : f32 to vector<1x16xf32>
    %19 = arith.mulf %15, %18 : vector<1x16xf32>
    %20 = arith.mulf %17, %17 : vector<1x16xf32>
    %21 = arith.subf %19, %20 : vector<1x16xf32>
    %cst_16 = arith.constant 0.000000e+00 : f32
    %22 = vector.broadcast %cst_16 : f32 to vector<1x16xf32>
    %23 = arith.maximumf %21, %22 : vector<1x16xf32>
    %c0_17 = arith.constant 0 : index
    %c0_18 = arith.constant 0 : index
    %c0_19 = arith.constant 0 : index
    %24 = vector.load %arg5[%c0_17, %c0_18, %c0_19] : memref<4x1x16xf32, #tpu.memory_space<vmem>>, vector<1x1x16xf32>
    %25 = vector.shape_cast %24 : vector<1x1x16xf32> to vector<1x16xf32>
    %cst_20 = arith.constant 9.99999974E-6 : f32
    %26 = vector.broadcast %cst_20 : f32 to vector<1x16xf32>
    %27 = arith.addf %23, %26 : vector<1x16xf32>
    %28 = math.rsqrt %27 : vector<1x16xf32>
    %29 = arith.mulf %25, %28 : vector<1x16xf32>
    %c0_21 = arith.constant 0 : index
    %c0_22 = arith.constant 0 : index
    %c0_23 = arith.constant 0 : index
    %30 = vector.load %arg6[%c0_21, %c0_22, %c0_23] : memref<4x1x16xf32, #tpu.memory_space<vmem>>, vector<1x1x16xf32>
    %31 = vector.shape_cast %30 : vector<1x1x16xf32> to vector<1x16xf32>
    %32 = arith.mulf %17, %29 : vector<1x16xf32>
    %33 = arith.subf %31, %32 : vector<1x16xf32>
    %cst_24 = arith.constant dense<0.000000e+00> : vector<1x320xf32>
    %34 = tpu.matmul %29, %1, %cst_24 {dimension_numbers = #tpu.dot_dimension_numbers<[1], [0], [0], [1], [0, 0, 1, 1], [], []>} : vector<1x16xf32>, vector<16x320xf32>, vector<1x320xf32> -> vector<1x320xf32>
    %cst_25 = arith.constant dense<0.000000e+00> : vector<1x320xf32>
    %35 = tpu.matmul %33, %1, %cst_25 {dimension_numbers = #tpu.dot_dimension_numbers<[1], [0], [0], [1], [0, 0, 1, 1], [], []>} : vector<1x16xf32>, vector<16x320xf32>, vector<1x320xf32> -> vector<1x320xf32>
    %36 = vector.broadcast %34 : vector<1x320xf32> to vector<16x320xf32>
    %37 = arith.mulf %8, %36 : vector<16x320xf32>
    %38 = vector.broadcast %35 : vector<1x320xf32> to vector<16x320xf32>
    %39 = arith.addf %37, %38 : vector<16x320xf32>
    %cst_26 = arith.constant 0.000000e+00 : f32
    %40 = vector.broadcast %cst_26 : f32 to vector<16x320xf32>
    %41 = arith.maximumf %39, %40 : vector<16x320xf32>
    %c0_27 = arith.constant 0 : index
    %c0_28 = arith.constant 0 : index
    %c0_29 = arith.constant 0 : index
    %42 = vector.load %arg3[%c0_27, %c0_28, %c0_29] : memref<3x320x320xf32, #tpu.memory_space<vmem>>, vector<1x320x320xf32>
    %43 = vector.shape_cast %42 : vector<1x320x320xf32> to vector<320x320xf32>
    %cst_30 = arith.constant dense<0.000000e+00> : vector<16x320xf32>
    %44 = tpu.matmul %41, %43, %cst_30 {dimension_numbers = #tpu.dot_dimension_numbers<[1], [0], [0], [1], [0, 0, 1, 1], [], []>} : vector<16x320xf32>, vector<320x320xf32>, vector<16x320xf32> -> vector<16x320xf32>
    %c1 = arith.constant 1 : index
    %c0_31 = arith.constant 0 : index
    %c0_32 = arith.constant 0 : index
    %45 = vector.load %arg4[%c1, %c0_31, %c0_32] : memref<4x1x320xf32, #tpu.memory_space<vmem>>, vector<1x1x320xf32>
    %46 = vector.shape_cast %45 : vector<1x1x320xf32> to vector<1x320xf32>
    %47 = vector.broadcast %46 : vector<1x320xf32> to vector<16x320xf32>
    %48 = arith.addf %44, %47 : vector<16x320xf32>
    %cst_33 = arith.constant dense<0.000000e+00> : vector<320xf32>
    %49 = vector.multi_reduction <add>, %48, %cst_33 [0] : vector<16x320xf32> to vector<320xf32>
    %50 = vector.shape_cast %49 : vector<320xf32> to vector<1x320xf32>
    %51 = arith.mulf %48, %48 : vector<16x320xf32>
    %cst_34 = arith.constant dense<0.000000e+00> : vector<320xf32>
    %52 = vector.multi_reduction <add>, %51, %cst_34 [0] : vector<16x320xf32> to vector<320xf32>
    %53 = vector.shape_cast %52 : vector<320xf32> to vector<1x320xf32>
    %cst_35 = arith.constant dense<0.000000e+00> : vector<1x16xf32>
    %54 = tpu.matmul %50, %0, %cst_35 {dimension_numbers = #tpu.dot_dimension_numbers<[1], [0], [0], [1], [0, 0, 1, 1], [], []>} : vector<1x320xf32>, vector<320x16xf32>, vector<1x16xf32> -> vector<1x16xf32>
    %cst_36 = arith.constant dense<0.000000e+00> : vector<1x16xf32>
    %55 = tpu.matmul %53, %0, %cst_36 {dimension_numbers = #tpu.dot_dimension_numbers<[1], [0], [0], [1], [0, 0, 1, 1], [], []>} : vector<1x320xf32>, vector<320x16xf32>, vector<1x16xf32> -> vector<1x16xf32>
    %cst_37 = arith.constant 3.125000e-03 : f32
    %56 = vector.broadcast %cst_37 : f32 to vector<1x16xf32>
    %57 = arith.mulf %54, %56 : vector<1x16xf32>
    %cst_38 = arith.constant 3.125000e-03 : f32
    %58 = vector.broadcast %cst_38 : f32 to vector<1x16xf32>
    %59 = arith.mulf %55, %58 : vector<1x16xf32>
    %60 = arith.mulf %57, %57 : vector<1x16xf32>
    %61 = arith.subf %59, %60 : vector<1x16xf32>
    %cst_39 = arith.constant 0.000000e+00 : f32
    %62 = vector.broadcast %cst_39 : f32 to vector<1x16xf32>
    %63 = arith.maximumf %61, %62 : vector<1x16xf32>
    %c1_40 = arith.constant 1 : index
    %c0_41 = arith.constant 0 : index
    %c0_42 = arith.constant 0 : index
    %64 = vector.load %arg5[%c1_40, %c0_41, %c0_42] : memref<4x1x16xf32, #tpu.memory_space<vmem>>, vector<1x1x16xf32>
    %65 = vector.shape_cast %64 : vector<1x1x16xf32> to vector<1x16xf32>
    %cst_43 = arith.constant 9.99999974E-6 : f32
    %66 = vector.broadcast %cst_43 : f32 to vector<1x16xf32>
    %67 = arith.addf %63, %66 : vector<1x16xf32>
    %68 = math.rsqrt %67 : vector<1x16xf32>
    %69 = arith.mulf %65, %68 : vector<1x16xf32>
    %c1_44 = arith.constant 1 : index
    %c0_45 = arith.constant 0 : index
    %c0_46 = arith.constant 0 : index
    %70 = vector.load %arg6[%c1_44, %c0_45, %c0_46] : memref<4x1x16xf32, #tpu.memory_space<vmem>>, vector<1x1x16xf32>
    %71 = vector.shape_cast %70 : vector<1x1x16xf32> to vector<1x16xf32>
    %72 = arith.mulf %57, %69 : vector<1x16xf32>
    %73 = arith.subf %71, %72 : vector<1x16xf32>
    %cst_47 = arith.constant dense<0.000000e+00> : vector<1x320xf32>
    %74 = tpu.matmul %69, %1, %cst_47 {dimension_numbers = #tpu.dot_dimension_numbers<[1], [0], [0], [1], [0, 0, 1, 1], [], []>} : vector<1x16xf32>, vector<16x320xf32>, vector<1x320xf32> -> vector<1x320xf32>
    %cst_48 = arith.constant dense<0.000000e+00> : vector<1x320xf32>
    %75 = tpu.matmul %73, %1, %cst_48 {dimension_numbers = #tpu.dot_dimension_numbers<[1], [0], [0], [1], [0, 0, 1, 1], [], []>} : vector<1x16xf32>, vector<16x320xf32>, vector<1x320xf32> -> vector<1x320xf32>
    %76 = vector.broadcast %74 : vector<1x320xf32> to vector<16x320xf32>
    %77 = arith.mulf %48, %76 : vector<16x320xf32>
    %78 = vector.broadcast %75 : vector<1x320xf32> to vector<16x320xf32>
    %79 = arith.addf %77, %78 : vector<16x320xf32>
    %cst_49 = arith.constant 0.000000e+00 : f32
    %80 = vector.broadcast %cst_49 : f32 to vector<16x320xf32>
    %81 = arith.maximumf %79, %80 : vector<16x320xf32>
    %c1_50 = arith.constant 1 : index
    %c0_51 = arith.constant 0 : index
    %c0_52 = arith.constant 0 : index
    %82 = vector.load %arg3[%c1_50, %c0_51, %c0_52] : memref<3x320x320xf32, #tpu.memory_space<vmem>>, vector<1x320x320xf32>
    %83 = vector.shape_cast %82 : vector<1x320x320xf32> to vector<320x320xf32>
    %cst_53 = arith.constant dense<0.000000e+00> : vector<16x320xf32>
    %84 = tpu.matmul %81, %83, %cst_53 {dimension_numbers = #tpu.dot_dimension_numbers<[1], [0], [0], [1], [0, 0, 1, 1], [], []>} : vector<16x320xf32>, vector<320x320xf32>, vector<16x320xf32> -> vector<16x320xf32>
    %c2 = arith.constant 2 : index
    %c0_54 = arith.constant 0 : index
    %c0_55 = arith.constant 0 : index
    %85 = vector.load %arg4[%c2, %c0_54, %c0_55] : memref<4x1x320xf32, #tpu.memory_space<vmem>>, vector<1x1x320xf32>
    %86 = vector.shape_cast %85 : vector<1x1x320xf32> to vector<1x320xf32>
    %87 = vector.broadcast %86 : vector<1x320xf32> to vector<16x320xf32>
    %88 = arith.addf %84, %87 : vector<16x320xf32>
    %cst_56 = arith.constant dense<0.000000e+00> : vector<320xf32>
    %89 = vector.multi_reduction <add>, %88, %cst_56 [0] : vector<16x320xf32> to vector<320xf32>
    %90 = vector.shape_cast %89 : vector<320xf32> to vector<1x320xf32>
    %91 = arith.mulf %88, %88 : vector<16x320xf32>
    %cst_57 = arith.constant dense<0.000000e+00> : vector<320xf32>
    %92 = vector.multi_reduction <add>, %91, %cst_57 [0] : vector<16x320xf32> to vector<320xf32>
    %93 = vector.shape_cast %92 : vector<320xf32> to vector<1x320xf32>
    %cst_58 = arith.constant dense<0.000000e+00> : vector<1x16xf32>
    %94 = tpu.matmul %90, %0, %cst_58 {dimension_numbers = #tpu.dot_dimension_numbers<[1], [0], [0], [1], [0, 0, 1, 1], [], []>} : vector<1x320xf32>, vector<320x16xf32>, vector<1x16xf32> -> vector<1x16xf32>
    %cst_59 = arith.constant dense<0.000000e+00> : vector<1x16xf32>
    %95 = tpu.matmul %93, %0, %cst_59 {dimension_numbers = #tpu.dot_dimension_numbers<[1], [0], [0], [1], [0, 0, 1, 1], [], []>} : vector<1x320xf32>, vector<320x16xf32>, vector<1x16xf32> -> vector<1x16xf32>
    %cst_60 = arith.constant 3.125000e-03 : f32
    %96 = vector.broadcast %cst_60 : f32 to vector<1x16xf32>
    %97 = arith.mulf %94, %96 : vector<1x16xf32>
    %cst_61 = arith.constant 3.125000e-03 : f32
    %98 = vector.broadcast %cst_61 : f32 to vector<1x16xf32>
    %99 = arith.mulf %95, %98 : vector<1x16xf32>
    %100 = arith.mulf %97, %97 : vector<1x16xf32>
    %101 = arith.subf %99, %100 : vector<1x16xf32>
    %cst_62 = arith.constant 0.000000e+00 : f32
    %102 = vector.broadcast %cst_62 : f32 to vector<1x16xf32>
    %103 = arith.maximumf %101, %102 : vector<1x16xf32>
    %c2_63 = arith.constant 2 : index
    %c0_64 = arith.constant 0 : index
    %c0_65 = arith.constant 0 : index
    %104 = vector.load %arg5[%c2_63, %c0_64, %c0_65] : memref<4x1x16xf32, #tpu.memory_space<vmem>>, vector<1x1x16xf32>
    %105 = vector.shape_cast %104 : vector<1x1x16xf32> to vector<1x16xf32>
    %cst_66 = arith.constant 9.99999974E-6 : f32
    %106 = vector.broadcast %cst_66 : f32 to vector<1x16xf32>
    %107 = arith.addf %103, %106 : vector<1x16xf32>
    %108 = math.rsqrt %107 : vector<1x16xf32>
    %109 = arith.mulf %105, %108 : vector<1x16xf32>
    %c2_67 = arith.constant 2 : index
    %c0_68 = arith.constant 0 : index
    %c0_69 = arith.constant 0 : index
    %110 = vector.load %arg6[%c2_67, %c0_68, %c0_69] : memref<4x1x16xf32, #tpu.memory_space<vmem>>, vector<1x1x16xf32>
    %111 = vector.shape_cast %110 : vector<1x1x16xf32> to vector<1x16xf32>
    %112 = arith.mulf %97, %109 : vector<1x16xf32>
    %113 = arith.subf %111, %112 : vector<1x16xf32>
    %cst_70 = arith.constant dense<0.000000e+00> : vector<1x320xf32>
    %114 = tpu.matmul %109, %1, %cst_70 {dimension_numbers = #tpu.dot_dimension_numbers<[1], [0], [0], [1], [0, 0, 1, 1], [], []>} : vector<1x16xf32>, vector<16x320xf32>, vector<1x320xf32> -> vector<1x320xf32>
    %cst_71 = arith.constant dense<0.000000e+00> : vector<1x320xf32>
    %115 = tpu.matmul %113, %1, %cst_71 {dimension_numbers = #tpu.dot_dimension_numbers<[1], [0], [0], [1], [0, 0, 1, 1], [], []>} : vector<1x16xf32>, vector<16x320xf32>, vector<1x320xf32> -> vector<1x320xf32>
    %116 = vector.broadcast %114 : vector<1x320xf32> to vector<16x320xf32>
    %117 = arith.mulf %88, %116 : vector<16x320xf32>
    %118 = vector.broadcast %115 : vector<1x320xf32> to vector<16x320xf32>
    %119 = arith.addf %117, %118 : vector<16x320xf32>
    %cst_72 = arith.constant 0.000000e+00 : f32
    %120 = vector.broadcast %cst_72 : f32 to vector<16x320xf32>
    %121 = arith.maximumf %119, %120 : vector<16x320xf32>
    %122 = arith.addf %121, %41 : vector<16x320xf32>
    %c2_73 = arith.constant 2 : index
    %c0_74 = arith.constant 0 : index
    %c0_75 = arith.constant 0 : index
    %123 = vector.load %arg3[%c2_73, %c0_74, %c0_75] : memref<3x320x320xf32, #tpu.memory_space<vmem>>, vector<1x320x320xf32>
    %124 = vector.shape_cast %123 : vector<1x320x320xf32> to vector<320x320xf32>
    %cst_76 = arith.constant dense<0.000000e+00> : vector<16x320xf32>
    %125 = tpu.matmul %122, %124, %cst_76 {dimension_numbers = #tpu.dot_dimension_numbers<[1], [0], [0], [1], [0, 0, 1, 1], [], []>} : vector<16x320xf32>, vector<320x320xf32>, vector<16x320xf32> -> vector<16x320xf32>
    %c3 = arith.constant 3 : index
    %c0_77 = arith.constant 0 : index
    %c0_78 = arith.constant 0 : index
    %126 = vector.load %arg4[%c3, %c0_77, %c0_78] : memref<4x1x320xf32, #tpu.memory_space<vmem>>, vector<1x1x320xf32>
    %127 = vector.shape_cast %126 : vector<1x1x320xf32> to vector<1x320xf32>
    %128 = vector.broadcast %127 : vector<1x320xf32> to vector<16x320xf32>
    %129 = arith.addf %125, %128 : vector<16x320xf32>
    %cst_79 = arith.constant dense<0.000000e+00> : vector<320xf32>
    %130 = vector.multi_reduction <add>, %129, %cst_79 [0] : vector<16x320xf32> to vector<320xf32>
    %131 = vector.shape_cast %130 : vector<320xf32> to vector<1x320xf32>
    %132 = arith.mulf %129, %129 : vector<16x320xf32>
    %cst_80 = arith.constant dense<0.000000e+00> : vector<320xf32>
    %133 = vector.multi_reduction <add>, %132, %cst_80 [0] : vector<16x320xf32> to vector<320xf32>
    %134 = vector.shape_cast %133 : vector<320xf32> to vector<1x320xf32>
    %cst_81 = arith.constant dense<0.000000e+00> : vector<1x16xf32>
    %135 = tpu.matmul %131, %0, %cst_81 {dimension_numbers = #tpu.dot_dimension_numbers<[1], [0], [0], [1], [0, 0, 1, 1], [], []>} : vector<1x320xf32>, vector<320x16xf32>, vector<1x16xf32> -> vector<1x16xf32>
    %cst_82 = arith.constant dense<0.000000e+00> : vector<1x16xf32>
    %136 = tpu.matmul %134, %0, %cst_82 {dimension_numbers = #tpu.dot_dimension_numbers<[1], [0], [0], [1], [0, 0, 1, 1], [], []>} : vector<1x320xf32>, vector<320x16xf32>, vector<1x16xf32> -> vector<1x16xf32>
    %cst_83 = arith.constant 3.125000e-03 : f32
    %137 = vector.broadcast %cst_83 : f32 to vector<1x16xf32>
    %138 = arith.mulf %135, %137 : vector<1x16xf32>
    %cst_84 = arith.constant 3.125000e-03 : f32
    %139 = vector.broadcast %cst_84 : f32 to vector<1x16xf32>
    %140 = arith.mulf %136, %139 : vector<1x16xf32>
    %141 = arith.mulf %138, %138 : vector<1x16xf32>
    %142 = arith.subf %140, %141 : vector<1x16xf32>
    %cst_85 = arith.constant 0.000000e+00 : f32
    %143 = vector.broadcast %cst_85 : f32 to vector<1x16xf32>
    %144 = arith.maximumf %142, %143 : vector<1x16xf32>
    %c3_86 = arith.constant 3 : index
    %c0_87 = arith.constant 0 : index
    %c0_88 = arith.constant 0 : index
    %145 = vector.load %arg5[%c3_86, %c0_87, %c0_88] : memref<4x1x16xf32, #tpu.memory_space<vmem>>, vector<1x1x16xf32>
    %146 = vector.shape_cast %145 : vector<1x1x16xf32> to vector<1x16xf32>
    %cst_89 = arith.constant 9.99999974E-6 : f32
    %147 = vector.broadcast %cst_89 : f32 to vector<1x16xf32>
    %148 = arith.addf %144, %147 : vector<1x16xf32>
    %149 = math.rsqrt %148 : vector<1x16xf32>
    %150 = arith.mulf %146, %149 : vector<1x16xf32>
    %c3_90 = arith.constant 3 : index
    %c0_91 = arith.constant 0 : index
    %c0_92 = arith.constant 0 : index
    %151 = vector.load %arg6[%c3_90, %c0_91, %c0_92] : memref<4x1x16xf32, #tpu.memory_space<vmem>>, vector<1x1x16xf32>
    %152 = vector.shape_cast %151 : vector<1x1x16xf32> to vector<1x16xf32>
    %153 = arith.mulf %138, %150 : vector<1x16xf32>
    %154 = arith.subf %152, %153 : vector<1x16xf32>
    %cst_93 = arith.constant dense<0.000000e+00> : vector<1x320xf32>
    %155 = tpu.matmul %150, %1, %cst_93 {dimension_numbers = #tpu.dot_dimension_numbers<[1], [0], [0], [1], [0, 0, 1, 1], [], []>} : vector<1x16xf32>, vector<16x320xf32>, vector<1x320xf32> -> vector<1x320xf32>
    %cst_94 = arith.constant dense<0.000000e+00> : vector<1x320xf32>
    %156 = tpu.matmul %154, %1, %cst_94 {dimension_numbers = #tpu.dot_dimension_numbers<[1], [0], [0], [1], [0, 0, 1, 1], [], []>} : vector<1x16xf32>, vector<16x320xf32>, vector<1x320xf32> -> vector<1x320xf32>
    %157 = vector.broadcast %155 : vector<1x320xf32> to vector<16x320xf32>
    %158 = arith.mulf %129, %157 : vector<16x320xf32>
    %159 = vector.broadcast %156 : vector<1x320xf32> to vector<16x320xf32>
    %160 = arith.addf %158, %159 : vector<16x320xf32>
    %cst_95 = arith.constant 0.000000e+00 : f32
    %161 = vector.broadcast %cst_95 : f32 to vector<16x320xf32>
    %162 = arith.maximumf %160, %161 : vector<16x320xf32>
    %163 = arith.addf %162, %81 : vector<16x320xf32>
    %c0_96 = arith.constant 0 : index
    %c0_97 = arith.constant 0 : index
    %164 = vector.load %arg9[%c0_96, %c0_97] : memref<16x320xf32, #tpu.memory_space<vmem>>, vector<16x320xf32>
    tpu.vector_store %arg9[%c0_96, %c0_97], %163 {strides = array<i32>} : memref<16x320xf32, #tpu.memory_space<vmem>>, vector<16x320xf32>,
    return
  }
  func.func @transform_0(%arg0: i32) -> (i32, i32) {
    %c0_i32 = arith.constant 0 : i32
    %c0_i32_0 = arith.constant 0 : i32
    %c0_i32_1 = arith.constant 0 : i32
    return %c0_i32, %c0_i32_0 : i32, i32
  }
  func.func @transform_1(%arg0: i32) -> (i32, i32) {
    %c0_i32 = arith.constant 0 : i32
    %c0_i32_0 = arith.constant 0 : i32
    %c0_i32_1 = arith.constant 0 : i32
    return %c0_i32, %c0_i32_0 : i32, i32
  }
  func.func @transform_2(%arg0: i32) -> (i32, i32, i32) {
    %c0_i32 = arith.constant 0 : i32
    %c0_i32_0 = arith.constant 0 : i32
    %c0_i32_1 = arith.constant 0 : i32
    %c0_i32_2 = arith.constant 0 : i32
    return %c0_i32, %c0_i32_0, %c0_i32_1 : i32, i32, i32
  }
  func.func @transform_3(%arg0: i32) -> (i32, i32, i32) {
    %c0_i32 = arith.constant 0 : i32
    %c0_i32_0 = arith.constant 0 : i32
    %c0_i32_1 = arith.constant 0 : i32
    %c0_i32_2 = arith.constant 0 : i32
    return %c0_i32, %c0_i32_0, %c0_i32_1 : i32, i32, i32
  }
  func.func @transform_4(%arg0: i32) -> (i32, i32, i32) {
    %c0_i32 = arith.constant 0 : i32
    %c0_i32_0 = arith.constant 0 : i32
    %c0_i32_1 = arith.constant 0 : i32
    %c0_i32_2 = arith.constant 0 : i32
    return %c0_i32, %c0_i32_0, %c0_i32_1 : i32, i32, i32
  }
  func.func @transform_5(%arg0: i32) -> (i32, i32, i32) {
    %c0_i32 = arith.constant 0 : i32
    %c0_i32_0 = arith.constant 0 : i32
    %c0_i32_1 = arith.constant 0 : i32
    %c0_i32_2 = arith.constant 0 : i32
    return %c0_i32, %c0_i32_0, %c0_i32_1 : i32, i32, i32
  }
  func.func @transform_6(%arg0: i32) -> (i32, i32) {
    %c0_i32 = arith.constant 0 : i32
    %c0_i32_0 = arith.constant 0 : i32
    %c0_i32_1 = arith.constant 0 : i32
    return %c0_i32, %c0_i32_0 : i32, i32
  }
  func.func @transform_7(%arg0: i32) -> (i32, i32) {
    %c0_i32 = arith.constant 0 : i32
    %c0_i32_0 = arith.constant 0 : i32
    %c0_i32_1 = arith.constant 0 : i32
    return %c0_i32, %c0_i32_0 : i32, i32
  }
  func.func @transform_8(%arg0: i32) -> (i32, i32) {
    %c0_i32 = arith.constant 0 : i32
    %c0_i32_0 = arith.constant 0 : i32
    %c0_i32_1 = arith.constant 0 : i32
    return %c0_i32, %c0_i32_0 : i32, i32
  }
}

</mosaic_0001>

<llo_original>
// kernel: tile.19
$region0: #{tile.19}
  %s0 = inlined_call_operand.vmem [shape: f32[16,20,16], index: 0, kind: input, shape index: {}]
  %s1 = inlined_call_operand.vmem [shape: f32[16,320], index: 1, kind: output, shape index: {}]
  %v2 = vld [vmem:[%s0] ss:$8 sm:$0xf]
  %v3 = vld [vmem:[%s0] ss:$8 sm:$0xf0]
  %vm4 = vcmask 1047556
  %v5 = vsel %vm4, %v3, %v2
  %vm6 = vcmask 130048
  %7 = vst.msk [vmem:[%s1] ss:$8 sm:$0x7] %vm6, %v5
  %s8 = scalar_lea.vmem %s1, 4294967273
  %9 = vst.msk [vmem:[%s8] ss:$8 sm:$0x38] %vm6, %v5
  %s10 = scalar_lea.vmem %s1, 4294967250
  %11 = vst.msk [vmem:[%s10] ss:$8 sm:$0xc0] %vm6, %v5
  %s12 = scalar_lea.vmem %s0, 64
  %v13 = vld [vmem:[%s12] ss:$8 sm:$0xf]
  %s14 = scalar_lea.vmem %s0, 64
  %v15 = vld [vmem:[%s14] ss:$8 sm:$0xf0]
  %vm16 = vcmask 1047556
  %v17 = vsel %vm16, %v15, %v13
  %vm18 = vcmask 130048
  %s19 = scalar_lea.vmem %s1, 18
  %20 = vst.msk [vmem:[%s19] ss:$-15 sm:$0x3] %vm18, %v17
  %s21 = scalar_lea.vmem %s1, 4294967291
  %22 = vst.msk [vmem:[%s21] ss:$8 sm:$0xc] %vm18, %v17
  %s23 = scalar_lea.vmem %s1, 4294967268
  %24 = vst.msk [vmem:[%s23] ss:$8 sm:$0x70] %vm18, %v17
  %s25 = scalar_lea.vmem %s1, 4294967294
  %26 = vst.msk [vmem:[%s25] sm:$0x80] %vm18, %v17
  %s27 = scalar_lea.vmem %s0, 128
  %v28 = vld [vmem:[%s27] ss:$8 sm:$0xf]
  %s29 = scalar_lea.vmem %s0, 128
  %v30 = vld [vmem:[%s29] ss:$8 sm:$0xf0]
  %vm31 = vcmask 1047556
  %v32 = vsel %vm31, %v30, %v28
  %vm33 = vcmask 130048
  %s34 = scalar_lea.vmem %s1, 13
  %35 = vst.msk [vmem:[%s34] ss:$8 sm:$0x3] %vm33, %v32
  %s36 = scalar_lea.vmem %s1, 4294967286
  %37 = vst.msk [vmem:[%s36] ss:$8 sm:$0x1c] %vm33, %v32
  %s38 = scalar_lea.vmem %s1, 4294967263
  %39 = vst.msk [vmem:[%s38] ss:$8 sm:$0xe0] %vm33, %v32
  %s40 = scalar_lea.vmem %s0, 192
  %v41 = vld [vmem:[%s40] ss:$8 sm:$0xf]
  %s42 = scalar_lea.vmem %s0, 192
  %v43 = vld [vmem:[%s42] ss:$8 sm:$0xf0]
  %vm44 = vcmask 1047556
  %v45 = vsel %vm44, %v43, %v41
  %vm46 = vcmask 130048
  %s47 = scalar_lea.vmem %s1, 24
  %48 = vst.msk [vmem:[%s47] ss:$8 sm:$0x7] %vm46, %v45
  %s49 = scalar_lea.vmem %s1, 1
  %50 = vst.msk [vmem:[%s49] ss:$8 sm:$0x38] %vm46, %v45
  %s51 = scalar_lea.vmem %s1, 4294967274
  %52 = vst.msk [vmem:[%s51] ss:$8 sm:$0xc0] %vm46, %v45
  %s53 = scalar_lea.vmem %s0, 256
  %v54 = vld [vmem:[%s53] ss:$8 sm:$0xf]
  %s55 = scalar_lea.vmem %s0, 256
  %v56 = vld [vmem:[%s55] ss:$8 sm:$0xf0]
  %vm57 = vcmask 1047556
  %v58 = vsel %vm57, %v56, %v54
  %vm59 = vcmask 130048
  %s60 = scalar_lea.vmem %s1, 42
  %61 = vst.msk [vmem:[%s60] ss:$-15 sm:$0x3] %vm59, %v58
  %s62 = scalar_lea.vmem %s1, 19
  %63 = vst.msk [vmem:[%s62] ss:$8 sm:$0xc] %vm59, %v58
  %s64 = scalar_lea.vmem %s1, 4294967292
  %65 = vst.msk [vmem:[%s64] ss:$8 sm:$0x70] %vm59, %v58
  %s66 = scalar_lea.vmem %s1, 22
  %67 = vst.msk [vmem:[%s66] sm:$0x80] %vm59, %v58
  %s68 = scalar_lea.vmem %s0, 320
  %v69 = vld [vmem:[%s68] ss:$8 sm:$0xf]
  %s70 = scalar_lea.vmem %s0, 320
  %v71 = vld [vmem:[%s70] ss:$8 sm:$0xf0]
  %vm72 = vcmask 1047556
  %v73 = vsel %vm72, %v71, %v69
  %vm74 = vcmask 130048
  %s75 = scalar_lea.vmem %s1, 37
  %76 = vst.msk [vmem:[%s75] ss:$8 sm:$0x3] %vm74, %v73
  %s77 = scalar_lea.vmem %s1, 14
  %78 = vst.msk [vmem:[%s77] ss:$8 sm:$0x1c] %vm74, %v73
  %s79 = scalar_lea.vmem %s1, 4294967287
  %80 = vst.msk [vmem:[%s79] ss:$8 sm:$0xe0] %vm74, %v73
  %s81 = scalar_lea.vmem %s0, 7
  %v82 = vld [vmem:[%s81] ss:$24 sm:$0xf]
  %s83 = scalar_lea.vmem %s0, 7
  %v84 = vld [vmem:[%s83] ss:$24 sm:$0xf0]
  %vm85 = vcmask 1047556
  %v86 = vsel %vm85, %v84, %v82
  %87 = vrot.lane.b32.xlu0 %v86, 112
  %v88 = vpop.permute.xlu0 %87
  %vm89 = vcmask 1048448
  %90 = vst.msk [vmem:[%s1] sm:$0xff] %vm89, %v88
  %s91 = scalar_lea.vmem %s0, 207
  %v92 = vld [vmem:[%s91] ss:$24 sm:$0xf]
  %s93 = scalar_lea.vmem %s0, 207
  %v94 = vld [vmem:[%s93] ss:$24 sm:$0xf0]
  %vm95 = vcmask 1047556
  %v96 = vsel %vm95, %v94, %v92
  %97 = vrot.lane.b32.xlu0 %v96, 112
  %v98 = vpop.permute.xlu0 %97
  %vm99 = vcmask 1048448
  %s100 = scalar_lea.vmem %s1, 32
  %101 = vst.msk [vmem:[%s100] sm:$0xff] %vm99, %v98
  %s102 = scalar_lea.vmem %s0, 15
  %v103 = vld [vmem:[%s102] ss:$24 sm:$0xf]
  %s104 = scalar_lea.vmem %s0, 15
  %v105 = vld [vmem:[%s104] ss:$24 sm:$0xf0]
  %vm106 = vcmask 1047556
  %v107 = vsel %vm106, %v105, %v103
  %108 = vrot.lane.b32.xlu0 %v107, 112
  %v109 = vpop.permute.xlu0 %108
  %vm110 = vcmask 1048448
  %s111 = scalar_lea.vmem %s1, 8
  %112 = vst.msk [vmem:[%s111] sm:$0xff] %vm110, %v109
  %s113 = scalar_lea.vmem %s0, 199
  %v114 = vld [vmem:[%s113] ss:$24 sm:$0xf]
  %s115 = scalar_lea.vmem %s0, 199
  %v116 = vld [vmem:[%s115] ss:$24 sm:$0xf0]
  %vm117 = vcmask 1047556
  %v118 = vsel %vm117, %v116, %v114
  %119 = vrot.lane.b32.xlu0 %v118, 112
  %v120 = vpop.permute.xlu0 %119
  %vm121 = vcmask 1048448
  %s122 = scalar_lea.vmem %s1, 24
  %123 = vst.msk [vmem:[%s122] sm:$0xff] %vm121, %v120
  %s124 = scalar_lea.vmem %s0, 6
  %v125 = vld [vmem:[%s124] ss:$24 sm:$0xf]
  %s126 = scalar_lea.vmem %s0, 6
  %v127 = vld [vmem:[%s126] ss:$24 sm:$0xf0]
  %vm128 = vcmask 1047556
  %v129 = vsel %vm128, %v127, %v125
  %130 = vrot.lane.b32.xlu0 %v129, 96
  %v131 = vpop.permute.xlu0 %130
  %vm132 = vcmask 917248
  %133 = vst.msk [vmem:[%s1] sm:$0xff] %vm132, %v131
  %s134 = scalar_lea.vmem %s0, 206
  %v135 = vld [vmem:[%s134] ss:$24 sm:$0xf]
  %s136 = scalar_lea.vmem %s0, 206
  %v137 = vld [vmem:[%s136] ss:$24 sm:$0xf0]
  %vm138 = vcmask 1047556
  %v139 = vsel %vm138, %v137, %v135
  %140 = vrot.lane.b32.xlu0 %v139, 96
  %v141 = vpop.permute.xlu0 %140
  %vm142 = vcmask 917248
  %s143 = scalar_lea.vmem %s1, 32
  %144 = vst.msk [vmem:[%s143] sm:$0xff] %vm142, %v141
  %s145 = scalar_lea.vmem %s0, 14
  %v146 = vld [vmem:[%s145] ss:$24 sm:$0xf]
  %s147 = scalar_lea.vmem %s0, 14
  %v148 = vld [vmem:[%s147] ss:$24 sm:$0xf0]
  %vm149 = vcmask 1047556
  %v150 = vsel %vm149, %v148, %v146
  %151 = vrot.lane.b32.xlu0 %v150, 96
  %v152 = vpop.permute.xlu0 %151
  %vm153 = vcmask 917248
  %s154 = scalar_lea.vmem %s1, 8
  %155 = vst.msk [vmem:[%s154] sm:$0xff] %vm153, %v152
  %s156 = scalar_lea.vmem %s0, 198
  %v157 = vld [vmem:[%s156] ss:$24 sm:$0xf]
  %s158 = scalar_lea.vmem %s0, 198
  %v159 = vld [vmem:[%s158] ss:$24 sm:$0xf0]
  %vm160 = vcmask 1047556
  %v161 = vsel %vm160, %v159, %v157
  %162 = vrot.lane.b32.xlu0 %v161, 96
  %v163 = vpop.permute.xlu0 %162
  %vm164 = vcmask 917248
  %s165 = scalar_lea.vmem %s1, 24
  %166 = vst.msk [vmem:[%s165] sm:$0xff] %vm164, %v163
  %s167 = scalar_lea.vmem %s0, 5
  %v168 = vld [vmem:[%s167] ss:$24 sm:$0xf]
  %s169 = scalar_lea.vmem %s0, 5
  %v170 = vld [vmem:[%s169] ss:$24 sm:$0xf0]
  %vm171 = vcmask 1047556
  %v172 = vsel %vm171, %v170, %v168
  %173 = vrot.lane.b32.xlu0 %v172, 80
  %v174 = vpop.permute.xlu0 %173
  %vm175 = vcmask 786048
  %176 = vst.msk [vmem:[%s1] sm:$0xff] %vm175, %v174
  %s177 = scalar_lea.vmem %s0, 205
  %v178 = vld [vmem:[%s177] ss:$24 sm:$0xf]
  %s179 = scalar_lea.vmem %s0, 205
  %v180 = vld [vmem:[%s179] ss:$24 sm:$0xf0]
  %vm181 = vcmask 1047556
  %v182 = vsel %vm181, %v180, %v178
  %183 = vrot.lane.b32.xlu0 %v182, 80
  %v184 = vpop.permute.xlu0 %183
  %vm185 = vcmask 786048
  %s186 = scalar_lea.vmem %s1, 32
  %187 = vst.msk [vmem:[%s186] sm:$0xff] %vm185, %v184
  %s188 = scalar_lea.vmem %s0, 13
  %v189 = vld [vmem:[%s188] ss:$24 sm:$0xf]
  %s190 = scalar_lea.vmem %s0, 13
  %v191 = vld [vmem:[%s190] ss:$24 sm:$0xf0]
  %vm192 = vcmask 1047556
  %v193 = vsel %vm192, %v191, %v189
  %194 = vrot.lane.b32.xlu0 %v193, 80
  %v195 = vpop.permute.xlu0 %194
  %vm196 = vcmask 786048
  %s197 = scalar_lea.vmem %s1, 8
  %198 = vst.msk [vmem:[%s197] sm:$0xff] %vm196, %v195
  %s199 = scalar_lea.vmem %s0, 197
  %v200 = vld [vmem:[%s199] ss:$24 sm:$0xf]
  %s201 = scalar_lea.vmem %s0, 197
  %v202 = vld [vmem:[%s201] ss:$24 sm:$0xf0]
  %vm203 = vcmask 1047556
  %v204 = vsel %vm203, %v202, %v200
  %205 = vrot.lane.b32.xlu0 %v204, 80
  %v206 = vpop.permute.xlu0 %205
  %vm207 = vcmask 786048
  %s208 = scalar_lea.vmem %s1, 24
  %209 = vst.msk [vmem:[%s208] sm:$0xff] %vm207, %v206
  %s210 = scalar_lea.vmem %s0, 4
  %v211 = vld [vmem:[%s210] ss:$24 sm:$0xf]
  %s212 = scalar_lea.vmem %s0, 4
  %v213 = vld [vmem:[%s212] ss:$24 sm:$0xf0]
  %vm214 = vcmask 1047556
  %v215 = vsel %vm214, %v213, %v211
  %216 = vrot.lane.b32.xlu0 %v215, 64
  %v217 = vpop.permute.xlu0 %216
  %vm218 = vcmask 654848
  %219 = vst.msk [vmem:[%s1] sm:$0xff] %vm218, %v217
  %s220 = scalar_lea.vmem %s0, 204
  %v221 = vld [vmem:[%s220] ss:$24 sm:$0xf]
  %s222 = scalar_lea.vmem %s0, 204
  %v223 = vld [vmem:[%s222] ss:$24 sm:$0xf0]
  %vm224 = vcmask 1047556
  %v225 = vsel %vm224, %v223, %v221
  %226 = vrot.lane.b32.xlu0 %v225, 64
  %v227 = vpop.permute.xlu0 %226
  %vm228 = vcmask 654848
  %s229 = scalar_lea.vmem %s1, 32
  %230 = vst.msk [vmem:[%s229] sm:$0xff] %vm228, %v227
  %s231 = scalar_lea.vmem %s0, 12
  %v232 = vld [vmem:[%s231] ss:$24 sm:$0xf]
  %s233 = scalar_lea.vmem %s0, 12
  %v234 = vld [vmem:[%s233] ss:$24 sm:$0xf0]
  %vm235 = vcmask 1047556
  %v236 = vsel %vm235, %v234, %v232
  %237 = vrot.lane.b32.xlu0 %v236, 64
  %v238 = vpop.permute.xlu0 %237
  %vm239 = vcmask 654848
  %s240 = scalar_lea.vmem %s1, 8
  %241 = vst.msk [vmem:[%s240] sm:$0xff] %vm239, %v238
  %s242 = scalar_lea.vmem %s0, 196
  %v243 = vld [vmem:[%s242] ss:$24 sm:$0xf]
  %s244 = scalar_lea.vmem %s0, 196
  %v245 = vld [vmem:[%s244] ss:$24 sm:$0xf0]
  %vm246 = vcmask 1047556
  %v247 = vsel %vm246, %v245, %v243
  %248 = vrot.lane.b32.xlu0 %v247, 64
  %v249 = vpop.permute.xlu0 %248
  %vm250 = vcmask 654848
  %s251 = scalar_lea.vmem %s1, 24
  %252 = vst.msk [vmem:[%s251] sm:$0xff] %vm250, %v249
  %s253 = scalar_lea.vmem %s0, 3
  %v254 = vld [vmem:[%s253] ss:$24 sm:$0xf]
  %s255 = scalar_lea.vmem %s0, 3
  %v256 = vld [vmem:[%s255] ss:$24 sm:$0xf0]
  %vm257 = vcmask 1047556
  %v258 = vsel %vm257, %v256, %v254
  %259 = vrot.lane.b32.xlu0 %v258, 48
  %v260 = vpop.permute.xlu0 %259
  %vm261 = vcmask 523648
  %262 = vst.msk [vmem:[%s1] sm:$0xff] %vm261, %v260
  %s263 = scalar_lea.vmem %s0, 203
  %v264 = vld [vmem:[%s263] ss:$24 sm:$0xf]
  %s265 = scalar_lea.vmem %s0, 203
  %v266 = vld [vmem:[%s265] ss:$24 sm:$0xf0]
  %vm267 = vcmask 1047556
  %v268 = vsel %vm267, %v266, %v264
  %269 = vrot.lane.b32.xlu0 %v268, 48
  %v270 = vpop.permute.xlu0 %269
  %vm271 = vcmask 523648
  %s272 = scalar_lea.vmem %s1, 32
  %273 = vst.msk [vmem:[%s272] sm:$0xff] %vm271, %v270
  %s274 = scalar_lea.vmem %s0, 11
  %v275 = vld [vmem:[%s274] ss:$24 sm:$0xf]
  %s276 = scalar_lea.vmem %s0, 11
  %v277 = vld [vmem:[%s276] ss:$24 sm:$0xf0]
  %vm278 = vcmask 1047556
  %v279 = vsel %vm278, %v277, %v275
  %280 = vrot.lane.b32.xlu0 %v279, 48
  %v281 = vpop.permute.xlu0 %280
  %vm282 = vcmask 523648
  %s283 = scalar_lea.vmem %s1, 8
  %284 = vst.msk [vmem:[%s283] sm:$0xff] %vm282, %v281
  %s285 = scalar_lea.vmem %s0, 211
  %v286 = vld [vmem:[%s285] ss:$24 sm:$0xf]
  %s287 = scalar_lea.vmem %s0, 211
  %v288 = vld [vmem:[%s287] ss:$24 sm:$0xf0]
  %vm289 = vcmask 1047556
  %v290 = vsel %vm289, %v288, %v286
  %291 = vrot.lane.b32.xlu0 %v290, 48
  %v292 = vpop.permute.xlu0 %291
  %vm293 = vcmask 523648
  %s294 = scalar_lea.vmem %s1, 40
  %295 = vst.msk [vmem:[%s294] sm:$0xff] %vm293, %v292
  %s296 = scalar_lea.vmem %s0, 19
  %v297 = vld [vmem:[%s296] ss:$24 sm:$0xf]
  %s298 = scalar_lea.vmem %s0, 19
  %v299 = vld [vmem:[%s298] ss:$24 sm:$0xf0]
  %vm300 = vcmask 1047556
  %v301 = vsel %vm300, %v299, %v297
  %302 = vrot.lane.b32.xlu0 %v301, 48
  %v303 = vpop.permute.xlu0 %302
  %vm304 = vcmask 523648
  %s305 = scalar_lea.vmem %s1, 16
  %306 = vst.msk [vmem:[%s305] sm:$0xff] %vm304, %v303
  %s307 = scalar_lea.vmem %s0, 195
  %v308 = vld [vmem:[%s307] ss:$24 sm:$0xf]
  %s309 = scalar_lea.vmem %s0, 195
  %v310 = vld [vmem:[%s309] ss:$24 sm:$0xf0]
  %vm311 = vcmask 1047556
  %v312 = vsel %vm311, %v310, %v308
  %313 = vrot.lane.b32.xlu0 %v312, 48
  %v314 = vpop.permute.xlu0 %313
  %vm315 = vcmask 523648
  %s316 = scalar_lea.vmem %s1, 24
  %317 = vst.msk [vmem:[%s316] sm:$0xff] %vm315, %v314
  %s318 = scalar_lea.vmem %s0, 2
  %v319 = vld [vmem:[%s318] ss:$24 sm:$0xf]
  %s320 = scalar_lea.vmem %s0, 2
  %v321 = vld [vmem:[%s320] ss:$24 sm:$0xf0]
  %vm322 = vcmask 1047556
  %v323 = vsel %vm322, %v321, %v319
  %324 = vrot.lane.b32.xlu0 %v323, 32
  %v325 = vpop.permute.xlu0 %324
  %vm326 = vcmask 392448
  %327 = vst.msk [vmem:[%s1] sm:$0xff] %vm326, %v325
  %s328 = scalar_lea.vmem %s0, 202
  %v329 = vld [vmem:[%s328] ss:$24 sm:$0xf]
  %s330 = scalar_lea.vmem %s0, 202
  %v331 = vld [vmem:[%s330] ss:$24 sm:$0xf0]
  %vm332 = vcmask 1047556
  %v333 = vsel %vm332, %v331, %v329
  %334 = vrot.lane.b32.xlu0 %v333, 32
  %v335 = vpop.permute.xlu0 %334
  %vm336 = vcmask 392448
  %s337 = scalar_lea.vmem %s1, 32
  %338 = vst.msk [vmem:[%s337] sm:$0xff] %vm336, %v335
  %s339 = scalar_lea.vmem %s0, 10
  %v340 = vld [vmem:[%s339] ss:$24 sm:$0xf]
  %s341 = scalar_lea.vmem %s0, 10
  %v342 = vld [vmem:[%s341] ss:$24 sm:$0xf0]
  %vm343 = vcmask 1047556
  %v344 = vsel %vm343, %v342, %v340
  %345 = vrot.lane.b32.xlu0 %v344, 32
  %v346 = vpop.permute.xlu0 %345
  %vm347 = vcmask 392448
  %s348 = scalar_lea.vmem %s1, 8
  %349 = vst.msk [vmem:[%s348] sm:$0xff] %vm347, %v346
  %s350 = scalar_lea.vmem %s0, 210
  %v351 = vld [vmem:[%s350] ss:$24 sm:$0xf]
  %s352 = scalar_lea.vmem %s0, 210
  %v353 = vld [vmem:[%s352] ss:$24 sm:$0xf0]
  %vm354 = vcmask 1047556
  %v355 = vsel %vm354, %v353, %v351
  %356 = vrot.lane.b32.xlu0 %v355, 32
  %v357 = vpop.permute.xlu0 %356
  %vm358 = vcmask 392448
  %s359 = scalar_lea.vmem %s1, 40
  %360 = vst.msk [vmem:[%s359] sm:$0xff] %vm358, %v357
  %s361 = scalar_lea.vmem %s0, 18
  %v362 = vld [vmem:[%s361] ss:$24 sm:$0xf]
  %s363 = scalar_lea.vmem %s0, 18
  %v364 = vld [vmem:[%s363] ss:$24 sm:$0xf0]
  %vm365 = vcmask 1047556
  %v366 = vsel %vm365, %v364, %v362
  %367 = vrot.lane.b32.xlu0 %v366, 32
  %v368 = vpop.permute.xlu0 %367
  %vm369 = vcmask 392448
  %s370 = scalar_lea.vmem %s1, 16
  %371 = vst.msk [vmem:[%s370] sm:$0xff] %vm369, %v368
  %s372 = scalar_lea.vmem %s0, 194
  %v373 = vld [vmem:[%s372] ss:$24 sm:$0xf]
  %s374 = scalar_lea.vmem %s0, 194
  %v375 = vld [vmem:[%s374] ss:$24 sm:$0xf0]
  %vm376 = vcmask 1047556
  %v377 = vsel %vm376, %v375, %v373
  %378 = vrot.lane.b32.xlu0 %v377, 32
  %v379 = vpop.permute.xlu0 %378
  %vm380 = vcmask 392448
  %s381 = scalar_lea.vmem %s1, 24
  %382 = vst.msk [vmem:[%s381] sm:$0xff] %vm380, %v379
  %s383 = scalar_lea.vmem %s0, 1
  %v384 = vld [vmem:[%s383] ss:$24 sm:$0xf]
  %s385 = scalar_lea.vmem %s0, 1
  %v386 = vld [vmem:[%s385] ss:$24 sm:$0xf0]
  %vm387 = vcmask 1047556
  %v388 = vsel %vm387, %v386, %v384
  %389 = vrot.lane.b32.xlu0 %v388, 16
  %v390 = vpop.permute.xlu0 %389
  %vm391 = vcmask 261248
  %392 = vst.msk [vmem:[%s1] sm:$0xff] %vm391, %v390
  %s393 = scalar_lea.vmem %s0, 201
  %v394 = vld [vmem:[%s393] ss:$24 sm:$0xf]
  %s395 = scalar_lea.vmem %s0, 201
  %v396 = vld [vmem:[%s395] ss:$24 sm:$0xf0]
  %vm397 = vcmask 1047556
  %v398 = vsel %vm397, %v396, %v394
  %399 = vrot.lane.b32.xlu0 %v398, 16
  %v400 = vpop.permute.xlu0 %399
  %vm401 = vcmask 261248
  %s402 = scalar_lea.vmem %s1, 32
  %403 = vst.msk [vmem:[%s402] sm:$0xff] %vm401, %v400
  %s404 = scalar_lea.vmem %s0, 9
  %v405 = vld [vmem:[%s404] ss:$24 sm:$0xf]
  %s406 = scalar_lea.vmem %s0, 9
  %v407 = vld [vmem:[%s406] ss:$24 sm:$0xf0]
  %vm408 = vcmask 1047556
  %v409 = vsel %vm408, %v407, %v405
  %410 = vrot.lane.b32.xlu0 %v409, 16
  %v411 = vpop.permute.xlu0 %410
  %vm412 = vcmask 261248
  %s413 = scalar_lea.vmem %s1, 8
  %414 = vst.msk [vmem:[%s413] sm:$0xff] %vm412, %v411
  %s415 = scalar_lea.vmem %s0, 209
  %v416 = vld [vmem:[%s415] ss:$24 sm:$0xf]
  %s417 = scalar_lea.vmem %s0, 209
  %v418 = vld [vmem:[%s417] ss:$24 sm:$0xf0]
  %vm419 = vcmask 1047556
  %v420 = vsel %vm419, %v418, %v416
  %421 = vrot.lane.b32.xlu0 %v420, 16
  %v422 = vpop.permute.xlu0 %421
  %vm423 = vcmask 261248
  %s424 = scalar_lea.vmem %s1, 40
  %425 = vst.msk [vmem:[%s424] sm:$0xff] %vm423, %v422
  %s426 = scalar_lea.vmem %s0, 17
  %v427 = vld [vmem:[%s426] ss:$24 sm:$0xf]
  %s428 = scalar_lea.vmem %s0, 17
  %v429 = vld [vmem:[%s428] ss:$24 sm:$0xf0]
  %vm430 = vcmask 1047556
  %v431 = vsel %vm430, %v429, %v427
  %432 = vrot.lane.b32.xlu0 %v431, 16
  %v433 = vpop.permute.xlu0 %432
  %vm434 = vcmask 261248
  %s435 = scalar_lea.vmem %s1, 16
  %436 = vst.msk [vmem:[%s435] sm:$0xff] %vm434, %v433
  %s437 = scalar_lea.vmem %s0, 193
  %v438 = vld [vmem:[%s437] ss:$24 sm:$0xf]
  %s439 = scalar_lea.vmem %s0, 193
  %v440 = vld [vmem:[%s439] ss:$24 sm:$0xf0]
  %vm441 = vcmask 1047556
  %v442 = vsel %vm441, %v440, %v438
  %443 = vrot.lane.b32.xlu0 %v442, 16
  %v444 = vpop.permute.xlu0 %443
  %vm445 = vcmask 261248
  %s446 = scalar_lea.vmem %s1, 24
  %447 = vst.msk [vmem:[%s446] sm:$0xff] %vm445, %v444

// kernel: gclayers_forward.1
$region0: #{gclayers_forward.1}
  #allocation0 [shape = 'u32[]', space=smem, size = 0x4, offset = 0x4, fixed_abs, tag = 'smem constant byte address 0x4 - core index']
  #allocation1 [shape = 'u32[144,128]{1,0:T(1,128)}', space=vmem, size = 0x12000, scoped, tag = 'internal scratch']
  %s0 = inlined_call_operand.vmem [shape: f32[16,120], index: 0, kind: input, shape index: {}]
  %s1 = inlined_call_operand.vmem [shape: f32[120,320], index: 1, kind: input, shape index: {}]
  %s2 = inlined_call_operand.vmem [shape: f32[3,320,320], index: 2, kind: input, shape index: {}]
  %s3 = inlined_call_operand.vmem [shape: f32[4,1,320], index: 3, kind: input, shape index: {}]
  %s4 = inlined_call_operand.vmem [shape: f32[4,1,16], index: 4, kind: input, shape index: {}]
  %s5 = inlined_call_operand.vmem [shape: f32[4,1,16], index: 5, kind: input, shape index: {}]
  %s6 = inlined_call_operand.vmem [shape: f32[320,16], index: 6, kind: input, shape index: {}]
  %s7 = inlined_call_operand.vmem [shape: f32[16,320], index: 7, kind: input, shape index: {}]
  %s8 = inlined_call_operand.vmem [shape: f32[16,320], index: 8, kind: output, shape index: {}]
  %s9 = sld [smem:[#allocation0]]
  $region42: #{gclayers_forward.1} parent=0
    _
  %s11 = ssub.s32 1, %s9
  %s12 = scalar_select 0, %s11, %s9
  // Predicated region
  $region2: #{gclayers_forward.1} parent=0 // pred_check
    _
  $region3: #{gclayers_forward.1} parent=0 // pred_check_branch
    %14 = sbr.rel (0) target = $region5
  $region4: #{gclayers_forward.1} parent=0 // pred_region
    _
  $region5: #{gclayers_forward.1} parent=0 // pred_fallthru
    _
  // Predicated region
  $region6: #{gclayers_forward.1} parent=0 // pred_check
    _
  $region7: #{gclayers_forward.1} parent=0 // pred_check_branch
    %16 = sbr.rel (0) target = $region9
  $region8: #{gclayers_forward.1} parent=0 // pred_region
    _
  $region9: #{gclayers_forward.1} parent=0 // pred_fallthru
    _
  // Predicated region
  $region10: #{gclayers_forward.1} parent=0 // pred_check
    _
  $region11: #{gclayers_forward.1} parent=0 // pred_check_branch
    %18 = sbr.rel (0) target = $region13
  $region12: #{gclayers_forward.1} parent=0 // pred_region
    _
  $region13: #{gclayers_forward.1} parent=0 // pred_fallthru
    _
  // Predicated region
  $region14: #{gclayers_forward.1} parent=0 // pred_check
    _
  $region15: #{gclayers_forward.1} parent=0 // pred_check_branch
    %20 = sbr.rel (0) target = $region17
  $region16: #{gclayers_forward.1} parent=0 // pred_region
    _
  $region17: #{gclayers_forward.1} parent=0 // pred_fallthru
    _
  // Predicated region
  $region18: #{gclayers_forward.1} parent=0 // pred_check
    _
  $region19: #{gclayers_forward.1} parent=0 // pred_check_branch
    %22 = sbr.rel (0) target = $region21
  $region20: #{gclayers_forward.1} parent=0 // pred_region
    _
  $region21: #{gclayers_forward.1} parent=0 // pred_fallthru
    _
  // Predicated region
  $region22: #{gclayers_forward.1} parent=0 // pred_check
    _
  $region23: #{gclayers_forward.1} parent=0 // pred_check_branch
    %24 = sbr.rel (0) target = $region25
  $region24: #{gclayers_forward.1} parent=0 // pred_region
    _
  $region25: #{gclayers_forward.1} parent=0 // pred_fallthru
    _
  // Predicated region
  $region26: #{gclayers_forward.1} parent=0 // pred_check
    _
  $region27: #{gclayers_forward.1} parent=0 // pred_check_branch
    %26 = sbr.rel (0) target = $region29
  $region28: #{gclayers_forward.1} parent=0 // pred_region
    _
  $region29: #{gclayers_forward.1} parent=0 // pred_fallthru
    _
  // Predicated region
  $region30: #{gclayers_forward.1} parent=0 // pred_check
    _
  $region31: #{gclayers_forward.1} parent=0 // pred_check_branch
    %28 = sbr.rel (0) target = $region33
  $region32: #{gclayers_forward.1} parent=0 // pred_region
    _
  $region33: #{gclayers_forward.1} parent=0 // pred_fallthru
    _
  %v29 = vld [vmem:[%s6] sm:$0xff]
  %v30 = vld [vmem:[%s6 + $0x8] sm:$0xff]
  %v31 = vld [vmem:[%s6 + $0x10] sm:$0xff]
  %v32 = vld [vmem:[%s6 + $0x18] sm:$0xff]
  %v33 = vld [vmem:[%s6 + $0x20] sm:$0xff]
  %v34 = vld [vmem:[%s6 + $0x28] sm:$0xff]
  %v35 = vld [vmem:[%s6 + $0x30] sm:$0xff]
  %v36 = vld [vmem:[%s6 + $0x38] sm:$0xff]
  %v37 = vld [vmem:[%s6 + $0x40] sm:$0xff]
  %v38 = vld [vmem:[%s6 + $0x48] sm:$0xff]
  %v39 = vld [vmem:[%s6 + $0x50] sm:$0xff]
  %v40 = vld [vmem:[%s6 + $0x58] sm:$0xff]
  %v41 = vld [vmem:[%s6 + $0x60] sm:$0xff]
  %v42 = vld [vmem:[%s6 + $0x68] sm:$0xff]
  %v43 = vld [vmem:[%s6 + $0x70] sm:$0xff]
  %v44 = vld [vmem:[%s6 + $0x78] sm:$0xff]
  %v45 = vld [vmem:[%s6 + $0x80] sm:$0xff]
  %v46 = vld [vmem:[%s6 + $0x88] sm:$0xff]
  %v47 = vld [vmem:[%s6 + $0x90] sm:$0xff]
  %v48 = vld [vmem:[%s6 + $0x98] sm:$0xff]
  %v49 = vld [vmem:[%s6 + $0xa0] sm:$0xff]
  %v50 = vld [vmem:[%s6 + $0xa8] sm:$0xff]
  %v51 = vld [vmem:[%s6 + $0xb0] sm:$0xff]
  %v52 = vld [vmem:[%s6 + $0xb8] sm:$0xff]
  %v53 = vld [vmem:[%s6 + $0xc0] sm:$0xff]
  %v54 = vld [vmem:[%s6 + $0xc8] sm:$0xff]
  %v55 = vld [vmem:[%s6 + $0xd0] sm:$0xff]
  %v56 = vld [vmem:[%s6 + $0xd8] sm:$0xff]
  %v57 = vld [vmem:[%s6 + $0xe0] sm:$0xff]
  %v58 = vld [vmem:[%s6 + $0xe8] sm:$0xff]
  %v59 = vld [vmem:[%s6 + $0xf0] sm:$0xff]
  %v60 = vld [vmem:[%s6 + $0xf8] sm:$0xff]
  %v61 = vld [vmem:[%s6 + $0x100] sm:$0xff]
  %v62 = vld [vmem:[%s6 + $0x108] sm:$0xff]
  %v63 = vld [vmem:[%s6 + $0x110] sm:$0xff]
  %v64 = vld [vmem:[%s6 + $0x118] sm:$0xff]
  %v65 = vld [vmem:[%s6 + $0x120] sm:$0xff]
  %v66 = vld [vmem:[%s6 + $0x128] sm:$0xff]
  %v67 = vld [vmem:[%s6 + $0x130] sm:$0xff]
  %v68 = vld [vmem:[%s6 + $0x138] sm:$0xff]
  %v69 = vld [vmem:[%s7] sm:$0xff]
  %v70 = vld [vmem:[%s7 + $0x8] sm:$0xff]
  %v71 = vld [vmem:[%s7 + $0x10] sm:$0xff]
  %v72 = vld [vmem:[%s7 + $0x18] sm:$0xff]
  %v73 = vld [vmem:[%s7 + $0x20] sm:$0xff]
  %v74 = vld [vmem:[%s7 + $0x28] sm:$0xff]
  %v75 = vld [vmem:[%s0] sm:$0xff]
  %v76 = vld [vmem:[%s0 + $0x8] sm:$0xff]
  %v77 = vld [vmem:[%s1] sm:$0xff]
  %v78 = vld [vmem:[%s1 + $0x8] sm:$0xff]
  %v79 = vld [vmem:[%s1 + $0x10] sm:$0xff]
  %v80 = vld [vmem:[%s1 + $0x18] sm:$0xff]
  %v81 = vld [vmem:[%s1 + $0x20] sm:$0xff]
  %v82 = vld [vmem:[%s1 + $0x28] sm:$0xff]
  %v83 = vld [vmem:[%s1 + $0x30] sm:$0xff]
  %v84 = vld [vmem:[%s1 + $0x38] sm:$0xff]
  %v85 = vld [vmem:[%s1 + $0x40] sm:$0xff]
  %v86 = vld [vmem:[%s1 + $0x48] sm:$0xff]
  %v87 = vld [vmem:[%s1 + $0x50] sm:$0xff]
  %v88 = vld [vmem:[%s1 + $0x58] sm:$0xff]
  %v89 = vld [vmem:[%s1 + $0x60] sm:$0xff]
  %v90 = vld [vmem:[%s1 + $0x68] sm:$0xff]
  %v91 = vld [vmem:[%s1 + $0x70] sm:$0xff]
  %v92 = vld [vmem:[%s1 + $0x78] sm:$0xff]
  %v93 = vld [vmem:[%s1 + $0x80] sm:$0xff]
  %v94 = vld [vmem:[%s1 + $0x88] sm:$0xff]
  %v95 = vld [vmem:[%s1 + $0x90] sm:$0xff]
  %v96 = vld [vmem:[%s1 + $0x98] sm:$0xff]
  %v97 = vld [vmem:[%s1 + $0xa0] sm:$0xff]
  %v98 = vld [vmem:[%s1 + $0xa8] sm:$0xff]
  %v99 = vld [vmem:[%s1 + $0xb0] sm:$0xff]
  %v100 = vld [vmem:[%s1 + $0xb8] sm:$0xff]
  %v101 = vld [vmem:[%s1 + $0xc0] sm:$0xff]
  %v102 = vld [vmem:[%s1 + $0xc8] sm:$0xff]
  %v103 = vld [vmem:[%s1 + $0xd0] sm:$0xff]
  %v104 = vld [vmem:[%s1 + $0xd8] sm:$0xff]
  %v105 = vld [vmem:[%s1 + $0xe0] sm:$0xff]
  %v106 = vld [vmem:[%s1 + $0xe8] sm:$0xff]
  %v107 = vld [vmem:[%s1 + $0xf0] sm:$0xff]
  %v108 = vld [vmem:[%s1 + $0xf8] sm:$0xff]
  %v109 = vld [vmem:[%s1 + $0x100] sm:$0xff]
  %v110 = vld [vmem:[%s1 + $0x108] sm:$0xff]
  %v111 = vld [vmem:[%s1 + $0x110] sm:$0xff]
  %v112 = vld [vmem:[%s1 + $0x118] sm:$0xff]
  %v113 = vld [vmem:[%s1 + $0x120] sm:$0xff]
  %v114 = vld [vmem:[%s1 + $0x128] sm:$0xff]
  %v115 = vld [vmem:[%s1 + $0x130] sm:$0xff]
  %v116 = vld [vmem:[%s1 + $0x138] sm:$0xff]
  %v117 = vld [vmem:[%s1 + $0x140] sm:$0xff]
  %v118 = vld [vmem:[%s1 + $0x148] sm:$0xff]
  %v119 = vld [vmem:[%s1 + $0x150] sm:$0xff]
  %v120 = vld [vmem:[%s1 + $0x158] sm:$0xff]
  %v121 = vld [vmem:[%s1 + $0x160] sm:$0xff]
  %v122 = vld [vmem:[%s3] sm:$0x7]
  %v124 = vlaneseq
  %v125 = vshrl.u32 %v124, 7
  %v126 = vsub.s32 0, %v125
  %v127 = vrot.slane %v122, %v126
  %v128 = vlaneseq
  %v129 = vshrl.u32 %v128, 7
  %v130 = vsub.s32 1, %v129
  %v131 = vrot.slane %v122, %v130
  %v132 = vlaneseq
  %v133 = vshrl.u32 %v132, 7
  %v134 = vsub.s32 2, %v133
  %v135 = vrot.slane %v122, %v134
  %vm139 = vcmask 982016
  %v141 = vsel %vm139, %v75, 0
  %v144 = vsel %vm139, %v76, 0
  %146 = vmatprep.subr.mxu0 %v78
  %147 = vmatpush1.msra.mxu0 %v77
  %148 = vmatprep.subr.mxu0 %v81
  %149 = vmatpush1.msra.mxu0 %v80
  %150 = vmatprep.subr.mxu0 %v84
  %151 = vmatpush1.msra.mxu0 %v83
  %152 = vmatprep.subr.mxu0 %v87
  %153 = vmatpush1.msra.mxu0 %v86
  %154 = vmatprep.subr.mxu0 %v90
  %155 = vmatpush1.msra.mxu0 %v89
  %156 = vmatprep.subr.mxu0 %v93
  %157 = vmatpush1.msra.mxu0 %v92
  %158 = vmatprep.subr.mxu0 %v96
  %159 = vmatpush1.msra.mxu0 %v95
  %160 = vmatprep.subr.mxu0 %v99
  %161 = vmatpush1.msra.mxu0 %v98
  %162 = vmatprep.subr.mxu0 %v102
  %163 = vmatpush1.msra.mxu0 %v101
  %164 = vmatprep.subr.mxu0 %v105
  %165 = vmatpush1.msra.mxu0 %v104
  %166 = vmatprep.subr.mxu0 %v108
  %167 = vmatpush1.msra.mxu0 %v107
  %168 = vmatprep.subr.mxu0 %v111
  %169 = vmatpush1.msra.mxu0 %v110
  %170 = vmatprep.subr.mxu0 %v114
  %171 = vmatpush1.msra.mxu0 %v113
  %172 = vmatprep.subr.mxu0 %v117
  %173 = vmatpush1.msra.mxu0 %v116
  %174 = vmatprep.subr.mxu0 %v120
  %175 = vmatpush1.msra.mxu0 %v119
  %176 = vmatprep.subr.mxu0 0.0
  %177 = vmatpush1.msra.mxu0 0.0
  %178 = vmatprep.subr.mxu0 0.0
  %179 = vmatpush1.msra.mxu0 0.0
  %180 = vmatprep.subr.mxu0 0.0
  %181 = vmatpush1.msra.mxu0 0.0
  %182 = vmatprep.subr.mxu0 0.0
  %183 = vmatpush1.msra.mxu0 0.0
  %184 = vmatprep.subr.mxu0 0.0
  %185 = vmatpush1.msra.mxu0 0.0
  %186 = vmatprep.subr.mxu0 0.0
  %187 = vmatpush1.msra.mxu0 0.0
  %188 = vmatprep.subr.mxu0 0.0
  %189 = vmatpush1.msra.mxu0 0.0
  %190 = vmatprep.subr.mxu0 0.0
  %191 = vmatpush1.msra.mxu0 0.0
  %192 = vmatprep.subr.mxu0 0.0
  %193 = vmatpush1.msra.mxu0 0.0
  %194 = vmatprep.subr.mxu0 0.0
  %195 = vmatpush1.msra.mxu0 0.0
  %196 = vmatprep.subr.mxu0 0.0
  %197 = vmatpush1.msra.mxu0 0.0
  %198 = vmatprep.subr.mxu0 0.0
  %199 = vmatpush1.msra.mxu0 0.0
  %200 = vmatprep.subr.mxu0 0.0
  %201 = vmatpush1.msra.mxu0 0.0
  %202 = vmatprep.subr.mxu0 0.0
  %203 = vmatpush1.msra.mxu0 0.0
  %204 = vmatprep.subr.mxu0 0.0
  %205 = vmatpush1.msra.mxu0 0.0
  %206 = vmatprep.subr.mxu0 0.0
  %207 = vmatpush1.msra.mxu0 0.0
  %208 = vmatprep.subr.mxu0 0.0
  %209 = vmatpush1.msra.mxu0 0.0
  %210 = vmatprep.mubr.f32.mxu0 0.0
  %211 = vmatmul.mubr.f32.gmra.mrb[0].mxu0 %v141
  %v212 = vpop.f32.mrb[0].mxu0
  %v213 = vadd.f32 %v127, %v212
  %v214 = vpop.f32.mrb[0].mxu0
  %v215 = vadd.f32 %v131, %v214
  %216 = vmatprep.mubr.f32.mxu0 0.0
  %217 = vmatmul.mubr.f32.gmra.mrb[0].mxu0 %v144
  %v218 = vpop.f32.mrb[0].mxu0
  %v219 = vadd.f32 %v127, %v218
  %v220 = vpop.f32.mrb[0].mxu0
  %v221 = vadd.f32 %v131, %v220
  %222 = vdwg.mxu0
  %223 = vmatprep.subr.mxu0 0.0
  %224 = vmatpush1.msra.mxu0 %v79
  %225 = vmatprep.subr.mxu0 0.0
  %226 = vmatpush1.msra.mxu0 %v82
  %227 = vmatprep.subr.mxu0 0.0
  %228 = vmatpush1.msra.mxu0 %v85
  %229 = vmatprep.subr.mxu0 0.0
  %230 = vmatpush1.msra.mxu0 %v88
  %231 = vmatprep.subr.mxu0 0.0
  %232 = vmatpush1.msra.mxu0 %v91
  %233 = vmatprep.subr.mxu0 0.0
  %234 = vmatpush1.msra.mxu0 %v94
  %235 = vmatprep.subr.mxu0 0.0
  %236 = vmatpush1.msra.mxu0 %v97
  %237 = vmatprep.subr.mxu0 0.0
  %238 = vmatpush1.msra.mxu0 %v100
  %239 = vmatprep.subr.mxu0 0.0
  %240 = vmatpush1.msra.mxu0 %v103
  %241 = vmatprep.subr.mxu0 0.0
  %242 = vmatpush1.msra.mxu0 %v106
  %243 = vmatprep.subr.mxu0 0.0
  %244 = vmatpush1.msra.mxu0 %v109
  %245 = vmatprep.subr.mxu0 0.0
  %246 = vmatpush1.msra.mxu0 %v112
  %247 = vmatprep.subr.mxu0 0.0
  %248 = vmatpush1.msra.mxu0 %v115
  %249 = vmatprep.subr.mxu0 0.0
  %250 = vmatpush1.msra.mxu0 %v118
  %251 = vmatprep.subr.mxu0 0.0
  %252 = vmatpush1.msra.mxu0 %v121
  %253 = vmatprep.subr.mxu0 0.0
  %254 = vmatpush1.msra.mxu0 0.0
  %255 = vmatprep.subr.mxu0 0.0
  %256 = vmatpush1.msra.mxu0 0.0
  %257 = vmatprep.subr.mxu0 0.0
  %258 = vmatpush1.msra.mxu0 0.0
  %259 = vmatprep.subr.mxu0 0.0
  %260 = vmatpush1.msra.mxu0 0.0
  %261 = vmatprep.subr.mxu0 0.0
  %262 = vmatpush1.msra.mxu0 0.0
  %263 = vmatprep.subr.mxu0 0.0
  %264 = vmatpush1.msra.mxu0 0.0
  %265 = vmatprep.subr.mxu0 0.0
  %266 = vmatpush1.msra.mxu0 0.0
  %267 = vmatprep.subr.mxu0 0.0
  %268 = vmatpush1.msra.mxu0 0.0
  %269 = vmatprep.subr.mxu0 0.0
  %270 = vmatpush1.msra.mxu0 0.0
  %271 = vmatprep.subr.mxu0 0.0
  %272 = vmatpush1.msra.mxu0 0.0
  %273 = vmatprep.subr.mxu0 0.0
  %274 = vmatpush1.msra.mxu0 0.0
  %275 = vmatprep.subr.mxu0 0.0
  %276 = vmatpush1.msra.mxu0 0.0
  %277 = vmatprep.subr.mxu0 0.0
  %278 = vmatpush1.msra.mxu0 0.0
  %279 = vmatprep.subr.mxu0 0.0
  %280 = vmatpush1.msra.mxu0 0.0
  %281 = vmatprep.subr.mxu0 0.0
  %282 = vmatpush1.msra.mxu0 0.0
  %283 = vmatprep.subr.mxu0 0.0
  %284 = vmatpush1.msra.mxu0 0.0
  %285 = vmatprep.subr.mxu0 0.0
  %286 = vmatpush1.msra.mxu0 0.0
  %287 = vmatprep.mubr.f32.mxu0 0.0
  %288 = vmatmul.mubr.f32.gmra.mrb[0].mxu0 %v141
  %v289 = vpop.f32.mrb[0].mxu0
  %v290 = vadd.f32 %v135, %v289
  %v291 = vpop.f32.mrb[0].mxu0
  %292 = vmatprep.mubr.f32.mxu0 0.0
  %293 = vmatmul.mubr.f32.gmra.mrb[0].mxu0 %v144
  %v294 = vpop.f32.mrb[0].mxu0
  %v295 = vadd.f32 %v135, %v294
  %v296 = vpop.f32.mrb[0].mxu0
  %297 = vdwg.mxu0
  %v298 = vadd.f32 %v213, %v219
  %v299 = vrot.slane %v298, 4
  %v300 = vadd.f32 %v298, %v299
  %v301 = vrot.slane %v300, 2
  %v302 = vadd.f32 %v300, %v301
  %v303 = vrot.slane %v302, 1
  %v304 = vadd.f32 %v302, %v303
  %v305 = vadd.f32 %v215, %v221
  %v306 = vrot.slane %v305, 4
  %v307 = vadd.f32 %v305, %v306
  %v308 = vrot.slane %v307, 2
  %v309 = vadd.f32 %v307, %v308
  %v310 = vrot.slane %v309, 1
  %v311 = vadd.f32 %v309, %v310
  %vm312 = vcmask 523264
  %v313 = vsel %vm312, %v290, 0.0
  %v314 = vsel %vm312, %v295, 0.0
  %v315 = vadd.f32 %v313, %v314
  %v316 = vrot.slane %v315, 4
  %v317 = vadd.f32 %v315, %v316
  %v318 = vrot.slane %v317, 2
  %v319 = vadd.f32 %v317, %v318
  %v320 = vrot.slane %v319, 1
  %v321 = vadd.f32 %v319, %v320
  %v322 = vmul.f32 %v213, %v213
  %v323 = vmul.f32 %v215, %v215
  %v324 = vmul.f32 %v290, %v290
  %v325 = vmul.f32 %v219, %v219
  %v326 = vmul.f32 %v221, %v221
  %v327 = vmul.f32 %v295, %v295
  %v328 = vadd.f32 %v322, %v325
  %v329 = vrot.slane %v328, 4
  %v330 = vadd.f32 %v328, %v329
  %v331 = vrot.slane %v330, 2
  %v332 = vadd.f32 %v330, %v331
  %v333 = vrot.slane %v332, 1
  %v334 = vadd.f32 %v332, %v333
  %v335 = vadd.f32 %v323, %v326
  %v336 = vrot.slane %v335, 4
  %v337 = vadd.f32 %v335, %v336
  %v338 = vrot.slane %v337, 2
  %v339 = vadd.f32 %v337, %v338
  %v340 = vrot.slane %v339, 1
  %v341 = vadd.f32 %v339, %v340
  %v342 = vsel %vm312, %v324, 0.0
  %v343 = vsel %vm312, %v327, 0.0
  %v344 = vadd.f32 %v342, %v343
  %v345 = vrot.slane %v344, 4
  %v346 = vadd.f32 %v344, %v345
  %v347 = vrot.slane %v346, 2
  %v348 = vadd.f32 %v346, %v347
  %v349 = vrot.slane %v348, 1
  %v350 = vadd.f32 %v348, %v349
  %v352 = vsel %vm312, %v321, 0
  %354 = vmatprep.subr.mxu0 0.0
  %355 = vmatpush1.msra.mxu0 %v29
  %356 = vmatprep.subr.mxu0 0.0
  %357 = vmatpush1.msra.mxu0 %v30
  %358 = vmatprep.subr.mxu0 0.0
  %359 = vmatpush1.msra.mxu0 %v31
  %360 = vmatprep.subr.mxu0 0.0
  %361 = vmatpush1.msra.mxu0 %v32
  %362 = vmatprep.subr.mxu0 0.0
  %363 = vmatpush1.msra.mxu0 %v33
  %364 = vmatprep.subr.mxu0 0.0
  %365 = vmatpush1.msra.mxu0 %v34
  %366 = vmatprep.subr.mxu0 0.0
  %367 = vmatpush1.msra.mxu0 %v35
  %368 = vmatprep.subr.mxu0 0.0
  %369 = vmatpush1.msra.mxu0 %v36
  %370 = vmatprep.subr.mxu0 0.0
  %371 = vmatpush1.msra.mxu0 %v37
  %372 = vmatprep.subr.mxu0 0.0
  %373 = vmatpush1.msra.mxu0 %v38
  %374 = vmatprep.subr.mxu0 0.0
  %375 = vmatpush1.msra.mxu0 %v39
  %376 = vmatprep.subr.mxu0 0.0
  %377 = vmatpush1.msra.mxu0 %v40
  %378 = vmatprep.subr.mxu0 0.0
  %379 = vmatpush1.msra.mxu0 %v41
  %380 = vmatprep.subr.mxu0 0.0
  %381 = vmatpush1.msra.mxu0 %v42
  %382 = vmatprep.subr.mxu0 0.0
  %383 = vmatpush1.msra.mxu0 %v43
  %384 = vmatprep.subr.mxu0 0.0
  %385 = vmatpush1.msra.mxu0 %v44
  %386 = vmatprep.subr.mxu0 0.0
  %387 = vmatpush1.msra.mxu0 %v45
  %388 = vmatprep.subr.mxu0 0.0
  %389 = vmatpush1.msra.mxu0 %v46
  %390 = vmatprep.subr.mxu0 0.0
  %391 = vmatpush1.msra.mxu0 %v47
  %392 = vmatprep.subr.mxu0 0.0
  %393 = vmatpush1.msra.mxu0 %v48
  %394 = vmatprep.subr.mxu0 0.0
  %395 = vmatpush1.msra.mxu0 %v49
  %396 = vmatprep.subr.mxu0 0.0
  %397 = vmatpush1.msra.mxu0 %v50
  %398 = vmatprep.subr.mxu0 0.0
  %399 = vmatpush1.msra.mxu0 %v51
  %400 = vmatprep.subr.mxu0 0.0
  %401 = vmatpush1.msra.mxu0 %v52
  %402 = vmatprep.subr.mxu0 0.0
  %403 = vmatpush1.msra.mxu0 %v53
  %404 = vmatprep.subr.mxu0 0.0
  %405 = vmatpush1.msra.mxu0 %v54
  %406 = vmatprep.subr.mxu0 0.0
  %407 = vmatpush1.msra.mxu0 %v55
  %408 = vmatprep.subr.mxu0 0.0
  %409 = vmatpush1.msra.mxu0 %v56
  %410 = vmatprep.subr.mxu0 0.0
  %411 = vmatpush1.msra.mxu0 %v57
  %412 = vmatprep.subr.mxu0 0.0
  %413 = vmatpush1.msra.mxu0 %v58
  %414 = vmatprep.subr.mxu0 0.0
  %415 = vmatpush1.msra.mxu0 %v59
  %416 = vmatprep.subr.mxu0 0.0
  %417 = vmatpush1.msra.mxu0 %v60
  %418 = vmatprep.mubr.f32.mxu0 %v311
  %419 = vmatmul.mubr.f32.gmra.mrb[0].mxu0 %v304
  %v420 = vpop.f32.mrb[0].mxu0
  %v421 = vadd.f32 0.0, %v420
  %v422 = vpop.f32.mrb[0].mxu0
  %423 = vdwg.mxu0
  %424 = vmatprep.subr.mxu0 0.0
  %425 = vmatpush1.msra.mxu0 %v61
  %426 = vmatprep.subr.mxu0 0.0
  %427 = vmatpush1.msra.mxu0 %v62
  %428 = vmatprep.subr.mxu0 0.0
  %429 = vmatpush1.msra.mxu0 %v63
  %430 = vmatprep.subr.mxu0 0.0
  %431 = vmatpush1.msra.mxu0 %v64
  %432 = vmatprep.subr.mxu0 0.0
  %433 = vmatpush1.msra.mxu0 %v65
  %434 = vmatprep.subr.mxu0 0.0
  %435 = vmatpush1.msra.mxu0 %v66
  %436 = vmatprep.subr.mxu0 0.0
  %437 = vmatpush1.msra.mxu0 %v67
  %438 = vmatprep.subr.mxu0 0.0
  %439 = vmatpush1.msra.mxu0 %v68
  %440 = vmatprep.subr.mxu0 0.0
  %441 = vmatpush1.msra.mxu0 0.0
  %442 = vmatprep.subr.mxu0 0.0
  %443 = vmatpush1.msra.mxu0 0.0
  %444 = vmatprep.subr.mxu0 0.0
  %445 = vmatpush1.msra.mxu0 0.0
  %446 = vmatprep.subr.mxu0 0.0
  %447 = vmatpush1.msra.mxu0 0.0
  %448 = vmatprep.subr.mxu0 0.0
  %449 = vmatpush1.msra.mxu0 0.0
  %450 = vmatprep.subr.mxu0 0.0
  %451 = vmatpush1.msra.mxu0 0.0
  %452 = vmatprep.subr.mxu0 0.0
  %453 = vmatpush1.msra.mxu0 0.0
  %454 = vmatprep.subr.mxu0 0.0
  %455 = vmatpush1.msra.mxu0 0.0
  %456 = vmatprep.subr.mxu0 0.0
  %457 = vmatpush1.msra.mxu0 0.0
  %458 = vmatprep.subr.mxu0 0.0
  %459 = vmatpush1.msra.mxu0 0.0
  %460 = vmatprep.subr.mxu0 0.0
  %461 = vmatpush1.msra.mxu0 0.0
  %462 = vmatprep.subr.mxu0 0.0
  %463 = vmatpush1.msra.mxu0 0.0
  %464 = vmatprep.subr.mxu0 0.0
  %465 = vmatpush1.msra.mxu0 0.0
  %466 = vmatprep.subr.mxu0 0.0
  %467 = vmatpush1.msra.mxu0 0.0
  %468 = vmatprep.subr.mxu0 0.0
  %469 = vmatpush1.msra.mxu0 0.0
  %470 = vmatprep.subr.mxu0 0.0
  %471 = vmatpush1.msra.mxu0 0.0
  %472 = vmatprep.subr.mxu0 0.0
  %473 = vmatpush1.msra.mxu0 0.0
  %474 = vmatprep.subr.mxu0 0.0
  %475 = vmatpush1.msra.mxu0 0.0
  %476 = vmatprep.subr.mxu0 0.0
  %477 = vmatpush1.msra.mxu0 0.0
  %478 = vmatprep.subr.mxu0 0.0
  %479 = vmatpush1.msra.mxu0 0.0
  %480 = vmatprep.subr.mxu0 0.0
  %481 = vmatpush1.msra.mxu0 0.0
  %482 = vmatprep.subr.mxu0 0.0
  %483 = vmatpush1.msra.mxu0 0.0
  %484 = vmatprep.subr.mxu0 0.0
  %485 = vmatpush1.msra.mxu0 0.0
  %486 = vmatprep.subr.mxu0 0.0
  %487 = vmatpush1.msra.mxu0 0.0
  %488 = vmatprep.mubr.f32.mxu0 0.0
  %489 = vmatmul.mubr.f32.gmra.mrb[0].mxu0 %v352
  %v490 = vpop.f32.mrb[0].mxu0
  %v491 = vadd.f32 %v421, %v490
  %v492 = vpop.f32.mrb[0].mxu0
  %493 = vdwg.mxu0
  %v495 = vsel %vm312, %v350, 0
  %497 = vmatprep.subr.mxu0 0.0
  %498 = vmatpush1.msra.mxu0 %v29
  %499 = vmatprep.subr.mxu0 0.0
  %500 = vmatpush1.msra.mxu0 %v30
  %501 = vmatprep.subr.mxu0 0.0
  %502 = vmatpush1.msra.mxu0 %v31
  %503 = vmatprep.subr.mxu0 0.0
  %504 = vmatpush1.msra.mxu0 %v32
  %505 = vmatprep.subr.mxu0 0.0
  %506 = vmatpush1.msra.mxu0 %v33
  %507 = vmatprep.subr.mxu0 0.0
  %508 = vmatpush1.msra.mxu0 %v34
  %509 = vmatprep.subr.mxu0 0.0
  %510 = vmatpush1.msra.mxu0 %v35
  %511 = vmatprep.subr.mxu0 0.0
  %512 = vmatpush1.msra.mxu0 %v36
  %513 = vmatprep.subr.mxu0 0.0
  %514 = vmatpush1.msra.mxu0 %v37
  %515 = vmatprep.subr.mxu0 0.0
  %516 = vmatpush1.msra.mxu0 %v38
  %517 = vmatprep.subr.mxu0 0.0
  %518 = vmatpush1.msra.mxu0 %v39
  %519 = vmatprep.subr.mxu0 0.0
  %520 = vmatpush1.msra.mxu0 %v40
  %521 = vmatprep.subr.mxu0 0.0
  %522 = vmatpush1.msra.mxu0 %v41
  %523 = vmatprep.subr.mxu0 0.0
  %524 = vmatpush1.msra.mxu0 %v42
  %525 = vmatprep.subr.mxu0 0.0
  %526 = vmatpush1.msra.mxu0 %v43
  %527 = vmatprep.subr.mxu0 0.0
  %528 = vmatpush1.msra.mxu0 %v44
  %529 = vmatprep.subr.mxu0 0.0
  %530 = vmatpush1.msra.mxu0 %v45
  %531 = vmatprep.subr.mxu0 0.0
  %532 = vmatpush1.msra.mxu0 %v46
  %533 = vmatprep.subr.mxu0 0.0
  %534 = vmatpush1.msra.mxu0 %v47
  %535 = vmatprep.subr.mxu0 0.0
  %536 = vmatpush1.msra.mxu0 %v48
  %537 = vmatprep.subr.mxu0 0.0
  %538 = vmatpush1.msra.mxu0 %v49
  %539 = vmatprep.subr.mxu0 0.0
  %540 = vmatpush1.msra.mxu0 %v50
  %541 = vmatprep.subr.mxu0 0.0
  %542 = vmatpush1.msra.mxu0 %v51
  %543 = vmatprep.subr.mxu0 0.0
  %544 = vmatpush1.msra.mxu0 %v52
  %545 = vmatprep.subr.mxu0 0.0
  %546 = vmatpush1.msra.mxu0 %v53
  %547 = vmatprep.subr.mxu0 0.0
  %548 = vmatpush1.msra.mxu0 %v54
  %549 = vmatprep.subr.mxu0 0.0
  %550 = vmatpush1.msra.mxu0 %v55
  %551 = vmatprep.subr.mxu0 0.0
  %552 = vmatpush1.msra.mxu0 %v56
  %553 = vmatprep.subr.mxu0 0.0
  %554 = vmatpush1.msra.mxu0 %v57
  %555 = vmatprep.subr.mxu0 0.0
  %556 = vmatpush1.msra.mxu0 %v58
  %557 = vmatprep.subr.mxu0 0.0
  %558 = vmatpush1.msra.mxu0 %v59
  %559 = vmatprep.subr.mxu0 0.0
  %560 = vmatpush1.msra.mxu0 %v60
  %561 = vmatprep.mubr.f32.mxu0 %v341
  %562 = vmatmul.mubr.f32.gmra.mrb[0].mxu0 %v334
  %v563 = vpop.f32.mrb[0].mxu0
  %v564 = vadd.f32 0.0, %v563
  %v565 = vpop.f32.mrb[0].mxu0
  %566 = vdwg.mxu0
  %567 = vmatprep.subr.mxu0 0.0
  %568 = vmatpush1.msra.mxu0 %v61
  %569 = vmatprep.subr.mxu0 0.0
  %570 = vmatpush1.msra.mxu0 %v62
  %571 = vmatprep.subr.mxu0 0.0
  %572 = vmatpush1.msra.mxu0 %v63
  %573 = vmatprep.subr.mxu0 0.0
  %574 = vmatpush1.msra.mxu0 %v64
  %575 = vmatprep.subr.mxu0 0.0
  %576 = vmatpush1.msra.mxu0 %v65
  %577 = vmatprep.subr.mxu0 0.0
  %578 = vmatpush1.msra.mxu0 %v66
  %579 = vmatprep.subr.mxu0 0.0
  %580 = vmatpush1.msra.mxu0 %v67
  %581 = vmatprep.subr.mxu0 0.0
  %582 = vmatpush1.msra.mxu0 %v68
  %583 = vmatprep.subr.mxu0 0.0
  %584 = vmatpush1.msra.mxu0 0.0
  %585 = vmatprep.subr.mxu0 0.0
  %586 = vmatpush1.msra.mxu0 0.0
  %587 = vmatprep.subr.mxu0 0.0
  %588 = vmatpush1.msra.mxu0 0.0
  %589 = vmatprep.subr.mxu0 0.0
  %590 = vmatpush1.msra.mxu0 0.0
  %591 = vmatprep.subr.mxu0 0.0
  %592 = vmatpush1.msra.mxu0 0.0
  %593 = vmatprep.subr.mxu0 0.0
  %594 = vmatpush1.msra.mxu0 0.0
  %595 = vmatprep.subr.mxu0 0.0
  %596 = vmatpush1.msra.mxu0 0.0
  %597 = vmatprep.subr.mxu0 0.0
  %598 = vmatpush1.msra.mxu0 0.0
  %599 = vmatprep.subr.mxu0 0.0
  %600 = vmatpush1.msra.mxu0 0.0
  %601 = vmatprep.subr.mxu0 0.0
  %602 = vmatpush1.msra.mxu0 0.0
  %603 = vmatprep.subr.mxu0 0.0
  %604 = vmatpush1.msra.mxu0 0.0
  %605 = vmatprep.subr.mxu0 0.0
  %606 = vmatpush1.msra.mxu0 0.0
  %607 = vmatprep.subr.mxu0 0.0
  %608 = vmatpush1.msra.mxu0 0.0
  %609 = vmatprep.subr.mxu0 0.0
  %610 = vmatpush1.msra.mxu0 0.0
  %611 = vmatprep.subr.mxu0 0.0
  %612 = vmatpush1.msra.mxu0 0.0
  %613 = vmatprep.subr.mxu0 0.0
  %614 = vmatpush1.msra.mxu0 0.0
  %615 = vmatprep.subr.mxu0 0.0
  %616 = vmatpush1.msra.mxu0 0.0
  %617 = vmatprep.subr.mxu0 0.0
  %618 = vmatpush1.msra.mxu0 0.0
  %619 = vmatprep.subr.mxu0 0.0
  %620 = vmatpush1.msra.mxu0 0.0
  %621 = vmatprep.subr.mxu0 0.0
  %622 = vmatpush1.msra.mxu0 0.0
  %623 = vmatprep.subr.mxu0 0.0
  %624 = vmatpush1.msra.mxu0 0.0
  %625 = vmatprep.subr.mxu0 0.0
  %626 = vmatpush1.msra.mxu0 0.0
  %627 = vmatprep.subr.mxu0 0.0
  %628 = vmatpush1.msra.mxu0 0.0
  %629 = vmatprep.subr.mxu0 0.0
  %630 = vmatpush1.msra.mxu0 0.0
  %631 = vmatprep.mubr.f32.mxu0 0.0
  %632 = vmatmul.mubr.f32.gmra.mrb[0].mxu0 %v495
  %v633 = vpop.f32.mrb[0].mxu0
  %v634 = vadd.f32 %v564, %v633
  %v635 = vpop.f32.mrb[0].mxu0
  %636 = vdwg.mxu0
  %v637 = vmul.f32 %v491, 0.003125
  %v638 = vmul.f32 %v634, 0.003125
  %v639 = vmul.f32 %v637, %v637
  %v640 = vsub.f32 %v638, %v639
  %v641 = vmax.f32 %v640, 0.0
  %v642 = vld [vmem:[%s4] sm:$0x1]
  %v643 = vadd.f32 %v641, 1e-05
  %v644 = vrsqrt.pop %v643
  %v645 = vmul.f32 %v642, %v644
  %v646 = vld [vmem:[%s5] sm:$0x1]
  %v647 = vmul.f32 %v637, %v645
  %v648 = vsub.f32 %v646, %v647
  %vm649 = vcmask 130048
  %v651 = vsel %vm649, %v645, 0
  %653 = vmatprep.subr.mxu0 %v70
  %654 = vmatpush1.msra.mxu0 %v69
  %655 = vmatprep.subr.mxu0 %v73
  %656 = vmatpush1.msra.mxu0 %v72
  %657 = vmatprep.subr.mxu0 0.0
  %658 = vmatpush1.msra.mxu0 0.0
  %659 = vmatprep.subr.mxu0 0.0
  %660 = vmatpush1.msra.mxu0 0.0
  %661 = vmatprep.subr.mxu0 0.0
  %662 = vmatpush1.msra.mxu0 0.0
  %663 = vmatprep.subr.mxu0 0.0
  %664 = vmatpush1.msra.mxu0 0.0
  %665 = vmatprep.subr.mxu0 0.0
  %666 = vmatpush1.msra.mxu0 0.0
  %667 = vmatprep.subr.mxu0 0.0
  %668 = vmatpush1.msra.mxu0 0.0
  %669 = vmatprep.subr.mxu0 0.0
  %670 = vmatpush1.msra.mxu0 0.0
  %671 = vmatprep.subr.mxu0 0.0
  %672 = vmatpush1.msra.mxu0 0.0
  %673 = vmatprep.subr.mxu0 0.0
  %674 = vmatpush1.msra.mxu0 0.0
  %675 = vmatprep.subr.mxu0 0.0
  %676 = vmatpush1.msra.mxu0 0.0
  %677 = vmatprep.subr.mxu0 0.0
  %678 = vmatpush1.msra.mxu0 0.0
  %679 = vmatprep.subr.mxu0 0.0
  %680 = vmatpush1.msra.mxu0 0.0
  %681 = vmatprep.subr.mxu0 0.0
  %682 = vmatpush1.msra.mxu0 0.0
  %683 = vmatprep.subr.mxu0 0.0
  %684 = vmatpush1.msra.mxu0 0.0
  %685 = vmatprep.subr.mxu0 0.0
  %686 = vmatpush1.msra.mxu0 0.0
  %687 = vmatprep.subr.mxu0 0.0
  %688 = vmatpush1.msra.mxu0 0.0
  %689 = vmatprep.subr.mxu0 0.0
  %690 = vmatpush1.msra.mxu0 0.0
  %691 = vmatprep.subr.mxu0 0.0
  %692 = vmatpush1.msra.mxu0 0.0
  %693 = vmatprep.subr.mxu0 0.0
  %694 = vmatpush1.msra.mxu0 0.0
  %695 = vmatprep.subr.mxu0 0.0
  %696 = vmatpush1.msra.mxu0 0.0
  %697 = vmatprep.subr.mxu0 0.0
  %698 = vmatpush1.msra.mxu0 0.0
  %699 = vmatprep.subr.mxu0 0.0
  %700 = vmatpush1.msra.mxu0 0.0
  %701 = vmatprep.subr.mxu0 0.0
  %702 = vmatpush1.msra.mxu0 0.0
  %703 = vmatprep.subr.mxu0 0.0
  %704 = vmatpush1.msra.mxu0 0.0
  %705 = vmatprep.subr.mxu0 0.0
  %706 = vmatpush1.msra.mxu0 0.0
  %707 = vmatprep.subr.mxu0 0.0
  %708 = vmatpush1.msra.mxu0 0.0
  %709 = vmatprep.subr.mxu0 0.0
  %710 = vmatpush1.msra.mxu0 0.0
  %711 = vmatprep.subr.mxu0 0.0
  %712 = vmatpush1.msra.mxu0 0.0
  %713 = vmatprep.subr.mxu0 0.0
  %714 = vmatpush1.msra.mxu0 0.0
  %715 = vmatprep.subr.mxu0 0.0
  %716 = vmatpush1.msra.mxu0 0.0
  %717 = vmatprep.mubr.f32.mxu0 0.0
  %718 = vmatmul.mubr.f32.gmra.mrb[0].mxu0 %v651
  %v719 = vpop.f32.mrb[0].mxu0
  %v720 = vadd.f32 0.0, %v719
  %v721 = vpop.f32.mrb[0].mxu0
  %v722 = vadd.f32 0.0, %v721
  %723 = vdwg.mxu0
  %724 = vmatprep.subr.mxu0 0.0
  %725 = vmatpush1.msra.mxu0 %v71
  %726 = vmatprep.subr.mxu0 0.0
  %727 = vmatpush1.msra.mxu0 %v74
  %728 = vmatprep.subr.mxu0 0.0
  %729 = vmatpush1.msra.mxu0 0.0
  %730 = vmatprep.subr.mxu0 0.0
  %731 = vmatpush1.msra.mxu0 0.0
  %732 = vmatprep.subr.mxu0 0.0
  %733 = vmatpush1.msra.mxu0 0.0
  %734 = vmatprep.subr.mxu0 0.0
  %735 = vmatpush1.msra.mxu0 0.0
  %736 = vmatprep.subr.mxu0 0.0
  %737 = vmatpush1.msra.mxu0 0.0
  %738 = vmatprep.subr.mxu0 0.0
  %739 = vmatpush1.msra.mxu0 0.0
  %740 = vmatprep.subr.mxu0 0.0
  %741 = vmatpush1.msra.mxu0 0.0
  %742 = vmatprep.subr.mxu0 0.0
  %743 = vmatpush1.msra.mxu0 0.0
  %744 = vmatprep.subr.mxu0 0.0
  %745 = vmatpush1.msra.mxu0 0.0
  %746 = vmatprep.subr.mxu0 0.0
  %747 = vmatpush1.msra.mxu0 0.0
  %748 = vmatprep.subr.mxu0 0.0
  %749 = vmatpush1.msra.mxu0 0.0
  %750 = vmatprep.subr.mxu0 0.0
  %751 = vmatpush1.msra.mxu0 0.0
  %752 = vmatprep.subr.mxu0 0.0
  %753 = vmatpush1.msra.mxu0 0.0
  %754 = vmatprep.subr.mxu0 0.0
  %755 = vmatpush1.msra.mxu0 0.0
  %756 = vmatprep.subr.mxu0 0.0
  %757 = vmatpush1.msra.mxu0 0.0
  %758 = vmatprep.subr.mxu0 0.0
  %759 = vmatpush1.msra.mxu0 0.0
  %760 = vmatprep.subr.mxu0 0.0
  %761 = vmatpush1.msra.mxu0 0.0
  %762 = vmatprep.subr.mxu0 0.0
  %763 = vmatpush1.msra.mxu0 0.0
  %764 = vmatprep.subr.mxu0 0.0
  %765 = vmatpush1.msra.mxu0 0.0
  %766 = vmatprep.subr.mxu0 0.0
  %767 = vmatpush1.msra.mxu0 0.0
  %768 = vmatprep.subr.mxu0 0.0
  %769 = vmatpush1.msra.mxu0 0.0
  %770 = vmatprep.subr.mxu0 0.0
  %771 = vmatpush1.msra.mxu0 0.0
  %772 = vmatprep.subr.mxu0 0.0
  %773 = vmatpush1.msra.mxu0 0.0
  %774 = vmatprep.subr.mxu0 0.0
  %775 = vmatpush1.msra.mxu0 0.0
  %776 = vmatprep.subr.mxu0 0.0
  %777 = vmatpush1.msra.mxu0 0.0
  %778 = vmatprep.subr.mxu0 0.0
  %779 = vmatpush1.msra.mxu0 0.0
  %780 = vmatprep.subr.mxu0 0.0
  %781 = vmatpush1.msra.mxu0 0.0
  %782 = vmatprep.subr.mxu0 0.0
  %783 = vmatpush1.msra.mxu0 0.0
  %784 = vmatprep.subr.mxu0 0.0
  %785 = vmatpush1.msra.mxu0 0.0
  %786 = vmatprep.subr.mxu0 0.0
  %787 = vmatpush1.msra.mxu0 0.0
  %788 = vmatprep.mubr.f32.mxu0 0.0
  %789 = vmatmul.mubr.f32.gmra.mrb[0].mxu0 %v651
  %v790 = vpop.f32.mrb[0].mxu0
  %v791 = vadd.f32 0.0, %v790
  %v792 = vpop.f32.mrb[0].mxu0
  %793 = vdwg.mxu0
  %v795 = vsel %vm649, %v648, 0
  %797 = vmatprep.subr.mxu0 %v70
  %798 = vmatpush1.msra.mxu0 %v69
  %799 = vmatprep.subr.mxu0 %v73
  %800 = vmatpush1.msra.mxu0 %v72
  %801 = vmatprep.subr.mxu0 0.0
  %802 = vmatpush1.msra.mxu0 0.0
  %803 = vmatprep.subr.mxu0 0.0
  %804 = vmatpush1.msra.mxu0 0.0
  %805 = vmatprep.subr.mxu0 0.0
  %806 = vmatpush1.msra.mxu0 0.0
  %807 = vmatprep.subr.mxu0 0.0
  %808 = vmatpush1.msra.mxu0 0.0
  %809 = vmatprep.subr.mxu0 0.0
  %810 = vmatpush1.msra.mxu0 0.0
  %811 = vmatprep.subr.mxu0 0.0
  %812 = vmatpush1.msra.mxu0 0.0
  %813 = vmatprep.subr.mxu0 0.0
  %814 = vmatpush1.msra.mxu0 0.0
  %815 = vmatprep.subr.mxu0 0.0
  %816 = vmatpush1.msra.mxu0 0.0
  %817 = vmatprep.subr.mxu0 0.0
  %818 = vmatpush1.msra.mxu0 0.0
  %819 = vmatprep.subr.mxu0 0.0
  %820 = vmatpush1.msra.mxu0 0.0
  %821 = vmatprep.subr.mxu0 0.0
  %822 = vmatpush1.msra.mxu0 0.0
  %823 = vmatprep.subr.mxu0 0.0
  %824 = vmatpush1.msra.mxu0 0.0
  %825 = vmatprep.subr.mxu0 0.0
  %826 = vmatpush1.msra.mxu0 0.0
  %827 = vmatprep.subr.mxu0 0.0
  %828 = vmatpush1.msra.mxu0 0.0
  %829 = vmatprep.subr.mxu0 0.0
  %830 = vmatpush1.msra.mxu0 0.0
  %831 = vmatprep.subr.mxu0 0.0
  %832 = vmatpush1.msra.mxu0 0.0
  %833 = vmatprep.subr.mxu0 0.0
  %834 = vmatpush1.msra.mxu0 0.0
  %835 = vmatprep.subr.mxu0 0.0
  %836 = vmatpush1.msra.mxu0 0.0
  %837 = vmatprep.subr.mxu0 0.0
  %838 = vmatpush1.msra.mxu0 0.0
  %839 = vmatprep.subr.mxu0 0.0
  %840 = vmatpush1.msra.mxu0 0.0
  %841 = vmatprep.subr.mxu0 0.0
  %842 = vmatpush1.msra.mxu0 0.0
  %843 = vmatprep.subr.mxu0 0.0
  %844 = vmatpush1.msra.mxu0 0.0
  %845 = vmatprep.subr.mxu0 0.0
  %846 = vmatpush1.msra.mxu0 0.0
  %847 = vmatprep.subr.mxu0 0.0
  %848 = vmatpush1.msra.mxu0 0.0
  %849 = vmatprep.subr.mxu0 0.0
  %850 = vmatpush1.msra.mxu0 0.0
  %851 = vmatprep.subr.mxu0 0.0
  %852 = vmatpush1.msra.mxu0 0.0
  %853 = vmatprep.subr.mxu0 0.0
  %854 = vmatpush1.msra.mxu0 0.0
  %855 = vmatprep.subr.mxu0 0.0
  %856 = vmatpush1.msra.mxu0 0.0
  %857 = vmatprep.subr.mxu0 0.0
  %858 = vmatpush1.msra.mxu0 0.0
  %859 = vmatprep.subr.mxu0 0.0
  %860 = vmatpush1.msra.mxu0 0.0
  %861 = vmatprep.mubr.f32.mxu0 0.0
  %862 = vmatmul.mubr.f32.gmra.mrb[0].mxu0 %v795
  %v863 = vpop.f32.mrb[0].mxu0
  %v864 = vadd.f32 0.0, %v863
  %v865 = vpop.f32.mrb[0].mxu0
  %v866 = vadd.f32 0.0, %v865
  %867 = vdwg.mxu0
  %868 = vmatprep.subr.mxu0 0.0
  %869 = vmatpush1.msra.mxu0 %v71
  %870 = vmatprep.subr.mxu0 0.0
  %871 = vmatpush1.msra.mxu0 %v74
  %872 = vmatprep.subr.mxu0 0.0
  %873 = vmatpush1.msra.mxu0 0.0
  %874 = vmatprep.subr.mxu0 0.0
  %875 = vmatpush1.msra.mxu0 0.0
  %876 = vmatprep.subr.mxu0 0.0
  %877 = vmatpush1.msra.mxu0 0.0
  %878 = vmatprep.subr.mxu0 0.0
  %879 = vmatpush1.msra.mxu0 0.0
  %880 = vmatprep.subr.mxu0 0.0
  %881 = vmatpush1.msra.mxu0 0.0
  %882 = vmatprep.subr.mxu0 0.0
  %883 = vmatpush1.msra.mxu0 0.0
  %884 = vmatprep.subr.mxu0 0.0
  %885 = vmatpush1.msra.mxu0 0.0
  %886 = vmatprep.subr.mxu0 0.0
  %887 = vmatpush1.msra.mxu0 0.0
  %888 = vmatprep.subr.mxu0 0.0
  %889 = vmatpush1.msra.mxu0 0.0
  %890 = vmatprep.subr.mxu0 0.0
  %891 = vmatpush1.msra.mxu0 0.0
  %892 = vmatprep.subr.mxu0 0.0
  %893 = vmatpush1.msra.mxu0 0.0
  %894 = vmatprep.subr.mxu0 0.0
  %895 = vmatpush1.msra.mxu0 0.0
  %896 = vmatprep.subr.mxu0 0.0
  %897 = vmatpush1.msra.mxu0 0.0
  %898 = vmatprep.subr.mxu0 0.0
  %899 = vmatpush1.msra.mxu0 0.0
  %900 = vmatprep.subr.mxu0 0.0
  %901 = vmatpush1.msra.mxu0 0.0
  %902 = vmatprep.subr.mxu0 0.0
  %903 = vmatpush1.msra.mxu0 0.0
  %904 = vmatprep.subr.mxu0 0.0
  %905 = vmatpush1.msra.mxu0 0.0
  %906 = vmatprep.subr.mxu0 0.0
  %907 = vmatpush1.msra.mxu0 0.0
  %908 = vmatprep.subr.mxu0 0.0
  %909 = vmatpush1.msra.mxu0 0.0
  %910 = vmatprep.subr.mxu0 0.0
  %911 = vmatpush1.msra.mxu0 0.0
  %912 = vmatprep.subr.mxu0 0.0
  %913 = vmatpush1.msra.mxu0 0.0
  %914 = vmatprep.subr.mxu0 0.0
  %915 = vmatpush1.msra.mxu0 0.0
  %916 = vmatprep.subr.mxu0 0.0
  %917 = vmatpush1.msra.mxu0 0.0
  %918 = vmatprep.subr.mxu0 0.0
  %919 = vmatpush1.msra.mxu0 0.0
  %920 = vmatprep.subr.mxu0 0.0
  %921 = vmatpush1.msra.mxu0 0.0
  %922 = vmatprep.subr.mxu0 0.0
  %923 = vmatpush1.msra.mxu0 0.0
  %924 = vmatprep.subr.mxu0 0.0
  %925 = vmatpush1.msra.mxu0 0.0
  %926 = vmatprep.subr.mxu0 0.0
  %927 = vmatpush1.msra.mxu0 0.0
  %928 = vmatprep.subr.mxu0 0.0
  %929 = vmatpush1.msra.mxu0 0.0
  %930 = vmatprep.subr.mxu0 0.0
  %931 = vmatpush1.msra.mxu0 0.0
  %932 = vmatprep.mubr.f32.mxu0 0.0
  %933 = vmatmul.mubr.f32.gmra.mrb[0].mxu0 %v795
  %v934 = vpop.f32.mrb[0].mxu0
  %v935 = vadd.f32 0.0, %v934
  %v936 = vpop.f32.mrb[0].mxu0
  %937 = vdwg.mxu0
  %v938 = vlaneseq
  %v939 = vshrl.u32 %v938, 7
  %v940 = vsub.s32 0, %v939
  %v941 = vrot.slane %v720, %v940
  %v942 = vlaneseq
  %v943 = vshrl.u32 %v942, 7
  %v944 = vsub.s32 0, %v943
  %v945 = vrot.slane %v722, %v944
  %v946 = vlaneseq
  %v947 = vshrl.u32 %v946, 7
  %v948 = vsub.s32 0, %v947
  %v949 = vrot.slane %v791, %v948
  %v950 = vmul.f32 %v213, %v941
  %v951 = vmul.f32 %v215, %v945
  %v952 = vmul.f32 %v290, %v949
  %v953 = vmul.f32 %v219, %v941
  %v954 = vmul.f32 %v221, %v945
  %v955 = vmul.f32 %v295, %v949
  %v956 = vlaneseq
  %v957 = vshrl.u32 %v956, 7
  %v958 = vsub.s32 0, %v957
  %v959 = vrot.slane %v864, %v958
  %v960 = vlaneseq
  %v961 = vshrl.u32 %v960, 7
  %v962 = vsub.s32 0, %v961
  %v963 = vrot.slane %v866, %v962
  %v964 = vlaneseq
  %v965 = vshrl.u32 %v964, 7
  %v966 = vsub.s32 0, %v965
  %v967 = vrot.slane %v935, %v966
  %v968 = vadd.f32 %v950, %v959
  %v969 = vadd.f32 %v951, %v963
  %v970 = vadd.f32 %v952, %v967
  %v971 = vadd.f32 %v953, %v959
  %v972 = vadd.f32 %v954, %v963
  %v973 = vadd.f32 %v955, %v967
  %v974 = vmax.f32 %v968, 0.0
  %v975 = vmax.f32 %v969, 0.0
  %v976 = vmax.f32 %v970, 0.0
  %v977 = vmax.f32 %v971, 0.0
  %v978 = vmax.f32 %v972, 0.0
  %v979 = vmax.f32 %v973, 0.0
  %v980 = vld [vmem:[%s2] sm:$0xff]
  %v981 = vld [vmem:[%s2 + $0x8] sm:$0xff]
  %v982 = vld [vmem:[%s2 + $0x10] sm:$0xff]
  %v983 = vld [vmem:[%s2 + $0x18] sm:$0xff]
  %v984 = vld [vmem:[%s2 + $0x20] sm:$0xff]
  %v985 = vld [vmem:[%s2 + $0x28] sm:$0xff]
  %v986 = vld [vmem:[%s2 + $0x30] sm:$0xff]
  %v987 = vld [vmem:[%s2 + $0x38] sm:$0xff]
  %v988 = vld [vmem:[%s2 + $0x40] sm:$0xff]
  %v989 = vld [vmem:[%s2 + $0x48] sm:$0xff]
  %v990 = vld [vmem:[%s2 + $0x50] sm:$0xff]
  %v991 = vld [vmem:[%s2 + $0x58] sm:$0xff]
  %v992 = vld [vmem:[%s2 + $0x60] sm:$0xff]
  %v993 = vld [vmem:[%s2 + $0x68] sm:$0xff]
  %v994 = vld [vmem:[%s2 + $0x70] sm:$0xff]
  %v995 = vld [vmem:[%s2 + $0x78] sm:$0xff]
  %v996 = vld [vmem:[%s2 + $0x80] sm:$0xff]
  %v997 = vld [vmem:[%s2 + $0x88] sm:$0xff]
  %v998 = vld [vmem:[%s2 + $0x90] sm:$0xff]
  %v999 = vld [vmem:[%s2 + $0x98] sm:$0xff]
  %v1000 = vld [vmem:[%s2 + $0xa0] sm:$0xff]
  %v1001 = vld [vmem:[%s2 + $0xa8] sm:$0xff]
  %v1002 = vld [vmem:[%s2 + $0xb0] sm:$0xff]
  %v1003 = vld [vmem:[%s2 + $0xb8] sm:$0xff]
  %v1004 = vld [vmem:[%s2 + $0xc0] sm:$0xff]
  %v1005 = vld [vmem:[%s2 + $0xc8] sm:$0xff]
  %v1006 = vld [vmem:[%s2 + $0xd0] sm:$0xff]
  %v1007 = vld [vmem:[%s2 + $0xd8] sm:$0xff]
  %v1008 = vld [vmem:[%s2 + $0xe0] sm:$0xff]
  %v1009 = vld [vmem:[%s2 + $0xe8] sm:$0xff]
  %v1010 = vld [vmem:[%s2 + $0xf0] sm:$0xff]
  %v1011 = vld [vmem:[%s2 + $0xf8] sm:$0xff]
  %v1012 = vld [vmem:[%s2 + $0x100] sm:$0xff]
  %v1013 = vld [vmem:[%s2 + $0x108] sm:$0xff]
  %v1014 = vld [vmem:[%s2 + $0x110] sm:$0xff]
  %v1015 = vld [vmem:[%s2 + $0x118] sm:$0xff]
  %v1016 = vld [vmem:[%s2 + $0x120] sm:$0xff]
  %v1017 = vld [vmem:[%s2 + $0x128] sm:$0xff]
  %v1018 = vld [vmem:[%s2 + $0x130] sm:$0xff]
  %v1019 = vld [vmem:[%s2 + $0x138] sm:$0xff]
  %v1020 = vld [vmem:[%s2 + $0x140] sm:$0xff]
  %v1021 = vld [vmem:[%s2 + $0x148] sm:$0xff]
  %v1022 = vld [vmem:[%s2 + $0x150] sm:$0xff]
  %v1023 = vld [vmem:[%s2 + $0x158] sm:$0xff]
  %v1024 = vld [vmem:[%s2 + $0x160] sm:$0xff]
  %v1025 = vld [vmem:[%s2 + $0x168] sm:$0xff]
  %v1026 = vld [vmem:[%s2 + $0x170] sm:$0xff]
  %v1027 = vld [vmem:[%s2 + $0x178] sm:$0xff]
  %v1028 = vld [vmem:[%s2 + $0x180] sm:$0xff]
  %v1029 = vld [vmem:[%s2 + $0x188] sm:$0xff]
  %v1030 = vld [vmem:[%s2 + $0x190] sm:$0xff]
  %v1031 = vld [vmem:[%s2 + $0x198] sm:$0xff]
  %v1032 = vld [vmem:[%s2 + $0x1a0] sm:$0xff]
  %v1033 = vld [vmem:[%s2 + $0x1a8] sm:$0xff]
  %v1034 = vld [vmem:[%s2 + $0x1b0] sm:$0xff]
  %v1035 = vld [vmem:[%s2 + $0x1b8] sm:$0xff]
  %v1036 = vld [vmem:[%s2 + $0x1c0] sm:$0xff]
  %v1037 = vld [vmem:[%s2 + $0x1c8] sm:$0xff]
  %v1038 = vld [vmem:[%s2 + $0x1d0] sm:$0xff]
  %v1039 = vld [vmem:[%s2 + $0x1d8] sm:$0xff]
  %v1040 = vld [vmem:[%s2 + $0x1e0] sm:$0xff]
  %v1041 = vld [vmem:[%s2 + $0x1e8] sm:$0xff]
  %v1042 = vld [vmem:[%s2 + $0x1f0] sm:$0xff]
  %v1043 = vld [vmem:[%s2 + $0x1f8] sm:$0xff]
  %v1044 = vld [vmem:[%s2 + $0x200] sm:$0xff]
  %v1045 = vld [vmem:[%s2 + $0x208] sm:$0xff]
  %v1046 = vld [vmem:[%s2 + $0x210] sm:$0xff]
  %v1047 = vld [vmem:[%s2 + $0x218] sm:$0xff]
  %v1048 = vld [vmem:[%s2 + $0x220] sm:$0xff]
  %v1049 = vld [vmem:[%s2 + $0x228] sm:$0xff]
  %v1050 = vld [vmem:[%s2 + $0x230] sm:$0xff]
  %v1051 = vld [vmem:[%s2 + $0x238] sm:$0xff]
  %v1052 = vld [vmem:[%s2 + $0x240] sm:$0xff]
  %v1053 = vld [vmem:[%s2 + $0x248] sm:$0xff]
  %v1054 = vld [vmem:[%s2 + $0x250] sm:$0xff]
  %v1055 = vld [vmem:[%s2 + $0x258] sm:$0xff]
  %v1056 = vld [vmem:[%s2 + $0x260] sm:$0xff]
  %v1057 = vld [vmem:[%s2 + $0x268] sm:$0xff]
  %v1058 = vld [vmem:[%s2 + $0x270] sm:$0xff]
  %v1059 = vld [vmem:[%s2 + $0x278] sm:$0xff]
  %v1060 = vld [vmem:[%s2 + $0x280] sm:$0xff]
  %v1061 = vld [vmem:[%s2 + $0x288] sm:$0xff]
  %v1062 = vld [vmem:[%s2 + $0x290] sm:$0xff]
  %v1063 = vld [vmem:[%s2 + $0x298] sm:$0xff]
  %v1064 = vld [vmem:[%s2 + $0x2a0] sm:$0xff]
  %v1065 = vld [vmem:[%s2 + $0x2a8] sm:$0xff]
  %v1066 = vld [vmem:[%s2 + $0x2b0] sm:$0xff]
  %v1067 = vld [vmem:[%s2 + $0x2b8] sm:$0xff]
  %v1068 = vld [vmem:[%s2 + $0x2c0] sm:$0xff]
  %v1069 = vld [vmem:[%s2 + $0x2c8] sm:$0xff]
  %v1070 = vld [vmem:[%s2 + $0x2d0] sm:$0xff]
  %v1071 = vld [vmem:[%s2 + $0x2d8] sm:$0xff]
  %v1072 = vld [vmem:[%s2 + $0x2e0] sm:$0xff]
  %v1073 = vld [vmem:[%s2 + $0x2e8] sm:$0xff]
  %v1074 = vld [vmem:[%s2 + $0x2f0] sm:$0xff]
  %v1075 = vld [vmem:[%s2 + $0x2f8] sm:$0xff]
  %v1076 = vld [vmem:[%s2 + $0x300] sm:$0xff]
  %v1077 = vld [vmem:[%s2 + $0x308] sm:$0xff]
  %v1078 = vld [vmem:[%s2 + $0x310] sm:$0xff]
  %v1079 = vld [vmem:[%s2 + $0x318] sm:$0xff]
  %v1080 = vld [vmem:[%s2 + $0x320] sm:$0xff]
  %v1081 = vld [vmem:[%s2 + $0x328] sm:$0xff]
  %v1082 = vld [vmem:[%s2 + $0x330] sm:$0xff]
  %v1083 = vld [vmem:[%s2 + $0x338] sm:$0xff]
  %v1084 = vld [vmem:[%s2 + $0x340] sm:$0xff]
  %v1085 = vld [vmem:[%s2 + $0x348] sm:$0xff]
  %v1086 = vld [vmem:[%s2 + $0x350] sm:$0xff]
  %v1087 = vld [vmem:[%s2 + $0x358] sm:$0xff]
  %v1088 = vld [vmem:[%s2 + $0x360] sm:$0xff]
  %v1089 = vld [vmem:[%s2 + $0x368] sm:$0xff]
  %v1090 = vld [vmem:[%s2 + $0x370] sm:$0xff]
  %v1091 = vld [vmem:[%s2 + $0x378] sm:$0xff]
  %v1092 = vld [vmem:[%s2 + $0x380] sm:$0xff]
  %v1093 = vld [vmem:[%s2 + $0x388] sm:$0xff]
  %v1094 = vld [vmem:[%s2 + $0x390] sm:$0xff]
  %v1095 = vld [vmem:[%s2 + $0x398] sm:$0xff]
  %v1096 = vld [vmem:[%s2 + $0x3a0] sm:$0xff]
  %v1097 = vld [vmem:[%s2 + $0x3a8] sm:$0xff]
  %v1098 = vld [vmem:[%s2 + $0x3b0] sm:$0xff]
  %v1099 = vld [vmem:[%s2 + $0x3b8] sm:$0xff]
  %s1100 = scalar_lea.vmem %s3, 3
  %v1101 = vld [vmem:[%s1100] sm:$0x7]
  %v1103 = vlaneseq
  %v1104 = vshrl.u32 %v1103, 7
  %v1105 = vsub.s32 0, %v1104
  %v1106 = vrot.slane %v1101, %v1105
  %v1107 = vlaneseq
  %v1108 = vshrl.u32 %v1107, 7
  %v1109 = vsub.s32 1, %v1108
  %v1110 = vrot.slane %v1101, %v1109
  %v1111 = vlaneseq
  %v1112 = vshrl.u32 %v1111, 7
  %v1113 = vsub.s32 2, %v1112
  %v1114 = vrot.slane %v1101, %v1113
  %v1119 = vsel %vm312, %v976, 0
  %v1122 = vsel %vm312, %v979, 0
  %1124 = vmatprep.subr.mxu0 %v981
  %1125 = vmatpush1.msra.mxu0 %v980
  %1126 = vmatprep.subr.mxu0 %v984
  %1127 = vmatpush1.msra.mxu0 %v983
  %1128 = vmatprep.subr.mxu0 %v987
  %1129 = vmatpush1.msra.mxu0 %v986
  %1130 = vmatprep.subr.mxu0 %v990
  %1131 = vmatpush1.msra.mxu0 %v989
  %1132 = vmatprep.subr.mxu0 %v993
  %1133 = vmatpush1.msra.mxu0 %v992
  %1134 = vmatprep.subr.mxu0 %v996
  %1135 = vmatpush1.msra.mxu0 %v995
  %1136 = vmatprep.subr.mxu0 %v999
  %1137 = vmatpush1.msra.mxu0 %v998
  %1138 = vmatprep.subr.mxu0 %v1002
  %1139 = vmatpush1.msra.mxu0 %v1001
  %1140 = vmatprep.subr.mxu0 %v1005
  %1141 = vmatpush1.msra.mxu0 %v1004
  %1142 = vmatprep.subr.mxu0 %v1008
  %1143 = vmatpush1.msra.mxu0 %v1007
  %1144 = vmatprep.subr.mxu0 %v1011
  %1145 = vmatpush1.msra.mxu0 %v1010
  %1146 = vmatprep.subr.mxu0 %v1014
  %1147 = vmatpush1.msra.mxu0 %v1013
  %1148 = vmatprep.subr.mxu0 %v1017
  %1149 = vmatpush1.msra.mxu0 %v1016
  %1150 = vmatprep.subr.mxu0 %v1020
  %1151 = vmatpush1.msra.mxu0 %v1019
  %1152 = vmatprep.subr.mxu0 %v1023
  %1153 = vmatpush1.msra.mxu0 %v1022
  %1154 = vmatprep.subr.mxu0 %v1026
  %1155 = vmatpush1.msra.mxu0 %v1025
  %1156 = vmatprep.subr.mxu0 %v1029
  %1157 = vmatpush1.msra.mxu0 %v1028
  %1158 = vmatprep.subr.mxu0 %v1032
  %1159 = vmatpush1.msra.mxu0 %v1031
  %1160 = vmatprep.subr.mxu0 %v1035
  %1161 = vmatpush1.msra.mxu0 %v1034
  %1162 = vmatprep.subr.mxu0 %v1038
  %1163 = vmatpush1.msra.mxu0 %v1037
  %1164 = vmatprep.subr.mxu0 %v1041
  %1165 = vmatpush1.msra.mxu0 %v1040
  %1166 = vmatprep.subr.mxu0 %v1044
  %1167 = vmatpush1.msra.mxu0 %v1043
  %1168 = vmatprep.subr.mxu0 %v1047
  %1169 = vmatpush1.msra.mxu0 %v1046
  %1170 = vmatprep.subr.mxu0 %v1050
  %1171 = vmatpush1.msra.mxu0 %v1049
  %1172 = vmatprep.subr.mxu0 %v1053
  %1173 = vmatpush1.msra.mxu0 %v1052
  %1174 = vmatprep.subr.mxu0 %v1056
  %1175 = vmatpush1.msra.mxu0 %v1055
  %1176 = vmatprep.subr.mxu0 %v1059
  %1177 = vmatpush1.msra.mxu0 %v1058
  %1178 = vmatprep.subr.mxu0 %v1062
  %1179 = vmatpush1.msra.mxu0 %v1061
  %1180 = vmatprep.subr.mxu0 %v1065
  %1181 = vmatpush1.msra.mxu0 %v1064
  %1182 = vmatprep.subr.mxu0 %v1068
  %1183 = vmatpush1.msra.mxu0 %v1067
  %1184 = vmatprep.subr.mxu0 %v1071
  %1185 = vmatpush1.msra.mxu0 %v1070
  %1186 = vmatprep.subr.mxu0 %v1074
  %1187 = vmatpush1.msra.mxu0 %v1073
  %1188 = vmatprep.mubr.f32.mxu0 %v975
  %1189 = vmatmul.mubr.f32.gmra.mrb[0].mxu0 %v974
  %v1190 = vpop.f32.mrb[0].mxu0
  %v1191 = vadd.f32 %v1106, %v1190
  %v1192 = vpop.f32.mrb[0].mxu0
  %v1193 = vadd.f32 %v1110, %v1192
  %1194 = vmatprep.mubr.f32.mxu0 %v978
  %1195 = vmatmul.mubr.f32.gmra.mrb[0].mxu0 %v977
  %v1196 = vpop.f32.mrb[0].mxu0
  %v1197 = vadd.f32 %v1106, %v1196
  %v1198 = vpop.f32.mrb[0].mxu0
  %v1199 = vadd.f32 %v1110, %v1198
  %1200 = vdwg.mxu0
  %1201 = vmatprep.subr.mxu0 %v1077
  %1202 = vmatpush1.msra.mxu0 %v1076
  %1203 = vmatprep.subr.mxu0 %v1080
  %1204 = vmatpush1.msra.mxu0 %v1079
  %1205 = vmatprep.subr.mxu0 %v1083
  %1206 = vmatpush1.msra.mxu0 %v1082
  %1207 = vmatprep.subr.mxu0 %v1086
  %1208 = vmatpush1.msra.mxu0 %v1085
  %1209 = vmatprep.subr.mxu0 %v1089
  %1210 = vmatpush1.msra.mxu0 %v1088
  %1211 = vmatprep.subr.mxu0 %v1092
  %1212 = vmatpush1.msra.mxu0 %v1091
  %1213 = vmatprep.subr.mxu0 %v1095
  %1214 = vmatpush1.msra.mxu0 %v1094
  %1215 = vmatprep.subr.mxu0 %v1098
  %1216 = vmatpush1.msra.mxu0 %v1097
  %1217 = vmatprep.subr.mxu0 0.0
  %1218 = vmatpush1.msra.mxu0 0.0
  %1219 = vmatprep.subr.mxu0 0.0
  %1220 = vmatpush1.msra.mxu0 0.0
  %1221 = vmatprep.subr.mxu0 0.0
  %1222 = vmatpush1.msra.mxu0 0.0
  %1223 = vmatprep.subr.mxu0 0.0
  %1224 = vmatpush1.msra.mxu0 0.0
  %1225 = vmatprep.subr.mxu0 0.0
  %1226 = vmatpush1.msra.mxu0 0.0
  %1227 = vmatprep.subr.mxu0 0.0
  %1228 = vmatpush1.msra.mxu0 0.0
  %1229 = vmatprep.subr.mxu0 0.0
  %1230 = vmatpush1.msra.mxu0 0.0
  %1231 = vmatprep.subr.mxu0 0.0
  %1232 = vmatpush1.msra.mxu0 0.0
  %1233 = vmatprep.subr.mxu0 0.0
  %1234 = vmatpush1.msra.mxu0 0.0
  %1235 = vmatprep.subr.mxu0 0.0
  %1236 = vmatpush1.msra.mxu0 0.0
  %1237 = vmatprep.subr.mxu0 0.0
  %1238 = vmatpush1.msra.mxu0 0.0
  %1239 = vmatprep.subr.mxu0 0.0
  %1240 = vmatpush1.msra.mxu0 0.0
  %1241 = vmatprep.subr.mxu0 0.0
  %1242 = vmatpush1.msra.mxu0 0.0
  %1243 = vmatprep.subr.mxu0 0.0
  %1244 = vmatpush1.msra.mxu0 0.0
  %1245 = vmatprep.subr.mxu0 0.0
  %1246 = vmatpush1.msra.mxu0 0.0
  %1247 = vmatprep.subr.mxu0 0.0
  %1248 = vmatpush1.msra.mxu0 0.0
  %1249 = vmatprep.subr.mxu0 0.0
  %1250 = vmatpush1.msra.mxu0 0.0
  %1251 = vmatprep.subr.mxu0 0.0
  %1252 = vmatpush1.msra.mxu0 0.0
  %1253 = vmatprep.subr.mxu0 0.0
  %1254 = vmatpush1.msra.mxu0 0.0
  %1255 = vmatprep.subr.mxu0 0.0
  %1256 = vmatpush1.msra.mxu0 0.0
  %1257 = vmatprep.subr.mxu0 0.0
  %1258 = vmatpush1.msra.mxu0 0.0
  %1259 = vmatprep.subr.mxu0 0.0
  %1260 = vmatpush1.msra.mxu0 0.0
  %1261 = vmatprep.subr.mxu0 0.0
  %1262 = vmatpush1.msra.mxu0 0.0
  %1263 = vmatprep.subr.mxu0 0.0
  %1264 = vmatpush1.msra.mxu0 0.0
  %1265 = vmatprep.mubr.f32.mxu0 0.0
  %1266 = vmatmul.mubr.f32.gmra.mrb[0].mxu0 %v1119
  %v1267 = vpop.f32.mrb[0].mxu0
  %v1268 = vadd.f32 %v1191, %v1267
  %v1269 = vpop.f32.mrb[0].mxu0
  %v1270 = vadd.f32 %v1193, %v1269
  %1271 = vmatprep.mubr.f32.mxu0 0.0
  %1272 = vmatmul.mubr.f32.gmra.mrb[0].mxu0 %v1122
  %v1273 = vpop.f32.mrb[0].mxu0
  %v1274 = vadd.f32 %v1197, %v1273
  %v1275 = vpop.f32.mrb[0].mxu0
  %v1276 = vadd.f32 %v1199, %v1275
  %1277 = vdwg.mxu0
  %1278 = vmatprep.subr.mxu0 0.0
  %1279 = vmatpush1.msra.mxu0 %v982
  %1280 = vmatprep.subr.mxu0 0.0
  %1281 = vmatpush1.msra.mxu0 %v985
  %1282 = vmatprep.subr.mxu0 0.0
  %1283 = vmatpush1.msra.mxu0 %v988
  %1284 = vmatprep.subr.mxu0 0.0
  %1285 = vmatpush1.msra.mxu0 %v991
  %1286 = vmatprep.subr.mxu0 0.0
  %1287 = vmatpush1.msra.mxu0 %v994
  %1288 = vmatprep.subr.mxu0 0.0
  %1289 = vmatpush1.msra.mxu0 %v997
  %1290 = vmatprep.subr.mxu0 0.0
  %1291 = vmatpush1.msra.mxu0 %v1000
  %1292 = vmatprep.subr.mxu0 0.0
  %1293 = vmatpush1.msra.mxu0 %v1003
  %1294 = vmatprep.subr.mxu0 0.0
  %1295 = vmatpush1.msra.mxu0 %v1006
  %1296 = vmatprep.subr.mxu0 0.0
  %1297 = vmatpush1.msra.mxu0 %v1009
  %1298 = vmatprep.subr.mxu0 0.0
  %1299 = vmatpush1.msra.mxu0 %v1012
  %1300 = vmatprep.subr.mxu0 0.0
  %1301 = vmatpush1.msra.mxu0 %v1015
  %1302 = vmatprep.subr.mxu0 0.0
  %1303 = vmatpush1.msra.mxu0 %v1018
  %1304 = vmatprep.subr.mxu0 0.0
  %1305 = vmatpush1.msra.mxu0 %v1021
  %1306 = vmatprep.subr.mxu0 0.0
  %1307 = vmatpush1.msra.mxu0 %v1024
  %1308 = vmatprep.subr.mxu0 0.0
  %1309 = vmatpush1.msra.mxu0 %v1027
  %1310 = vmatprep.subr.mxu0 0.0
  %1311 = vmatpush1.msra.mxu0 %v1030
  %1312 = vmatprep.subr.mxu0 0.0
  %1313 = vmatpush1.msra.mxu0 %v1033
  %1314 = vmatprep.subr.mxu0 0.0
  %1315 = vmatpush1.msra.mxu0 %v1036
  %1316 = vmatprep.subr.mxu0 0.0
  %1317 = vmatpush1.msra.mxu0 %v1039
  %1318 = vmatprep.subr.mxu0 0.0
  %1319 = vmatpush1.msra.mxu0 %v1042
  %1320 = vmatprep.subr.mxu0 0.0
  %1321 = vmatpush1.msra.mxu0 %v1045
  %1322 = vmatprep.subr.mxu0 0.0
  %1323 = vmatpush1.msra.mxu0 %v1048
  %1324 = vmatprep.subr.mxu0 0.0
  %1325 = vmatpush1.msra.mxu0 %v1051
  %1326 = vmatprep.subr.mxu0 0.0
  %1327 = vmatpush1.msra.mxu0 %v1054
  %1328 = vmatprep.subr.mxu0 0.0
  %1329 = vmatpush1.msra.mxu0 %v1057
  %1330 = vmatprep.subr.mxu0 0.0
  %1331 = vmatpush1.msra.mxu0 %v1060
  %1332 = vmatprep.subr.mxu0 0.0
  %1333 = vmatpush1.msra.mxu0 %v1063
  %1334 = vmatprep.subr.mxu0 0.0
  %1335 = vmatpush1.msra.mxu0 %v1066
  %1336 = vmatprep.subr.mxu0 0.0
  %1337 = vmatpush1.msra.mxu0 %v1069
  %1338 = vmatprep.subr.mxu0 0.0
  %1339 = vmatpush1.msra.mxu0 %v1072
  %1340 = vmatprep.subr.mxu0 0.0
  %1341 = vmatpush1.msra.mxu0 %v1075
  %1342 = vmatprep.mubr.f32.mxu0 %v975
  %1343 = vmatmul.mubr.f32.gmra.mrb[0].mxu0 %v974
  %v1344 = vpop.f32.mrb[0].mxu0
  %v1345 = vadd.f32 %v1114, %v1344
  %v1346 = vpop.f32.mrb[0].mxu0
  %1347 = vmatprep.mubr.f32.mxu0 %v978
  %1348 = vmatmul.mubr.f32.gmra.mrb[0].mxu0 %v977
  %v1349 = vpop.f32.mrb[0].mxu0
  %v1350 = vadd.f32 %v1114, %v1349
  %v1351 = vpop.f32.mrb[0].mxu0
  %1352 = vdwg.mxu0
  %1353 = vmatprep.subr.mxu0 0.0
  %1354 = vmatpush1.msra.mxu0 %v1078
  %1355 = vmatprep.subr.mxu0 0.0
  %1356 = vmatpush1.msra.mxu0 %v1081
  %1357 = vmatprep.subr.mxu0 0.0
  %1358 = vmatpush1.msra.mxu0 %v1084
  %1359 = vmatprep.subr.mxu0 0.0
  %1360 = vmatpush1.msra.mxu0 %v1087
  %1361 = vmatprep.subr.mxu0 0.0
  %1362 = vmatpush1.msra.mxu0 %v1090
  %1363 = vmatprep.subr.mxu0 0.0
  %1364 = vmatpush1.msra.mxu0 %v1093
  %1365 = vmatprep.subr.mxu0 0.0
  %1366 = vmatpush1.msra.mxu0 %v1096
  %1367 = vmatprep.subr.mxu0 0.0
  %1368 = vmatpush1.msra.mxu0 %v1099
  %1369 = vmatprep.subr.mxu0 0.0
  %1370 = vmatpush1.msra.mxu0 0.0
  %1371 = vmatprep.subr.mxu0 0.0
  %1372 = vmatpush1.msra.mxu0 0.0
  %1373 = vmatprep.subr.mxu0 0.0
  %1374 = vmatpush1.msra.mxu0 0.0
  %1375 = vmatprep.subr.mxu0 0.0
  %1376 = vmatpush1.msra.mxu0 0.0
  %1377 = vmatprep.subr.mxu0 0.0
  %1378 = vmatpush1.msra.mxu0 0.0
  %1379 = vmatprep.subr.mxu0 0.0
  %1380 = vmatpush1.msra.mxu0 0.0
  %1381 = vmatprep.subr.mxu0 0.0
  %1382 = vmatpush1.msra.mxu0 0.0
  %1383 = vmatprep.subr.mxu0 0.0
  %1384 = vmatpush1.msra.mxu0 0.0
  %1385 = vmatprep.subr.mxu0 0.0
  %1386 = vmatpush1.msra.mxu0 0.0
  %1387 = vmatprep.subr.mxu0 0.0
  %1388 = vmatpush1.msra.mxu0 0.0
  %1389 = vmatprep.subr.mxu0 0.0
  %1390 = vmatpush1.msra.mxu0 0.0
  %1391 = vmatprep.subr.mxu0 0.0
  %1392 = vmatpush1.msra.mxu0 0.0
  %1393 = vmatprep.subr.mxu0 0.0
  %1394 = vmatpush1.msra.mxu0 0.0
  %1395 = vmatprep.subr.mxu0 0.0
  %1396 = vmatpush1.msra.mxu0 0.0
  %1397 = vmatprep.subr.mxu0 0.0
  %1398 = vmatpush1.msra.mxu0 0.0
  %1399 = vmatprep.subr.mxu0 0.0
  %1400 = vmatpush1.msra.mxu0 0.0
  %1401 = vmatprep.subr.mxu0 0.0
  %1402 = vmatpush1.msra.mxu0 0.0
  %1403 = vmatprep.subr.mxu0 0.0
  %1404 = vmatpush1.msra.mxu0 0.0
  %1405 = vmatprep.subr.mxu0 0.0
  %1406 = vmatpush1.msra.mxu0 0.0
  %1407 = vmatprep.subr.mxu0 0.0
  %1408 = vmatpush1.msra.mxu0 0.0
  %1409 = vmatprep.subr.mxu0 0.0
  %1410 = vmatpush1.msra.mxu0 0.0
  %1411 = vmatprep.subr.mxu0 0.0
  %1412 = vmatpush1.msra.mxu0 0.0
  %1413 = vmatprep.subr.mxu0 0.0
  %1414 = vmatpush1.msra.mxu0 0.0
  %1415 = vmatprep.subr.mxu0 0.0
  %1416 = vmatpush1.msra.mxu0 0.0
  %1417 = vmatprep.mubr.f32.mxu0 0.0
  %1418 = vmatmul.mubr.f32.gmra.mrb[0].mxu0 %v1119
  %v1419 = vpop.f32.mrb[0].mxu0
  %v1420 = vadd.f32 %v1345, %v1419
  %v1421 = vpop.f32.mrb[0].mxu0
  %1422 = vmatprep.mubr.f32.mxu0 0.0
  %1423 = vmatmul.mubr.f32.gmra.mrb[0].mxu0 %v1122
  %v1424 = vpop.f32.mrb[0].mxu0
  %v1425 = vadd.f32 %v1350, %v1424
  %v1426 = vpop.f32.mrb[0].mxu0
  %1427 = vdwg.mxu0
  %v1428 = vadd.f32 %v1268, %v1274
  %v1429 = vrot.slane %v1428, 4
  %v1430 = vadd.f32 %v1428, %v1429
  %v1431 = vrot.slane %v1430, 2
  %v1432 = vadd.f32 %v1430, %v1431
  %v1433 = vrot.slane %v1432, 1
  %v1434 = vadd.f32 %v1432, %v1433
  %v1435 = vadd.f32 %v1270, %v1276
  %v1436 = vrot.slane %v1435, 4
  %v1437 = vadd.f32 %v1435, %v1436
  %v1438 = vrot.slane %v1437, 2
  %v1439 = vadd.f32 %v1437, %v1438
  %v1440 = vrot.slane %v1439, 1
  %v1441 = vadd.f32 %v1439, %v1440
  %v1442 = vsel %vm312, %v1420, 0.0
  %v1443 = vsel %vm312, %v1425, 0.0
  %v1444 = vadd.f32 %v1442, %v1443
  %v1445 = vrot.slane %v1444, 4
  %v1446 = vadd.f32 %v1444, %v1445
  %v1447 = vrot.slane %v1446, 2
  %v1448 = vadd.f32 %v1446, %v1447
  %v1449 = vrot.slane %v1448, 1
  %v1450 = vadd.f32 %v1448, %v1449
  %v1451 = vmul.f32 %v1268, %v1268
  %v1452 = vmul.f32 %v1270, %v1270
  %v1453 = vmul.f32 %v1420, %v1420
  %v1454 = vmul.f32 %v1274, %v1274
  %v1455 = vmul.f32 %v1276, %v1276
  %v1456 = vmul.f32 %v1425, %v1425
  %v1457 = vadd.f32 %v1451, %v1454
  %v1458 = vrot.slane %v1457, 4
  %v1459 = vadd.f32 %v1457, %v1458
  %v1460 = vrot.slane %v1459, 2
  %v1461 = vadd.f32 %v1459, %v1460
  %v1462 = vrot.slane %v1461, 1
  %v1463 = vadd.f32 %v1461, %v1462
  %v1464 = vadd.f32 %v1452, %v1455
  %v1465 = vrot.slane %v1464, 4
  %v1466 = vadd.f32 %v1464, %v1465
  %v1467 = vrot.slane %v1466, 2
  %v1468 = vadd.f32 %v1466, %v1467
  %v1469 = vrot.slane %v1468, 1
  %v1470 = vadd.f32 %v1468, %v1469
  %v1471 = vsel %vm312, %v1453, 0.0
  %v1472 = vsel %vm312, %v1456, 0.0
  %v1473 = vadd.f32 %v1471, %v1472
  %v1474 = vrot.slane %v1473, 4
  %v1475 = vadd.f32 %v1473, %v1474
  %v1476 = vrot.slane %v1475, 2
  %v1477 = vadd.f32 %v1475, %v1476
  %v1478 = vrot.slane %v1477, 1
  %v1479 = vadd.f32 %v1477, %v1478
  %v1481 = vsel %vm312, %v1450, 0
  %1483 = vmatprep.subr.mxu0 0.0
  %1484 = vmatpush1.msra.mxu0 %v29
  %1485 = vmatprep.subr.mxu0 0.0
  %1486 = vmatpush1.msra.mxu0 %v30
  %1487 = vmatprep.subr.mxu0 0.0
  %1488 = vmatpush1.msra.mxu0 %v31
  %1489 = vmatprep.subr.mxu0 0.0
  %1490 = vmatpush1.msra.mxu0 %v32
  %1491 = vmatprep.subr.mxu0 0.0
  %1492 = vmatpush1.msra.mxu0 %v33
  %1493 = vmatprep.subr.mxu0 0.0
  %1494 = vmatpush1.msra.mxu0 %v34
  %1495 = vmatprep.subr.mxu0 0.0
  %1496 = vmatpush1.msra.mxu0 %v35
  %1497 = vmatprep.subr.mxu0 0.0
  %1498 = vmatpush1.msra.mxu0 %v36
  %1499 = vmatprep.subr.mxu0 0.0
  %1500 = vmatpush1.msra.mxu0 %v37
  %1501 = vmatprep.subr.mxu0 0.0
  %1502 = vmatpush1.msra.mxu0 %v38
  %1503 = vmatprep.subr.mxu0 0.0
  %1504 = vmatpush1.msra.mxu0 %v39
  %1505 = vmatprep.subr.mxu0 0.0
  %1506 = vmatpush1.msra.mxu0 %v40
  %1507 = vmatprep.subr.mxu0 0.0
  %1508 = vmatpush1.msra.mxu0 %v41
  %1509 = vmatprep.subr.mxu0 0.0
  %1510 = vmatpush1.msra.mxu0 %v42
  %1511 = vmatprep.subr.mxu0 0.0
  %1512 = vmatpush1.msra.mxu0 %v43
  %1513 = vmatprep.subr.mxu0 0.0
  %1514 = vmatpush1.msra.mxu0 %v44
  %1515 = vmatprep.subr.mxu0 0.0
  %1516 = vmatpush1.msra.mxu0 %v45
  %1517 = vmatprep.subr.mxu0 0.0
  %1518 = vmatpush1.msra.mxu0 %v46
  %1519 = vmatprep.subr.mxu0 0.0
  %1520 = vmatpush1.msra.mxu0 %v47
  %1521 = vmatprep.subr.mxu0 0.0
  %1522 = vmatpush1.msra.mxu0 %v48
  %1523 = vmatprep.subr.mxu0 0.0
  %1524 = vmatpush1.msra.mxu0 %v49
  %1525 = vmatprep.subr.mxu0 0.0
  %1526 = vmatpush1.msra.mxu0 %v50
  %1527 = vmatprep.subr.mxu0 0.0
  %1528 = vmatpush1.msra.mxu0 %v51
  %1529 = vmatprep.subr.mxu0 0.0
  %1530 = vmatpush1.msra.mxu0 %v52
  %1531 = vmatprep.subr.mxu0 0.0
  %1532 = vmatpush1.msra.mxu0 %v53
  %1533 = vmatprep.subr.mxu0 0.0
  %1534 = vmatpush1.msra.mxu0 %v54
  %1535 = vmatprep.subr.mxu0 0.0
  %1536 = vmatpush1.msra.mxu0 %v55
  %1537 = vmatprep.subr.mxu0 0.0
  %1538 = vmatpush1.msra.mxu0 %v56
  %1539 = vmatprep.subr.mxu0 0.0
  %1540 = vmatpush1.msra.mxu0 %v57
  %1541 = vmatprep.subr.mxu0 0.0
  %1542 = vmatpush1.msra.mxu0 %v58
  %1543 = vmatprep.subr.mxu0 0.0
  %1544 = vmatpush1.msra.mxu0 %v59
  %1545 = vmatprep.subr.mxu0 0.0
  %1546 = vmatpush1.msra.mxu0 %v60
  %1547 = vmatprep.mubr.f32.mxu0 %v1441
  %1548 = vmatmul.mubr.f32.gmra.mrb[0].mxu0 %v1434
  %v1549 = vpop.f32.mrb[0].mxu0
  %v1550 = vadd.f32 0.0, %v1549
  %v1551 = vpop.f32.mrb[0].mxu0
  %1552 = vdwg.mxu0
  %1553 = vmatprep.subr.mxu0 0.0
  %1554 = vmatpush1.msra.mxu0 %v61
  %1555 = vmatprep.subr.mxu0 0.0
  %1556 = vmatpush1.msra.mxu0 %v62
  %1557 = vmatprep.subr.mxu0 0.0
  %1558 = vmatpush1.msra.mxu0 %v63
  %1559 = vmatprep.subr.mxu0 0.0
  %1560 = vmatpush1.msra.mxu0 %v64
  %1561 = vmatprep.subr.mxu0 0.0
  %1562 = vmatpush1.msra.mxu0 %v65
  %1563 = vmatprep.subr.mxu0 0.0
  %1564 = vmatpush1.msra.mxu0 %v66
  %1565 = vmatprep.subr.mxu0 0.0
  %1566 = vmatpush1.msra.mxu0 %v67
  %1567 = vmatprep.subr.mxu0 0.0
  %1568 = vmatpush1.msra.mxu0 %v68
  %1569 = vmatprep.subr.mxu0 0.0
  %1570 = vmatpush1.msra.mxu0 0.0
  %1571 = vmatprep.subr.mxu0 0.0
  %1572 = vmatpush1.msra.mxu0 0.0
  %1573 = vmatprep.subr.mxu0 0.0
  %1574 = vmatpush1.msra.mxu0 0.0
  %1575 = vmatprep.subr.mxu0 0.0
  %1576 = vmatpush1.msra.mxu0 0.0
  %1577 = vmatprep.subr.mxu0 0.0
  %1578 = vmatpush1.msra.mxu0 0.0
  %1579 = vmatprep.subr.mxu0 0.0
  %1580 = vmatpush1.msra.mxu0 0.0
  %1581 = vmatprep.subr.mxu0 0.0
  %1582 = vmatpush1.msra.mxu0 0.0
  %1583 = vmatprep.subr.mxu0 0.0
  %1584 = vmatpush1.msra.mxu0 0.0
  %1585 = vmatprep.subr.mxu0 0.0
  %1586 = vmatpush1.msra.mxu0 0.0
  %1587 = vmatprep.subr.mxu0 0.0
  %1588 = vmatpush1.msra.mxu0 0.0
  %1589 = vmatprep.subr.mxu0 0.0
  %1590 = vmatpush1.msra.mxu0 0.0
  %1591 = vmatprep.subr.mxu0 0.0
  %1592 = vmatpush1.msra.mxu0 0.0
  %1593 = vmatprep.subr.mxu0 0.0
  %1594 = vmatpush1.msra.mxu0 0.0
  %1595 = vmatprep.subr.mxu0 0.0
  %1596 = vmatpush1.msra.mxu0 0.0
  %1597 = vmatprep.subr.mxu0 0.0
  %1598 = vmatpush1.msra.mxu0 0.0
  %1599 = vmatprep.subr.mxu0 0.0
  %1600 = vmatpush1.msra.mxu0 0.0
  %1601 = vmatprep.subr.mxu0 0.0
  %1602 = vmatpush1.msra.mxu0 0.0
  %1603 = vmatprep.subr.mxu0 0.0
  %1604 = vmatpush1.msra.mxu0 0.0
  %1605 = vmatprep.subr.mxu0 0.0
  %1606 = vmatpush1.msra.mxu0 0.0
  %1607 = vmatprep.subr.mxu0 0.0
  %1608 = vmatpush1.msra.mxu0 0.0
  %1609 = vmatprep.subr.mxu0 0.0
  %1610 = vmatpush1.msra.mxu0 0.0
  %1611 = vmatprep.subr.mxu0 0.0
  %1612 = vmatpush1.msra.mxu0 0.0
  %1613 = vmatprep.subr.mxu0 0.0
  %1614 = vmatpush1.msra.mxu0 0.0
  %1615 = vmatprep.subr.mxu0 0.0
  %1616 = vmatpush1.msra.mxu0 0.0
  %1617 = vmatprep.mubr.f32.mxu0 0.0
  %1618 = vmatmul.mubr.f32.gmra.mrb[0].mxu0 %v1481
  %v1619 = vpop.f32.mrb[0].mxu0
  %v1620 = vadd.f32 %v1550, %v1619
  %v1621 = vpop.f32.mrb[0].mxu0
  %1622 = vdwg.mxu0
  %v1624 = vsel %vm312, %v1479, 0
  %1626 = vmatprep.subr.mxu0 0.0
  %1627 = vmatpush1.msra.mxu0 %v29
  %1628 = vmatprep.subr.mxu0 0.0
  %1629 = vmatpush1.msra.mxu0 %v30
  %1630 = vmatprep.subr.mxu0 0.0
  %1631 = vmatpush1.msra.mxu0 %v31
  %1632 = vmatprep.subr.mxu0 0.0
  %1633 = vmatpush1.msra.mxu0 %v32
  %1634 = vmatprep.subr.mxu0 0.0
  %1635 = vmatpush1.msra.mxu0 %v33
  %1636 = vmatprep.subr.mxu0 0.0
  %1637 = vmatpush1.msra.mxu0 %v34
  %1638 = vmatprep.subr.mxu0 0.0
  %1639 = vmatpush1.msra.mxu0 %v35
  %1640 = vmatprep.subr.mxu0 0.0
  %1641 = vmatpush1.msra.mxu0 %v36
  %1642 = vmatprep.subr.mxu0 0.0
  %1643 = vmatpush1.msra.mxu0 %v37
  %1644 = vmatprep.subr.mxu0 0.0
  %1645 = vmatpush1.msra.mxu0 %v38
  %1646 = vmatprep.subr.mxu0 0.0
  %1647 = vmatpush1.msra.mxu0 %v39
  %1648 = vmatprep.subr.mxu0 0.0
  %1649 = vmatpush1.msra.mxu0 %v40
  %1650 = vmatprep.subr.mxu0 0.0
  %1651 = vmatpush1.msra.mxu0 %v41
  %1652 = vmatprep.subr.mxu0 0.0
  %1653 = vmatpush1.msra.mxu0 %v42
  %1654 = vmatprep.subr.mxu0 0.0
  %1655 = vmatpush1.msra.mxu0 %v43
  %1656 = vmatprep.subr.mxu0 0.0
  %1657 = vmatpush1.msra.mxu0 %v44
  %1658 = vmatprep.subr.mxu0 0.0
  %1659 = vmatpush1.msra.mxu0 %v45
  %1660 = vmatprep.subr.mxu0 0.0
  %1661 = vmatpush1.msra.mxu0 %v46
  %1662 = vmatprep.subr.mxu0 0.0
  %1663 = vmatpush1.msra.mxu0 %v47
  %1664 = vmatprep.subr.mxu0 0.0
  %1665 = vmatpush1.msra.mxu0 %v48
  %1666 = vmatprep.subr.mxu0 0.0
  %1667 = vmatpush1.msra.mxu0 %v49
  %1668 = vmatprep.subr.mxu0 0.0
  %1669 = vmatpush1.msra.mxu0 %v50
  %1670 = vmatprep.subr.mxu0 0.0
  %1671 = vmatpush1.msra.mxu0 %v51
  %1672 = vmatprep.subr.mxu0 0.0
  %1673 = vmatpush1.msra.mxu0 %v52
  %1674 = vmatprep.subr.mxu0 0.0
  %1675 = vmatpush1.msra.mxu0 %v53
  %1676 = vmatprep.subr.mxu0 0.0
  %1677 = vmatpush1.msra.mxu0 %v54
  %1678 = vmatprep.subr.mxu0 0.0
  %1679 = vmatpush1.msra.mxu0 %v55
  %1680 = vmatprep.subr.mxu0 0.0
  %1681 = vmatpush1.msra.mxu0 %v56
  %1682 = vmatprep.subr.mxu0 0.0
  %1683 = vmatpush1.msra.mxu0 %v57
  %1684 = vmatprep.subr.mxu0 0.0
  %1685 = vmatpush1.msra.mxu0 %v58
  %1686 = vmatprep.subr.mxu0 0.0
  %1687 = vmatpush1.msra.mxu0 %v59
  %1688 = vmatprep.subr.mxu0 0.0
  %1689 = vmatpush1.msra.mxu0 %v60
  %1690 = vmatprep.mubr.f32.mxu0 %v1470
  %1691 = vmatmul.mubr.f32.gmra.mrb[0].mxu0 %v1463
  %v1692 = vpop.f32.mrb[0].mxu0
  %v1693 = vadd.f32 0.0, %v1692
  %v1694 = vpop.f32.mrb[0].mxu0
  %1695 = vdwg.mxu0
  %1696 = vmatprep.subr.mxu0 0.0
  %1697 = vmatpush1.msra.mxu0 %v61
  %1698 = vmatprep.subr.mxu0 0.0
  %1699 = vmatpush1.msra.mxu0 %v62
  %1700 = vmatprep.subr.mxu0 0.0
  %1701 = vmatpush1.msra.mxu0 %v63
  %1702 = vmatprep.subr.mxu0 0.0
  %1703 = vmatpush1.msra.mxu0 %v64
  %1704 = vmatprep.subr.mxu0 0.0
  %1705 = vmatpush1.msra.mxu0 %v65
  %1706 = vmatprep.subr.mxu0 0.0
  %1707 = vmatpush1.msra.mxu0 %v66
  %1708 = vmatprep.subr.mxu0 0.0
  %1709 = vmatpush1.msra.mxu0 %v67
  %1710 = vmatprep.subr.mxu0 0.0
  %1711 = vmatpush1.msra.mxu0 %v68
  %1712 = vmatprep.subr.mxu0 0.0
  %1713 = vmatpush1.msra.mxu0 0.0
  %1714 = vmatprep.subr.mxu0 0.0
  %1715 = vmatpush1.msra.mxu0 0.0
  %1716 = vmatprep.subr.mxu0 0.0
  %1717 = vmatpush1.msra.mxu0 0.0
  %1718 = vmatprep.subr.mxu0 0.0
  %1719 = vmatpush1.msra.mxu0 0.0
  %1720 = vmatprep.subr.mxu0 0.0
  %1721 = vmatpush1.msra.mxu0 0.0
  %1722 = vmatprep.subr.mxu0 0.0
  %1723 = vmatpush1.msra.mxu0 0.0
  %1724 = vmatprep.subr.mxu0 0.0
  %1725 = vmatpush1.msra.mxu0 0.0
  %1726 = vmatprep.subr.mxu0 0.0
  %1727 = vmatpush1.msra.mxu0 0.0
  %1728 = vmatprep.subr.mxu0 0.0
  %1729 = vmatpush1.msra.mxu0 0.0
  %1730 = vmatprep.subr.mxu0 0.0
  %1731 = vmatpush1.msra.mxu0 0.0
  %1732 = vmatprep.subr.mxu0 0.0
  %1733 = vmatpush1.msra.mxu0 0.0
  %1734 = vmatprep.subr.mxu0 0.0
  %1735 = vmatpush1.msra.mxu0 0.0
  %1736 = vmatprep.subr.mxu0 0.0
  %1737 = vmatpush1.msra.mxu0 0.0
  %1738 = vmatprep.subr.mxu0 0.0
  %1739 = vmatpush1.msra.mxu0 0.0
  %1740 = vmatprep.subr.mxu0 0.0
  %1741 = vmatpush1.msra.mxu0 0.0
  %1742 = vmatprep.subr.mxu0 0.0
  %1743 = vmatpush1.msra.mxu0 0.0
  %1744 = vmatprep.subr.mxu0 0.0
  %1745 = vmatpush1.msra.mxu0 0.0
  %1746 = vmatprep.subr.mxu0 0.0
  %1747 = vmatpush1.msra.mxu0 0.0
  %1748 = vmatprep.subr.mxu0 0.0
  %1749 = vmatpush1.msra.mxu0 0.0
  %1750 = vmatprep.subr.mxu0 0.0
  %1751 = vmatpush1.msra.mxu0 0.0
  %1752 = vmatprep.subr.mxu0 0.0
  %1753 = vmatpush1.msra.mxu0 0.0
  %1754 = vmatprep.subr.mxu0 0.0
  %1755 = vmatpush1.msra.mxu0 0.0
  %1756 = vmatprep.subr.mxu0 0.0
  %1757 = vmatpush1.msra.mxu0 0.0
  %1758 = vmatprep.subr.mxu0 0.0
  %1759 = vmatpush1.msra.mxu0 0.0
  %1760 = vmatprep.mubr.f32.mxu0 0.0
  %1761 = vmatmul.mubr.f32.gmra.mrb[0].mxu0 %v1624
  %v1762 = vpop.f32.mrb[0].mxu0
  %v1763 = vadd.f32 %v1693, %v1762
  %v1764 = vpop.f32.mrb[0].mxu0
  %1765 = vdwg.mxu0
  %v1766 = vmul.f32 %v1620, 0.003125
  %v1767 = vmul.f32 %v1763, 0.003125
  %v1768 = vmul.f32 %v1766, %v1766
  %v1769 = vsub.f32 %v1767, %v1768
  %v1770 = vmax.f32 %v1769, 0.0
  %s1771 = scalar_lea.vmem %s4, 1
  %v1772 = vld [vmem:[%s1771] sm:$0x1]
  %v1773 = vadd.f32 %v1770, 1e-05
  %v1774 = vrsqrt.pop %v1773
  %v1775 = vmul.f32 %v1772, %v1774
  %s1776 = scalar_lea.vmem %s5, 1
  %v1777 = vld [vmem:[%s1776] sm:$0x1]
  %v1778 = vmul.f32 %v1766, %v1775
  %v1779 = vsub.f32 %v1777, %v1778
  %v1781 = vsel %vm649, %v1775, 0
  %1783 = vmatprep.subr.mxu0 %v70
  %1784 = vmatpush1.msra.mxu0 %v69
  %1785 = vmatprep.subr.mxu0 %v73
  %1786 = vmatpush1.msra.mxu0 %v72
  %1787 = vmatprep.subr.mxu0 0.0
  %1788 = vmatpush1.msra.mxu0 0.0
  %1789 = vmatprep.subr.mxu0 0.0
  %1790 = vmatpush1.msra.mxu0 0.0
  %1791 = vmatprep.subr.mxu0 0.0
  %1792 = vmatpush1.msra.mxu0 0.0
  %1793 = vmatprep.subr.mxu0 0.0
  %1794 = vmatpush1.msra.mxu0 0.0
  %1795 = vmatprep.subr.mxu0 0.0
  %1796 = vmatpush1.msra.mxu0 0.0
  %1797 = vmatprep.subr.mxu0 0.0
  %1798 = vmatpush1.msra.mxu0 0.0
  %1799 = vmatprep.subr.mxu0 0.0
  %1800 = vmatpush1.msra.mxu0 0.0
  %1801 = vmatprep.subr.mxu0 0.0
  %1802 = vmatpush1.msra.mxu0 0.0
  %1803 = vmatprep.subr.mxu0 0.0
  %1804 = vmatpush1.msra.mxu0 0.0
  %1805 = vmatprep.subr.mxu0 0.0
  %1806 = vmatpush1.msra.mxu0 0.0
  %1807 = vmatprep.subr.mxu0 0.0
  %1808 = vmatpush1.msra.mxu0 0.0
  %1809 = vmatprep.subr.mxu0 0.0
  %1810 = vmatpush1.msra.mxu0 0.0
  %1811 = vmatprep.subr.mxu0 0.0
  %1812 = vmatpush1.msra.mxu0 0.0
  %1813 = vmatprep.subr.mxu0 0.0
  %1814 = vmatpush1.msra.mxu0 0.0
  %1815 = vmatprep.subr.mxu0 0.0
  %1816 = vmatpush1.msra.mxu0 0.0
  %1817 = vmatprep.subr.mxu0 0.0
  %1818 = vmatpush1.msra.mxu0 0.0
  %1819 = vmatprep.subr.mxu0 0.0
  %1820 = vmatpush1.msra.mxu0 0.0
  %1821 = vmatprep.subr.mxu0 0.0
  %1822 = vmatpush1.msra.mxu0 0.0
  %1823 = vmatprep.subr.mxu0 0.0
  %1824 = vmatpush1.msra.mxu0 0.0
  %1825 = vmatprep.subr.mxu0 0.0
  %1826 = vmatpush1.msra.mxu0 0.0
  %1827 = vmatprep.subr.mxu0 0.0
  %1828 = vmatpush1.msra.mxu0 0.0
  %1829 = vmatprep.subr.mxu0 0.0
  %1830 = vmatpush1.msra.mxu0 0.0
  %1831 = vmatprep.subr.mxu0 0.0
  %1832 = vmatpush1.msra.mxu0 0.0
  %1833 = vmatprep.subr.mxu0 0.0
  %1834 = vmatpush1.msra.mxu0 0.0
  %1835 = vmatprep.subr.mxu0 0.0
  %1836 = vmatpush1.msra.mxu0 0.0
  %1837 = vmatprep.subr.mxu0 0.0
  %1838 = vmatpush1.msra.mxu0 0.0
  %1839 = vmatprep.subr.mxu0 0.0
  %1840 = vmatpush1.msra.mxu0 0.0
  %1841 = vmatprep.subr.mxu0 0.0
  %1842 = vmatpush1.msra.mxu0 0.0
  %1843 = vmatprep.subr.mxu0 0.0
  %1844 = vmatpush1.msra.mxu0 0.0
  %1845 = vmatprep.subr.mxu0 0.0
  %1846 = vmatpush1.msra.mxu0 0.0
  %1847 = vmatprep.mubr.f32.mxu0 0.0
  %1848 = vmatmul.mubr.f32.gmra.mrb[0].mxu0 %v1781
  %v1849 = vpop.f32.mrb[0].mxu0
  %v1850 = vadd.f32 0.0, %v1849
  %v1851 = vpop.f32.mrb[0].mxu0
  %v1852 = vadd.f32 0.0, %v1851
  %1853 = vdwg.mxu0
  %1854 = vmatprep.subr.mxu0 0.0
  %1855 = vmatpush1.msra.mxu0 %v71
  %1856 = vmatprep.subr.mxu0 0.0
  %1857 = vmatpush1.msra.mxu0 %v74
  %1858 = vmatprep.subr.mxu0 0.0
  %1859 = vmatpush1.msra.mxu0 0.0
  %1860 = vmatprep.subr.mxu0 0.0
  %1861 = vmatpush1.msra.mxu0 0.0
  %1862 = vmatprep.subr.mxu0 0.0
  %1863 = vmatpush1.msra.mxu0 0.0
  %1864 = vmatprep.subr.mxu0 0.0
  %1865 = vmatpush1.msra.mxu0 0.0
  %1866 = vmatprep.subr.mxu0 0.0
  %1867 = vmatpush1.msra.mxu0 0.0
  %1868 = vmatprep.subr.mxu0 0.0
  %1869 = vmatpush1.msra.mxu0 0.0
  %1870 = vmatprep.subr.mxu0 0.0
  %1871 = vmatpush1.msra.mxu0 0.0
  %1872 = vmatprep.subr.mxu0 0.0
  %1873 = vmatpush1.msra.mxu0 0.0
  %1874 = vmatprep.subr.mxu0 0.0
  %1875 = vmatpush1.msra.mxu0 0.0
  %1876 = vmatprep.subr.mxu0 0.0
  %1877 = vmatpush1.msra.mxu0 0.0
  %1878 = vmatprep.subr.mxu0 0.0
  %1879 = vmatpush1.msra.mxu0 0.0
  %1880 = vmatprep.subr.mxu0 0.0
  %1881 = vmatpush1.msra.mxu0 0.0
  %1882 = vmatprep.subr.mxu0 0.0
  %1883 = vmatpush1.msra.mxu0 0.0
  %1884 = vmatprep.subr.mxu0 0.0
  %1885 = vmatpush1.msra.mxu0 0.0
  %1886 = vmatprep.subr.mxu0 0.0
  %1887 = vmatpush1.msra.mxu0 0.0
  %1888 = vmatprep.subr.mxu0 0.0
  %1889 = vmatpush1.msra.mxu0 0.0
  %1890 = vmatprep.subr.mxu0 0.0
  %1891 = vmatpush1.msra.mxu0 0.0
  %1892 = vmatprep.subr.mxu0 0.0
  %1893 = vmatpush1.msra.mxu0 0.0
  %1894 = vmatprep.subr.mxu0 0.0
  %1895 = vmatpush1.msra.mxu0 0.0
  %1896 = vmatprep.subr.mxu0 0.0
  %1897 = vmatpush1.msra.mxu0 0.0
  %1898 = vmatprep.subr.mxu0 0.0
  %1899 = vmatpush1.msra.mxu0 0.0
  %1900 = vmatprep.subr.mxu0 0.0
  %1901 = vmatpush1.msra.mxu0 0.0
  %1902 = vmatprep.subr.mxu0 0.0
  %1903 = vmatpush1.msra.mxu0 0.0
  %1904 = vmatprep.subr.mxu0 0.0
  %1905 = vmatpush1.msra.mxu0 0.0
  %1906 = vmatprep.subr.mxu0 0.0
  %1907 = vmatpush1.msra.mxu0 0.0
  %1908 = vmatprep.subr.mxu0 0.0
  %1909 = vmatpush1.msra.mxu0 0.0
  %1910 = vmatprep.subr.mxu0 0.0
  %1911 = vmatpush1.msra.mxu0 0.0
  %1912 = vmatprep.subr.mxu0 0.0
  %1913 = vmatpush1.msra.mxu0 0.0
  %1914 = vmatprep.subr.mxu0 0.0
  %1915 = vmatpush1.msra.mxu0 0.0
  %1916 = vmatprep.subr.mxu0 0.0
  %1917 = vmatpush1.msra.mxu0 0.0
  %1918 = vmatprep.mubr.f32.mxu0 0.0
  %1919 = vmatmul.mubr.f32.gmra.mrb[0].mxu0 %v1781
  %v1920 = vpop.f32.mrb[0].mxu0
  %v1921 = vadd.f32 0.0, %v1920
  %v1922 = vpop.f32.mrb[0].mxu0
  %1923 = vdwg.mxu0
  %v1925 = vsel %vm649, %v1779, 0
  %1927 = vmatprep.subr.mxu0 %v70
  %1928 = vmatpush1.msra.mxu0 %v69
  %1929 = vmatprep.subr.mxu0 %v73
  %1930 = vmatpush1.msra.mxu0 %v72
  %1931 = vmatprep.subr.mxu0 0.0
  %1932 = vmatpush1.msra.mxu0 0.0
  %1933 = vmatprep.subr.mxu0 0.0
  %1934 = vmatpush1.msra.mxu0 0.0
  %1935 = vmatprep.subr.mxu0 0.0
  %1936 = vmatpush1.msra.mxu0 0.0
  %1937 = vmatprep.subr.mxu0 0.0
  %1938 = vmatpush1.msra.mxu0 0.0
  %1939 = vmatprep.subr.mxu0 0.0
  %1940 = vmatpush1.msra.mxu0 0.0
  %1941 = vmatprep.subr.mxu0 0.0
  %1942 = vmatpush1.msra.mxu0 0.0
  %1943 = vmatprep.subr.mxu0 0.0
  %1944 = vmatpush1.msra.mxu0 0.0
  %1945 = vmatprep.subr.mxu0 0.0
  %1946 = vmatpush1.msra.mxu0 0.0
  %1947 = vmatprep.subr.mxu0 0.0
  %1948 = vmatpush1.msra.mxu0 0.0
  %1949 = vmatprep.subr.mxu0 0.0
  %1950 = vmatpush1.msra.mxu0 0.0
  %1951 = vmatprep.subr.mxu0 0.0
  %1952 = vmatpush1.msra.mxu0 0.0
  %1953 = vmatprep.subr.mxu0 0.0
  %1954 = vmatpush1.msra.mxu0 0.0
  %1955 = vmatprep.subr.mxu0 0.0
  %1956 = vmatpush1.msra.mxu0 0.0
  %1957 = vmatprep.subr.mxu0 0.0
  %1958 = vmatpush1.msra.mxu0 0.0
  %1959 = vmatprep.subr.mxu0 0.0
  %1960 = vmatpush1.msra.mxu0 0.0
  %1961 = vmatprep.subr.mxu0 0.0
  %1962 = vmatpush1.msra.mxu0 0.0
  %1963 = vmatprep.subr.mxu0 0.0
  %1964 = vmatpush1.msra.mxu0 0.0
  %1965 = vmatprep.subr.mxu0 0.0
  %1966 = vmatpush1.msra.mxu0 0.0
  %1967 = vmatprep.subr.mxu0 0.0
  %1968 = vmatpush1.msra.mxu0 0.0
  %1969 = vmatprep.subr.mxu0 0.0
  %1970 = vmatpush1.msra.mxu0 0.0
  %1971 = vmatprep.subr.mxu0 0.0
  %1972 = vmatpush1.msra.mxu0 0.0
  %1973 = vmatprep.subr.mxu0 0.0
  %1974 = vmatpush1.msra.mxu0 0.0
  %1975 = vmatprep.subr.mxu0 0.0
  %1976 = vmatpush1.msra.mxu0 0.0
  %1977 = vmatprep.subr.mxu0 0.0
  %1978 = vmatpush1.msra.mxu0 0.0
  %1979 = vmatprep.subr.mxu0 0.0
  %1980 = vmatpush1.msra.mxu0 0.0
  %1981 = vmatprep.subr.mxu0 0.0
  %1982 = vmatpush1.msra.mxu0 0.0
  %1983 = vmatprep.subr.mxu0 0.0
  %1984 = vmatpush1.msra.mxu0 0.0
  %1985 = vmatprep.subr.mxu0 0.0
  %1986 = vmatpush1.msra.mxu0 0.0
  %1987 = vmatprep.subr.mxu0 0.0
  %1988 = vmatpush1.msra.mxu0 0.0
  %1989 = vmatprep.subr.mxu0 0.0
  %1990 = vmatpush1.msra.mxu0 0.0
  %1991 = vmatprep.mubr.f32.mxu0 0.0
  %1992 = vmatmul.mubr.f32.gmra.mrb[0].mxu0 %v1925
  %v1993 = vpop.f32.mrb[0].mxu0
  %v1994 = vadd.f32 0.0, %v1993
  %v1995 = vpop.f32.mrb[0].mxu0
  %v1996 = vadd.f32 0.0, %v1995
  %1997 = vdwg.mxu0
  %1998 = vmatprep.subr.mxu0 0.0
  %1999 = vmatpush1.msra.mxu0 %v71
  %2000 = vmatprep.subr.mxu0 0.0
  %2001 = vmatpush1.msra.mxu0 %v74
  %2002 = vmatprep.subr.mxu0 0.0
  %2003 = vmatpush1.msra.mxu0 0.0
  %2004 = vmatprep.subr.mxu0 0.0
  %2005 = vmatpush1.msra.mxu0 0.0
  %2006 = vmatprep.subr.mxu0 0.0
  %2007 = vmatpush1.msra.mxu0 0.0
  %2008 = vmatprep.subr.mxu0 0.0
  %2009 = vmatpush1.msra.mxu0 0.0
  %2010 = vmatprep.subr.mxu0 0.0
  %2011 = vmatpush1.msra.mxu0 0.0
  %2012 = vmatprep.subr.mxu0 0.0
  %2013 = vmatpush1.msra.mxu0 0.0
  %2014 = vmatprep.subr.mxu0 0.0
  %2015 = vmatpush1.msra.mxu0 0.0
  %2016 = vmatprep.subr.mxu0 0.0
  %2017 = vmatpush1.msra.mxu0 0.0
  %2018 = vmatprep.subr.mxu0 0.0
  %2019 = vmatpush1.msra.mxu0 0.0
  %2020 = vmatprep.subr.mxu0 0.0
  %2021 = vmatpush1.msra.mxu0 0.0
  %2022 = vmatprep.subr.mxu0 0.0
  %2023 = vmatpush1.msra.mxu0 0.0
  %2024 = vmatprep.subr.mxu0 0.0
  %2025 = vmatpush1.msra.mxu0 0.0
  %2026 = vmatprep.subr.mxu0 0.0
  %2027 = vmatpush1.msra.mxu0 0.0
  %2028 = vmatprep.subr.mxu0 0.0
  %2029 = vmatpush1.msra.mxu0 0.0
  %2030 = vmatprep.subr.mxu0 0.0
  %2031 = vmatpush1.msra.mxu0 0.0
  %2032 = vmatprep.subr.mxu0 0.0
  %2033 = vmatpush1.msra.mxu0 0.0
  %2034 = vmatprep.subr.mxu0 0.0
  %2035 = vmatpush1.msra.mxu0 0.0
  %2036 = vmatprep.subr.mxu0 0.0
  %2037 = vmatpush1.msra.mxu0 0.0
  %2038 = vmatprep.subr.mxu0 0.0
  %2039 = vmatpush1.msra.mxu0 0.0
  %2040 = vmatprep.subr.mxu0 0.0
  %2041 = vmatpush1.msra.mxu0 0.0
  %2042 = vmatprep.subr.mxu0 0.0
  %2043 = vmatpush1.msra.mxu0 0.0
  %2044 = vmatprep.subr.mxu0 0.0
  %2045 = vmatpush1.msra.mxu0 0.0
  %2046 = vmatprep.subr.mxu0 0.0
  %2047 = vmatpush1.msra.mxu0 0.0
  %2048 = vmatprep.subr.mxu0 0.0
  %2049 = vmatpush1.msra.mxu0 0.0
  %2050 = vmatprep.subr.mxu0 0.0
  %2051 = vmatpush1.msra.mxu0 0.0
  %2052 = vmatprep.subr.mxu0 0.0
  %2053 = vmatpush1.msra.mxu0 0.0
  %2054 = vmatprep.subr.mxu0 0.0
  %2055 = vmatpush1.msra.mxu0 0.0
  %2056 = vmatprep.subr.mxu0 0.0
  %2057 = vmatpush1.msra.mxu0 0.0
  %2058 = vmatprep.subr.mxu0 0.0
  %2059 = vmatpush1.msra.mxu0 0.0
  %2060 = vmatprep.subr.mxu0 0.0
  %2061 = vmatpush1.msra.mxu0 0.0
  %2062 = vmatprep.mubr.f32.mxu0 0.0
  %2063 = vmatmul.mubr.f32.gmra.mrb[0].mxu0 %v1925
  %v2064 = vpop.f32.mrb[0].mxu0
  %v2065 = vadd.f32 0.0, %v2064
  %v2066 = vpop.f32.mrb[0].mxu0
  %2067 = vdwg.mxu0
  %v2068 = vlaneseq
  %v2069 = vshrl.u32 %v2068, 7
  %v2070 = vsub.s32 0, %v2069
  %v2071 = vrot.slane %v1850, %v2070
  %v2072 = vlaneseq
  %v2073 = vshrl.u32 %v2072, 7
  %v2074 = vsub.s32 0, %v2073
  %v2075 = vrot.slane %v1852, %v2074
  %v2076 = vlaneseq
  %v2077 = vshrl.u32 %v2076, 7
  %v2078 = vsub.s32 0, %v2077
  %v2079 = vrot.slane %v1921, %v2078
  %v2080 = vmul.f32 %v1268, %v2071
  %v2081 = vmul.f32 %v1270, %v2075
  %v2082 = vmul.f32 %v1420, %v2079
  %v2083 = vmul.f32 %v1274, %v2071
  %v2084 = vmul.f32 %v1276, %v2075
  %v2085 = vmul.f32 %v1425, %v2079
  %v2086 = vlaneseq
  %v2087 = vshrl.u32 %v2086, 7
  %v2088 = vsub.s32 0, %v2087
  %v2089 = vrot.slane %v1994, %v2088
  %v2090 = vlaneseq
  %v2091 = vshrl.u32 %v2090, 7
  %v2092 = vsub.s32 0, %v2091
  %v2093 = vrot.slane %v1996, %v2092
  %v2094 = vlaneseq
  %v2095 = vshrl.u32 %v2094, 7
  %v2096 = vsub.s32 0, %v2095
  %v2097 = vrot.slane %v2065, %v2096
  %v2098 = vadd.f32 %v2080, %v2089
  %v2099 = vadd.f32 %v2081, %v2093
  %v2100 = vadd.f32 %v2082, %v2097
  %v2101 = vadd.f32 %v2083, %v2089
  %v2102 = vadd.f32 %v2084, %v2093
  %v2103 = vadd.f32 %v2085, %v2097
  %v2104 = vmax.f32 %v2098, 0.0
  %v2105 = vmax.f32 %v2099, 0.0
  %v2106 = vmax.f32 %v2100, 0.0
  %v2107 = vmax.f32 %v2101, 0.0
  %v2108 = vmax.f32 %v2102, 0.0
  %v2109 = vmax.f32 %v2103, 0.0
  %s2110 = scalar_lea.vmem %s2, 960
  %v2111 = vld [vmem:[%s2110] sm:$0xff]
  %v2112 = vld [vmem:[%s2110 + $0x8] sm:$0xff]
  %v2113 = vld [vmem:[%s2110 + $0x10] sm:$0xff]
  %v2114 = vld [vmem:[%s2110 + $0x18] sm:$0xff]
  %v2115 = vld [vmem:[%s2110 + $0x20] sm:$0xff]
  %v2116 = vld [vmem:[%s2110 + $0x28] sm:$0xff]
  %v2117 = vld [vmem:[%s2110 + $0x30] sm:$0xff]
  %v2118 = vld [vmem:[%s2110 + $0x38] sm:$0xff]
  %v2119 = vld [vmem:[%s2110 + $0x40] sm:$0xff]
  %v2120 = vld [vmem:[%s2110 + $0x48] sm:$0xff]
  %v2121 = vld [vmem:[%s2110 + $0x50] sm:$0xff]
  %v2122 = vld [vmem:[%s2110 + $0x58] sm:$0xff]
  %v2123 = vld [vmem:[%s2110 + $0x60] sm:$0xff]
  %v2124 = vld [vmem:[%s2110 + $0x68] sm:$0xff]
  %v2125 = vld [vmem:[%s2110 + $0x70] sm:$0xff]
  %v2126 = vld [vmem:[%s2110 + $0x78] sm:$0xff]
  %v2127 = vld [vmem:[%s2110 + $0x80] sm:$0xff]
  %v2128 = vld [vmem:[%s2110 + $0x88] sm:$0xff]
  %v2129 = vld [vmem:[%s2110 + $0x90] sm:$0xff]
  %v2130 = vld [vmem:[%s2110 + $0x98] sm:$0xff]
  %v2131 = vld [vmem:[%s2110 + $0xa0] sm:$0xff]
  %v2132 = vld [vmem:[%s2110 + $0xa8] sm:$0xff]
  %v2133 = vld [vmem:[%s2110 + $0xb0] sm:$0xff]
  %v2134 = vld [vmem:[%s2110 + $0xb8] sm:$0xff]
  %v2135 = vld [vmem:[%s2110 + $0xc0] sm:$0xff]
  %v2136 = vld [vmem:[%s2110 + $0xc8] sm:$0xff]
  %v2137 = vld [vmem:[%s2110 + $0xd0] sm:$0xff]
  %v2138 = vld [vmem:[%s2110 + $0xd8] sm:$0xff]
  %v2139 = vld [vmem:[%s2110 + $0xe0] sm:$0xff]
  %v2140 = vld [vmem:[%s2110 + $0xe8] sm:$0xff]
  %v2141 = vld [vmem:[%s2110 + $0xf0] sm:$0xff]
  %v2142 = vld [vmem:[%s2110 + $0xf8] sm:$0xff]
  %v2143 = vld [vmem:[%s2110 + $0x100] sm:$0xff]
  %v2144 = vld [vmem:[%s2110 + $0x108] sm:$0xff]
  %v2145 = vld [vmem:[%s2110 + $0x110] sm:$0xff]
  %v2146 = vld [vmem:[%s2110 + $0x118] sm:$0xff]
  %v2147 = vld [vmem:[%s2110 + $0x120] sm:$0xff]
  %v2148 = vld [vmem:[%s2110 + $0x128] sm:$0xff]
  %v2149 = vld [vmem:[%s2110 + $0x130] sm:$0xff]
  %v2150 = vld [vmem:[%s2110 + $0x138] sm:$0xff]
  %v2151 = vld [vmem:[%s2110 + $0x140] sm:$0xff]
  %v2152 = vld [vmem:[%s2110 + $0x148] sm:$0xff]
  %v2153 = vld [vmem:[%s2110 + $0x150] sm:$0xff]
  %v2154 = vld [vmem:[%s2110 + $0x158] sm:$0xff]
  %v2155 = vld [vmem:[%s2110 + $0x160] sm:$0xff]
  %v2156 = vld [vmem:[%s2110 + $0x168] sm:$0xff]
  %v2157 = vld [vmem:[%s2110 + $0x170] sm:$0xff]
  %v2158 = vld [vmem:[%s2110 + $0x178] sm:$0xff]
  %v2159 = vld [vmem:[%s2110 + $0x180] sm:$0xff]
  %v2160 = vld [vmem:[%s2110 + $0x188] sm:$0xff]
  %v2161 = vld [vmem:[%s2110 + $0x190] sm:$0xff]
  %v2162 = vld [vmem:[%s2110 + $0x198] sm:$0xff]
  %v2163 = vld [vmem:[%s2110 + $0x1a0] sm:$0xff]
  %v2164 = vld [vmem:[%s2110 + $0x1a8] sm:$0xff]
  %v2165 = vld [vmem:[%s2110 + $0x1b0] sm:$0xff]
  %v2166 = vld [vmem:[%s2110 + $0x1b8] sm:$0xff]
  %v2167 = vld [vmem:[%s2110 + $0x1c0] sm:$0xff]
  %v2168 = vld [vmem:[%s2110 + $0x1c8] sm:$0xff]
  %v2169 = vld [vmem:[%s2110 + $0x1d0] sm:$0xff]
  %v2170 = vld [vmem:[%s2110 + $0x1d8] sm:$0xff]
  %v2171 = vld [vmem:[%s2110 + $0x1e0] sm:$0xff]
  %v2172 = vld [vmem:[%s2110 + $0x1e8] sm:$0xff]
  %v2173 = vld [vmem:[%s2110 + $0x1f0] sm:$0xff]
  %v2174 = vld [vmem:[%s2110 + $0x1f8] sm:$0xff]
  %v2175 = vld [vmem:[%s2110 + $0x200] sm:$0xff]
  %v2176 = vld [vmem:[%s2110 + $0x208] sm:$0xff]
  %v2177 = vld [vmem:[%s2110 + $0x210] sm:$0xff]
  %v2178 = vld [vmem:[%s2110 + $0x218] sm:$0xff]
  %v2179 = vld [vmem:[%s2110 + $0x220] sm:$0xff]
  %v2180 = vld [vmem:[%s2110 + $0x228] sm:$0xff]
  %v2181 = vld [vmem:[%s2110 + $0x230] sm:$0xff]
  %v2182 = vld [vmem:[%s2110 + $0x238] sm:$0xff]
  %v2183 = vld [vmem:[%s2110 + $0x240] sm:$0xff]
  %v2184 = vld [vmem:[%s2110 + $0x248] sm:$0xff]
  %v2185 = vld [vmem:[%s2110 + $0x250] sm:$0xff]
  %v2186 = vld [vmem:[%s2110 + $0x258] sm:$0xff]
  %v2187 = vld [vmem:[%s2110 + $0x260] sm:$0xff]
  %v2188 = vld [vmem:[%s2110 + $0x268] sm:$0xff]
  %v2189 = vld [vmem:[%s2110 + $0x270] sm:$0xff]
  %v2190 = vld [vmem:[%s2110 + $0x278] sm:$0xff]
  %v2191 = vld [vmem:[%s2110 + $0x280] sm:$0xff]
  %v2192 = vld [vmem:[%s2110 + $0x288] sm:$0xff]
  %v2193 = vld [vmem:[%s2110 + $0x290] sm:$0xff]
  %v2194 = vld [vmem:[%s2110 + $0x298] sm:$0xff]
  %v2195 = vld [vmem:[%s2110 + $0x2a0] sm:$0xff]
  %v2196 = vld [vmem:[%s2110 + $0x2a8] sm:$0xff]
  %v2197 = vld [vmem:[%s2110 + $0x2b0] sm:$0xff]
  %v2198 = vld [vmem:[%s2110 + $0x2b8] sm:$0xff]
  %v2199 = vld [vmem:[%s2110 + $0x2c0] sm:$0xff]
  %v2200 = vld [vmem:[%s2110 + $0x2c8] sm:$0xff]
  %v2201 = vld [vmem:[%s2110 + $0x2d0] sm:$0xff]
  %v2202 = vld [vmem:[%s2110 + $0x2d8] sm:$0xff]
  %v2203 = vld [vmem:[%s2110 + $0x2e0] sm:$0xff]
  %v2204 = vld [vmem:[%s2110 + $0x2e8] sm:$0xff]
  %v2205 = vld [vmem:[%s2110 + $0x2f0] sm:$0xff]
  %v2206 = vld [vmem:[%s2110 + $0x2f8] sm:$0xff]
  %v2207 = vld [vmem:[%s2110 + $0x300] sm:$0xff]
  %v2208 = vld [vmem:[%s2110 + $0x308] sm:$0xff]
  %v2209 = vld [vmem:[%s2110 + $0x310] sm:$0xff]
  %v2210 = vld [vmem:[%s2110 + $0x318] sm:$0xff]
  %v2211 = vld [vmem:[%s2110 + $0x320] sm:$0xff]
  %v2212 = vld [vmem:[%s2110 + $0x328] sm:$0xff]
  %v2213 = vld [vmem:[%s2110 + $0x330] sm:$0xff]
  %v2214 = vld [vmem:[%s2110 + $0x338] sm:$0xff]
  %v2215 = vld [vmem:[%s2110 + $0x340] sm:$0xff]
  %v2216 = vld [vmem:[%s2110 + $0x348] sm:$0xff]
  %v2217 = vld [vmem:[%s2110 + $0x350] sm:$0xff]
  %v2218 = vld [vmem:[%s2110 + $0x358] sm:$0xff]
  %v2219 = vld [vmem:[%s2110 + $0x360] sm:$0xff]
  %v2220 = vld [vmem:[%s2110 + $0x368] sm:$0xff]
  %v2221 = vld [vmem:[%s2110 + $0x370] sm:$0xff]
  %v2222 = vld [vmem:[%s2110 + $0x378] sm:$0xff]
  %v2223 = vld [vmem:[%s2110 + $0x380] sm:$0xff]
  %v2224 = vld [vmem:[%s2110 + $0x388] sm:$0xff]
  %v2225 = vld [vmem:[%s2110 + $0x390] sm:$0xff]
  %v2226 = vld [vmem:[%s2110 + $0x398] sm:$0xff]
  %v2227 = vld [vmem:[%s2110 + $0x3a0] sm:$0xff]
  %v2228 = vld [vmem:[%s2110 + $0x3a8] sm:$0xff]
  %v2229 = vld [vmem:[%s2110 + $0x3b0] sm:$0xff]
  %v2230 = vld [vmem:[%s2110 + $0x3b8] sm:$0xff]
  %s2231 = scalar_lea.vmem %s3, 6
  %v2232 = vld [vmem:[%s2231] sm:$0x7]
  %v2234 = vlaneseq
  %v2235 = vshrl.u32 %v2234, 7
  %v2236 = vsub.s32 0, %v2235
  %v2237 = vrot.slane %v2232, %v2236
  %v2238 = vlaneseq
  %v2239 = vshrl.u32 %v2238, 7
  %v2240 = vsub.s32 1, %v2239
  %v2241 = vrot.slane %v2232, %v2240
  %v2242 = vlaneseq
  %v2243 = vshrl.u32 %v2242, 7
  %v2244 = vsub.s32 2, %v2243
  %v2245 = vrot.slane %v2232, %v2244
  %v2250 = vsel %vm312, %v2106, 0
  %v2253 = vsel %vm312, %v2109, 0
  %2255 = vmatprep.subr.mxu0 %v2112
  %2256 = vmatpush1.msra.mxu0 %v2111
  %2257 = vmatprep.subr.mxu0 %v2115
  %2258 = vmatpush1.msra.mxu0 %v2114
  %2259 = vmatprep.subr.mxu0 %v2118
  %2260 = vmatpush1.msra.mxu0 %v2117
  %2261 = vmatprep.subr.mxu0 %v2121
  %2262 = vmatpush1.msra.mxu0 %v2120
  %2263 = vmatprep.subr.mxu0 %v2124
  %2264 = vmatpush1.msra.mxu0 %v2123
  %2265 = vmatprep.subr.mxu0 %v2127
  %2266 = vmatpush1.msra.mxu0 %v2126
  %2267 = vmatprep.subr.mxu0 %v2130
  %2268 = vmatpush1.msra.mxu0 %v2129
  %2269 = vmatprep.subr.mxu0 %v2133
  %2270 = vmatpush1.msra.mxu0 %v2132
  %2271 = vmatprep.subr.mxu0 %v2136
  %2272 = vmatpush1.msra.mxu0 %v2135
  %2273 = vmatprep.subr.mxu0 %v2139
  %2274 = vmatpush1.msra.mxu0 %v2138
  %2275 = vmatprep.subr.mxu0 %v2142
  %2276 = vmatpush1.msra.mxu0 %v2141
  %2277 = vmatprep.subr.mxu0 %v2145
  %2278 = vmatpush1.msra.mxu0 %v2144
  %2279 = vmatprep.subr.mxu0 %v2148
  %2280 = vmatpush1.msra.mxu0 %v2147
  %2281 = vmatprep.subr.mxu0 %v2151
  %2282 = vmatpush1.msra.mxu0 %v2150
  %2283 = vmatprep.subr.mxu0 %v2154
  %2284 = vmatpush1.msra.mxu0 %v2153
  %2285 = vmatprep.subr.mxu0 %v2157
  %2286 = vmatpush1.msra.mxu0 %v2156
  %2287 = vmatprep.subr.mxu0 %v2160
  %2288 = vmatpush1.msra.mxu0 %v2159
  %2289 = vmatprep.subr.mxu0 %v2163
  %2290 = vmatpush1.msra.mxu0 %v2162
  %2291 = vmatprep.subr.mxu0 %v2166
  %2292 = vmatpush1.msra.mxu0 %v2165
  %2293 = vmatprep.subr.mxu0 %v2169
  %2294 = vmatpush1.msra.mxu0 %v2168
  %2295 = vmatprep.subr.mxu0 %v2172
  %2296 = vmatpush1.msra.mxu0 %v2171
  %2297 = vmatprep.subr.mxu0 %v2175
  %2298 = vmatpush1.msra.mxu0 %v2174
  %2299 = vmatprep.subr.mxu0 %v2178
  %2300 = vmatpush1.msra.mxu0 %v2177
  %2301 = vmatprep.subr.mxu0 %v2181
  %2302 = vmatpush1.msra.mxu0 %v2180
  %2303 = vmatprep.subr.mxu0 %v2184
  %2304 = vmatpush1.msra.mxu0 %v2183
  %2305 = vmatprep.subr.mxu0 %v2187
  %2306 = vmatpush1.msra.mxu0 %v2186
  %2307 = vmatprep.subr.mxu0 %v2190
  %2308 = vmatpush1.msra.mxu0 %v2189
  %2309 = vmatprep.subr.mxu0 %v2193
  %2310 = vmatpush1.msra.mxu0 %v2192
  %2311 = vmatprep.subr.mxu0 %v2196
  %2312 = vmatpush1.msra.mxu0 %v2195
  %2313 = vmatprep.subr.mxu0 %v2199
  %2314 = vmatpush1.msra.mxu0 %v2198
  %2315 = vmatprep.subr.mxu0 %v2202
  %2316 = vmatpush1.msra.mxu0 %v2201
  %2317 = vmatprep.subr.mxu0 %v2205
  %2318 = vmatpush1.msra.mxu0 %v2204
  %2319 = vmatprep.mubr.f32.mxu0 %v2105
  %2320 = vmatmul.mubr.f32.gmra.mrb[0].mxu0 %v2104
  %v2321 = vpop.f32.mrb[0].mxu0
  %v2322 = vadd.f32 %v2237, %v2321
  %v2323 = vpop.f32.mrb[0].mxu0
  %v2324 = vadd.f32 %v2241, %v2323
  %2325 = vmatprep.mubr.f32.mxu0 %v2108
  %2326 = vmatmul.mubr.f32.gmra.mrb[0].mxu0 %v2107
  %v2327 = vpop.f32.mrb[0].mxu0
  %v2328 = vadd.f32 %v2237, %v2327
  %v2329 = vpop.f32.mrb[0].mxu0
  %v2330 = vadd.f32 %v2241, %v2329
  %2331 = vdwg.mxu0
  %2332 = vmatprep.subr.mxu0 %v2208
  %2333 = vmatpush1.msra.mxu0 %v2207
  %2334 = vmatprep.subr.mxu0 %v2211
  %2335 = vmatpush1.msra.mxu0 %v2210
  %2336 = vmatprep.subr.mxu0 %v2214
  %2337 = vmatpush1.msra.mxu0 %v2213
  %2338 = vmatprep.subr.mxu0 %v2217
  %2339 = vmatpush1.msra.mxu0 %v2216
  %2340 = vmatprep.subr.mxu0 %v2220
  %2341 = vmatpush1.msra.mxu0 %v2219
  %2342 = vmatprep.subr.mxu0 %v2223
  %2343 = vmatpush1.msra.mxu0 %v2222
  %2344 = vmatprep.subr.mxu0 %v2226
  %2345 = vmatpush1.msra.mxu0 %v2225
  %2346 = vmatprep.subr.mxu0 %v2229
  %2347 = vmatpush1.msra.mxu0 %v2228
  %2348 = vmatprep.subr.mxu0 0.0
  %2349 = vmatpush1.msra.mxu0 0.0
  %2350 = vmatprep.subr.mxu0 0.0
  %2351 = vmatpush1.msra.mxu0 0.0
  %2352 = vmatprep.subr.mxu0 0.0
  %2353 = vmatpush1.msra.mxu0 0.0
  %2354 = vmatprep.subr.mxu0 0.0
  %2355 = vmatpush1.msra.mxu0 0.0
  %2356 = vmatprep.subr.mxu0 0.0
  %2357 = vmatpush1.msra.mxu0 0.0
  %2358 = vmatprep.subr.mxu0 0.0
  %2359 = vmatpush1.msra.mxu0 0.0
  %2360 = vmatprep.subr.mxu0 0.0
  %2361 = vmatpush1.msra.mxu0 0.0
  %2362 = vmatprep.subr.mxu0 0.0
  %2363 = vmatpush1.msra.mxu0 0.0
  %2364 = vmatprep.subr.mxu0 0.0
  %2365 = vmatpush1.msra.mxu0 0.0
  %2366 = vmatprep.subr.mxu0 0.0
  %2367 = vmatpush1.msra.mxu0 0.0
  %2368 = vmatprep.subr.mxu0 0.0
  %2369 = vmatpush1.msra.mxu0 0.0
  %2370 = vmatprep.subr.mxu0 0.0
  %2371 = vmatpush1.msra.mxu0 0.0
  %2372 = vmatprep.subr.mxu0 0.0
  %2373 = vmatpush1.msra.mxu0 0.0
  %2374 = vmatprep.subr.mxu0 0.0
  %2375 = vmatpush1.msra.mxu0 0.0
  %2376 = vmatprep.subr.mxu0 0.0
  %2377 = vmatpush1.msra.mxu0 0.0
  %2378 = vmatprep.subr.mxu0 0.0
  %2379 = vmatpush1.msra.mxu0 0.0
  %2380 = vmatprep.subr.mxu0 0.0
  %2381 = vmatpush1.msra.mxu0 0.0
  %2382 = vmatprep.subr.mxu0 0.0
  %2383 = vmatpush1.msra.mxu0 0.0
  %2384 = vmatprep.subr.mxu0 0.0
  %2385 = vmatpush1.msra.mxu0 0.0
  %2386 = vmatprep.subr.mxu0 0.0
  %2387 = vmatpush1.msra.mxu0 0.0
  %2388 = vmatprep.subr.mxu0 0.0
  %2389 = vmatpush1.msra.mxu0 0.0
  %2390 = vmatprep.subr.mxu0 0.0
  %2391 = vmatpush1.msra.mxu0 0.0
  %2392 = vmatprep.subr.mxu0 0.0
  %2393 = vmatpush1.msra.mxu0 0.0
  %2394 = vmatprep.subr.mxu0 0.0
  %2395 = vmatpush1.msra.mxu0 0.0
  %2396 = vmatprep.mubr.f32.mxu0 0.0
  %2397 = vmatmul.mubr.f32.gmra.mrb[0].mxu0 %v2250
  %v2398 = vpop.f32.mrb[0].mxu0
  %v2399 = vadd.f32 %v2322, %v2398
  %v2400 = vpop.f32.mrb[0].mxu0
  %v2401 = vadd.f32 %v2324, %v2400
  %2402 = vmatprep.mubr.f32.mxu0 0.0
  %2403 = vmatmul.mubr.f32.gmra.mrb[0].mxu0 %v2253
  %v2404 = vpop.f32.mrb[0].mxu0
  %v2405 = vadd.f32 %v2328, %v2404
  %v2406 = vpop.f32.mrb[0].mxu0
  %v2407 = vadd.f32 %v2330, %v2406
  %2408 = vdwg.mxu0
  %2409 = vmatprep.subr.mxu0 0.0
  %2410 = vmatpush1.msra.mxu0 %v2113
  %2411 = vmatprep.subr.mxu0 0.0
  %2412 = vmatpush1.msra.mxu0 %v2116
  %2413 = vmatprep.subr.mxu0 0.0
  %2414 = vmatpush1.msra.mxu0 %v2119
  %2415 = vmatprep.subr.mxu0 0.0
  %2416 = vmatpush1.msra.mxu0 %v2122
  %2417 = vmatprep.subr.mxu0 0.0
  %2418 = vmatpush1.msra.mxu0 %v2125
  %2419 = vmatprep.subr.mxu0 0.0
  %2420 = vmatpush1.msra.mxu0 %v2128
  %2421 = vmatprep.subr.mxu0 0.0
  %2422 = vmatpush1.msra.mxu0 %v2131
  %2423 = vmatprep.subr.mxu0 0.0
  %2424 = vmatpush1.msra.mxu0 %v2134
  %2425 = vmatprep.subr.mxu0 0.0
  %2426 = vmatpush1.msra.mxu0 %v2137
  %2427 = vmatprep.subr.mxu0 0.0
  %2428 = vmatpush1.msra.mxu0 %v2140
  %2429 = vmatprep.subr.mxu0 0.0
  %2430 = vmatpush1.msra.mxu0 %v2143
  %2431 = vmatprep.subr.mxu0 0.0
  %2432 = vmatpush1.msra.mxu0 %v2146
  %2433 = vmatprep.subr.mxu0 0.0
  %2434 = vmatpush1.msra.mxu0 %v2149
  %2435 = vmatprep.subr.mxu0 0.0
  %2436 = vmatpush1.msra.mxu0 %v2152
  %2437 = vmatprep.subr.mxu0 0.0
  %2438 = vmatpush1.msra.mxu0 %v2155
  %2439 = vmatprep.subr.mxu0 0.0
  %2440 = vmatpush1.msra.mxu0 %v2158
  %2441 = vmatprep.subr.mxu0 0.0
  %2442 = vmatpush1.msra.mxu0 %v2161
  %2443 = vmatprep.subr.mxu0 0.0
  %2444 = vmatpush1.msra.mxu0 %v2164
  %2445 = vmatprep.subr.mxu0 0.0
  %2446 = vmatpush1.msra.mxu0 %v2167
  %2447 = vmatprep.subr.mxu0 0.0
  %2448 = vmatpush1.msra.mxu0 %v2170
  %2449 = vmatprep.subr.mxu0 0.0
  %2450 = vmatpush1.msra.mxu0 %v2173
  %2451 = vmatprep.subr.mxu0 0.0
  %2452 = vmatpush1.msra.mxu0 %v2176
  %2453 = vmatprep.subr.mxu0 0.0
  %2454 = vmatpush1.msra.mxu0 %v2179
  %2455 = vmatprep.subr.mxu0 0.0
  %2456 = vmatpush1.msra.mxu0 %v2182
  %2457 = vmatprep.subr.mxu0 0.0
  %2458 = vmatpush1.msra.mxu0 %v2185
  %2459 = vmatprep.subr.mxu0 0.0
  %2460 = vmatpush1.msra.mxu0 %v2188
  %2461 = vmatprep.subr.mxu0 0.0
  %2462 = vmatpush1.msra.mxu0 %v2191
  %2463 = vmatprep.subr.mxu0 0.0
  %2464 = vmatpush1.msra.mxu0 %v2194
  %2465 = vmatprep.subr.mxu0 0.0
  %2466 = vmatpush1.msra.mxu0 %v2197
  %2467 = vmatprep.subr.mxu0 0.0
  %2468 = vmatpush1.msra.mxu0 %v2200
  %2469 = vmatprep.subr.mxu0 0.0
  %2470 = vmatpush1.msra.mxu0 %v2203
  %2471 = vmatprep.subr.mxu0 0.0
  %2472 = vmatpush1.msra.mxu0 %v2206
  %2473 = vmatprep.mubr.f32.mxu0 %v2105
  %2474 = vmatmul.mubr.f32.gmra.mrb[0].mxu0 %v2104
  %v2475 = vpop.f32.mrb[0].mxu0
  %v2476 = vadd.f32 %v2245, %v2475
  %v2477 = vpop.f32.mrb[0].mxu0
  %2478 = vmatprep.mubr.f32.mxu0 %v2108
  %2479 = vmatmul.mubr.f32.gmra.mrb[0].mxu0 %v2107
  %v2480 = vpop.f32.mrb[0].mxu0
  %v2481 = vadd.f32 %v2245, %v2480
  %v2482 = vpop.f32.mrb[0].mxu0
  %2483 = vdwg.mxu0
  %2484 = vmatprep.subr.mxu0 0.0
  %2485 = vmatpush1.msra.mxu0 %v2209
  %2486 = vmatprep.subr.mxu0 0.0
  %2487 = vmatpush1.msra.mxu0 %v2212
  %2488 = vmatprep.subr.mxu0 0.0
  %2489 = vmatpush1.msra.mxu0 %v2215
  %2490 = vmatprep.subr.mxu0 0.0
  %2491 = vmatpush1.msra.mxu0 %v2218
  %2492 = vmatprep.subr.mxu0 0.0
  %2493 = vmatpush1.msra.mxu0 %v2221
  %2494 = vmatprep.subr.mxu0 0.0
  %2495 = vmatpush1.msra.mxu0 %v2224
  %2496 = vmatprep.subr.mxu0 0.0
  %2497 = vmatpush1.msra.mxu0 %v2227
  %2498 = vmatprep.subr.mxu0 0.0
  %2499 = vmatpush1.msra.mxu0 %v2230
  %2500 = vmatprep.subr.mxu0 0.0
  %2501 = vmatpush1.msra.mxu0 0.0
  %2502 = vmatprep.subr.mxu0 0.0
  %2503 = vmatpush1.msra.mxu0 0.0
  %2504 = vmatprep.subr.mxu0 0.0
  %2505 = vmatpush1.msra.mxu0 0.0
  %2506 = vmatprep.subr.mxu0 0.0
  %2507 = vmatpush1.msra.mxu0 0.0
  %2508 = vmatprep.subr.mxu0 0.0
  %2509 = vmatpush1.msra.mxu0 0.0
  %2510 = vmatprep.subr.mxu0 0.0
  %2511 = vmatpush1.msra.mxu0 0.0
  %2512 = vmatprep.subr.mxu0 0.0
  %2513 = vmatpush1.msra.mxu0 0.0
  %2514 = vmatprep.subr.mxu0 0.0
  %2515 = vmatpush1.msra.mxu0 0.0
  %2516 = vmatprep.subr.mxu0 0.0
  %2517 = vmatpush1.msra.mxu0 0.0
  %2518 = vmatprep.subr.mxu0 0.0
  %2519 = vmatpush1.msra.mxu0 0.0
  %2520 = vmatprep.subr.mxu0 0.0
  %2521 = vmatpush1.msra.mxu0 0.0
  %2522 = vmatprep.subr.mxu0 0.0
  %2523 = vmatpush1.msra.mxu0 0.0
  %2524 = vmatprep.subr.mxu0 0.0
  %2525 = vmatpush1.msra.mxu0 0.0
  %2526 = vmatprep.subr.mxu0 0.0
  %2527 = vmatpush1.msra.mxu0 0.0
  %2528 = vmatprep.subr.mxu0 0.0
  %2529 = vmatpush1.msra.mxu0 0.0
  %2530 = vmatprep.subr.mxu0 0.0
  %2531 = vmatpush1.msra.mxu0 0.0
  %2532 = vmatprep.subr.mxu0 0.0
  %2533 = vmatpush1.msra.mxu0 0.0
  %2534 = vmatprep.subr.mxu0 0.0
  %2535 = vmatpush1.msra.mxu0 0.0
  %2536 = vmatprep.subr.mxu0 0.0
  %2537 = vmatpush1.msra.mxu0 0.0
  %2538 = vmatprep.subr.mxu0 0.0
  %2539 = vmatpush1.msra.mxu0 0.0
  %2540 = vmatprep.subr.mxu0 0.0
  %2541 = vmatpush1.msra.mxu0 0.0
  %2542 = vmatprep.subr.mxu0 0.0
  %2543 = vmatpush1.msra.mxu0 0.0
  %2544 = vmatprep.subr.mxu0 0.0
  %2545 = vmatpush1.msra.mxu0 0.0
  %2546 = vmatprep.subr.mxu0 0.0
  %2547 = vmatpush1.msra.mxu0 0.0
  %2548 = vmatprep.mubr.f32.mxu0 0.0
  %2549 = vmatmul.mubr.f32.gmra.mrb[0].mxu0 %v2250
  %v2550 = vpop.f32.mrb[0].mxu0
  %v2551 = vadd.f32 %v2476, %v2550
  %v2552 = vpop.f32.mrb[0].mxu0
  %2553 = vmatprep.mubr.f32.mxu0 0.0
  %2554 = vmatmul.mubr.f32.gmra.mrb[0].mxu0 %v2253
  %v2555 = vpop.f32.mrb[0].mxu0
  %v2556 = vadd.f32 %v2481, %v2555
  %v2557 = vpop.f32.mrb[0].mxu0
  %2558 = vdwg.mxu0
  %v2559 = vadd.f32 %v2399, %v2405
  %v2560 = vrot.slane %v2559, 4
  %v2561 = vadd.f32 %v2559, %v2560
  %v2562 = vrot.slane %v2561, 2
  %v2563 = vadd.f32 %v2561, %v2562
  %v2564 = vrot.slane %v2563, 1
  %v2565 = vadd.f32 %v2563, %v2564
  %v2566 = vadd.f32 %v2401, %v2407
  %v2567 = vrot.slane %v2566, 4
  %v2568 = vadd.f32 %v2566, %v2567
  %v2569 = vrot.slane %v2568, 2
  %v2570 = vadd.f32 %v2568, %v2569
  %v2571 = vrot.slane %v2570, 1
  %v2572 = vadd.f32 %v2570, %v2571
  %v2573 = vsel %vm312, %v2551, 0.0
  %v2574 = vsel %vm312, %v2556, 0.0
  %v2575 = vadd.f32 %v2573, %v2574
  %v2576 = vrot.slane %v2575, 4
  %v2577 = vadd.f32 %v2575, %v2576
  %v2578 = vrot.slane %v2577, 2
  %v2579 = vadd.f32 %v2577, %v2578
  %v2580 = vrot.slane %v2579, 1
  %v2581 = vadd.f32 %v2579, %v2580
  %v2582 = vmul.f32 %v2399, %v2399
  %v2583 = vmul.f32 %v2401, %v2401
  %v2584 = vmul.f32 %v2551, %v2551
  %v2585 = vmul.f32 %v2405, %v2405
  %v2586 = vmul.f32 %v2407, %v2407
  %v2587 = vmul.f32 %v2556, %v2556
  %v2588 = vadd.f32 %v2582, %v2585
  %v2589 = vrot.slane %v2588, 4
  %v2590 = vadd.f32 %v2588, %v2589
  %v2591 = vrot.slane %v2590, 2
  %v2592 = vadd.f32 %v2590, %v2591
  %v2593 = vrot.slane %v2592, 1
  %v2594 = vadd.f32 %v2592, %v2593
  %v2595 = vadd.f32 %v2583, %v2586
  %v2596 = vrot.slane %v2595, 4
  %v2597 = vadd.f32 %v2595, %v2596
  %v2598 = vrot.slane %v2597, 2
  %v2599 = vadd.f32 %v2597, %v2598
  %v2600 = vrot.slane %v2599, 1
  %v2601 = vadd.f32 %v2599, %v2600
  %v2602 = vsel %vm312, %v2584, 0.0
  %v2603 = vsel %vm312, %v2587, 0.0
  %v2604 = vadd.f32 %v2602, %v2603
  %v2605 = vrot.slane %v2604, 4
  %v2606 = vadd.f32 %v2604, %v2605
  %v2607 = vrot.slane %v2606, 2
  %v2608 = vadd.f32 %v2606, %v2607
  %v2609 = vrot.slane %v2608, 1
  %v2610 = vadd.f32 %v2608, %v2609
  %v2612 = vsel %vm312, %v2581, 0
  %2614 = vmatprep.subr.mxu0 0.0
  %2615 = vmatpush1.msra.mxu0 %v29
  %2616 = vmatprep.subr.mxu0 0.0
  %2617 = vmatpush1.msra.mxu0 %v30
  %2618 = vmatprep.subr.mxu0 0.0
  %2619 = vmatpush1.msra.mxu0 %v31
  %2620 = vmatprep.subr.mxu0 0.0
  %2621 = vmatpush1.msra.mxu0 %v32
  %2622 = vmatprep.subr.mxu0 0.0
  %2623 = vmatpush1.msra.mxu0 %v33
  %2624 = vmatprep.subr.mxu0 0.0
  %2625 = vmatpush1.msra.mxu0 %v34
  %2626 = vmatprep.subr.mxu0 0.0
  %2627 = vmatpush1.msra.mxu0 %v35
  %2628 = vmatprep.subr.mxu0 0.0
  %2629 = vmatpush1.msra.mxu0 %v36
  %2630 = vmatprep.subr.mxu0 0.0
  %2631 = vmatpush1.msra.mxu0 %v37
  %2632 = vmatprep.subr.mxu0 0.0
  %2633 = vmatpush1.msra.mxu0 %v38
  %2634 = vmatprep.subr.mxu0 0.0
  %2635 = vmatpush1.msra.mxu0 %v39
  %2636 = vmatprep.subr.mxu0 0.0
  %2637 = vmatpush1.msra.mxu0 %v40
  %2638 = vmatprep.subr.mxu0 0.0
  %2639 = vmatpush1.msra.mxu0 %v41
  %2640 = vmatprep.subr.mxu0 0.0
  %2641 = vmatpush1.msra.mxu0 %v42
  %2642 = vmatprep.subr.mxu0 0.0
  %2643 = vmatpush1.msra.mxu0 %v43
  %2644 = vmatprep.subr.mxu0 0.0
  %2645 = vmatpush1.msra.mxu0 %v44
  %2646 = vmatprep.subr.mxu0 0.0
  %2647 = vmatpush1.msra.mxu0 %v45
  %2648 = vmatprep.subr.mxu0 0.0
  %2649 = vmatpush1.msra.mxu0 %v46
  %2650 = vmatprep.subr.mxu0 0.0
  %2651 = vmatpush1.msra.mxu0 %v47
  %2652 = vmatprep.subr.mxu0 0.0
  %2653 = vmatpush1.msra.mxu0 %v48
  %2654 = vmatprep.subr.mxu0 0.0
  %2655 = vmatpush1.msra.mxu0 %v49
  %2656 = vmatprep.subr.mxu0 0.0
  %2657 = vmatpush1.msra.mxu0 %v50
  %2658 = vmatprep.subr.mxu0 0.0
  %2659 = vmatpush1.msra.mxu0 %v51
  %2660 = vmatprep.subr.mxu0 0.0
  %2661 = vmatpush1.msra.mxu0 %v52
  %2662 = vmatprep.subr.mxu0 0.0
  %2663 = vmatpush1.msra.mxu0 %v53
  %2664 = vmatprep.subr.mxu0 0.0
  %2665 = vmatpush1.msra.mxu0 %v54
  %2666 = vmatprep.subr.mxu0 0.0
  %2667 = vmatpush1.msra.mxu0 %v55
  %2668 = vmatprep.subr.mxu0 0.0
  %2669 = vmatpush1.msra.mxu0 %v56
  %2670 = vmatprep.subr.mxu0 0.0
  %2671 = vmatpush1.msra.mxu0 %v57
  %2672 = vmatprep.subr.mxu0 0.0
  %2673 = vmatpush1.msra.mxu0 %v58
  %2674 = vmatprep.subr.mxu0 0.0
  %2675 = vmatpush1.msra.mxu0 %v59
  %2676 = vmatprep.subr.mxu0 0.0
  %2677 = vmatpush1.msra.mxu0 %v60
  %2678 = vmatprep.mubr.f32.mxu0 %v2572
  %2679 = vmatmul.mubr.f32.gmra.mrb[0].mxu0 %v2565
  %v2680 = vpop.f32.mrb[0].mxu0
  %v2681 = vadd.f32 0.0, %v2680
  %v2682 = vpop.f32.mrb[0].mxu0
  %2683 = vdwg.mxu0
  %2684 = vmatprep.subr.mxu0 0.0
  %2685 = vmatpush1.msra.mxu0 %v61
  %2686 = vmatprep.subr.mxu0 0.0
  %2687 = vmatpush1.msra.mxu0 %v62
  %2688 = vmatprep.subr.mxu0 0.0
  %2689 = vmatpush1.msra.mxu0 %v63
  %2690 = vmatprep.subr.mxu0 0.0
  %2691 = vmatpush1.msra.mxu0 %v64
  %2692 = vmatprep.subr.mxu0 0.0
  %2693 = vmatpush1.msra.mxu0 %v65
  %2694 = vmatprep.subr.mxu0 0.0
  %2695 = vmatpush1.msra.mxu0 %v66
  %2696 = vmatprep.subr.mxu0 0.0
  %2697 = vmatpush1.msra.mxu0 %v67
  %2698 = vmatprep.subr.mxu0 0.0
  %2699 = vmatpush1.msra.mxu0 %v68
  %2700 = vmatprep.subr.mxu0 0.0
  %2701 = vmatpush1.msra.mxu0 0.0
  %2702 = vmatprep.subr.mxu0 0.0
  %2703 = vmatpush1.msra.mxu0 0.0
  %2704 = vmatprep.subr.mxu0 0.0
  %2705 = vmatpush1.msra.mxu0 0.0
  %2706 = vmatprep.subr.mxu0 0.0
  %2707 = vmatpush1.msra.mxu0 0.0
  %2708 = vmatprep.subr.mxu0 0.0
  %2709 = vmatpush1.msra.mxu0 0.0
  %2710 = vmatprep.subr.mxu0 0.0
  %2711 = vmatpush1.msra.mxu0 0.0
  %2712 = vmatprep.subr.mxu0 0.0
  %2713 = vmatpush1.msra.mxu0 0.0
  %2714 = vmatprep.subr.mxu0 0.0
  %2715 = vmatpush1.msra.mxu0 0.0
  %2716 = vmatprep.subr.mxu0 0.0
  %2717 = vmatpush1.msra.mxu0 0.0
  %2718 = vmatprep.subr.mxu0 0.0
  %2719 = vmatpush1.msra.mxu0 0.0
  %2720 = vmatprep.subr.mxu0 0.0
  %2721 = vmatpush1.msra.mxu0 0.0
  %2722 = vmatprep.subr.mxu0 0.0
  %2723 = vmatpush1.msra.mxu0 0.0
  %2724 = vmatprep.subr.mxu0 0.0
  %2725 = vmatpush1.msra.mxu0 0.0
  %2726 = vmatprep.subr.mxu0 0.0
  %2727 = vmatpush1.msra.mxu0 0.0
  %2728 = vmatprep.subr.mxu0 0.0
  %2729 = vmatpush1.msra.mxu0 0.0
  %2730 = vmatprep.subr.mxu0 0.0
  %2731 = vmatpush1.msra.mxu0 0.0
  %2732 = vmatprep.subr.mxu0 0.0
  %2733 = vmatpush1.msra.mxu0 0.0
  %2734 = vmatprep.subr.mxu0 0.0
  %2735 = vmatpush1.msra.mxu0 0.0
  %2736 = vmatprep.subr.mxu0 0.0
  %2737 = vmatpush1.msra.mxu0 0.0
  %2738 = vmatprep.subr.mxu0 0.0
  %2739 = vmatpush1.msra.mxu0 0.0
  %2740 = vmatprep.subr.mxu0 0.0
  %2741 = vmatpush1.msra.mxu0 0.0
  %2742 = vmatprep.subr.mxu0 0.0
  %2743 = vmatpush1.msra.mxu0 0.0
  %2744 = vmatprep.subr.mxu0 0.0
  %2745 = vmatpush1.msra.mxu0 0.0
  %2746 = vmatprep.subr.mxu0 0.0
  %2747 = vmatpush1.msra.mxu0 0.0
  %2748 = vmatprep.mubr.f32.mxu0 0.0
  %2749 = vmatmul.mubr.f32.gmra.mrb[0].mxu0 %v2612
  %v2750 = vpop.f32.mrb[0].mxu0
  %v2751 = vadd.f32 %v2681, %v2750
  %v2752 = vpop.f32.mrb[0].mxu0
  %2753 = vdwg.mxu0
  %v2755 = vsel %vm312, %v2610, 0
  %2757 = vmatprep.subr.mxu0 0.0
  %2758 = vmatpush1.msra.mxu0 %v29
  %2759 = vmatprep.subr.mxu0 0.0
  %2760 = vmatpush1.msra.mxu0 %v30
  %2761 = vmatprep.subr.mxu0 0.0
  %2762 = vmatpush1.msra.mxu0 %v31
  %2763 = vmatprep.subr.mxu0 0.0
  %2764 = vmatpush1.msra.mxu0 %v32
  %2765 = vmatprep.subr.mxu0 0.0
  %2766 = vmatpush1.msra.mxu0 %v33
  %2767 = vmatprep.subr.mxu0 0.0
  %2768 = vmatpush1.msra.mxu0 %v34
  %2769 = vmatprep.subr.mxu0 0.0
  %2770 = vmatpush1.msra.mxu0 %v35
  %2771 = vmatprep.subr.mxu0 0.0
  %2772 = vmatpush1.msra.mxu0 %v36
  %2773 = vmatprep.subr.mxu0 0.0
  %2774 = vmatpush1.msra.mxu0 %v37
  %2775 = vmatprep.subr.mxu0 0.0
  %2776 = vmatpush1.msra.mxu0 %v38
  %2777 = vmatprep.subr.mxu0 0.0
  %2778 = vmatpush1.msra.mxu0 %v39
  %2779 = vmatprep.subr.mxu0 0.0
  %2780 = vmatpush1.msra.mxu0 %v40
  %2781 = vmatprep.subr.mxu0 0.0
  %2782 = vmatpush1.msra.mxu0 %v41
  %2783 = vmatprep.subr.mxu0 0.0
  %2784 = vmatpush1.msra.mxu0 %v42
  %2785 = vmatprep.subr.mxu0 0.0
  %2786 = vmatpush1.msra.mxu0 %v43
  %2787 = vmatprep.subr.mxu0 0.0
  %2788 = vmatpush1.msra.mxu0 %v44
  %2789 = vmatprep.subr.mxu0 0.0
  %2790 = vmatpush1.msra.mxu0 %v45
  %2791 = vmatprep.subr.mxu0 0.0
  %2792 = vmatpush1.msra.mxu0 %v46
  %2793 = vmatprep.subr.mxu0 0.0
  %2794 = vmatpush1.msra.mxu0 %v47
  %2795 = vmatprep.subr.mxu0 0.0
  %2796 = vmatpush1.msra.mxu0 %v48
  %2797 = vmatprep.subr.mxu0 0.0
  %2798 = vmatpush1.msra.mxu0 %v49
  %2799 = vmatprep.subr.mxu0 0.0
  %2800 = vmatpush1.msra.mxu0 %v50
  %2801 = vmatprep.subr.mxu0 0.0
  %2802 = vmatpush1.msra.mxu0 %v51
  %2803 = vmatprep.subr.mxu0 0.0
  %2804 = vmatpush1.msra.mxu0 %v52
  %2805 = vmatprep.subr.mxu0 0.0
  %2806 = vmatpush1.msra.mxu0 %v53
  %2807 = vmatprep.subr.mxu0 0.0
  %2808 = vmatpush1.msra.mxu0 %v54
  %2809 = vmatprep.subr.mxu0 0.0
  %2810 = vmatpush1.msra.mxu0 %v55
  %2811 = vmatprep.subr.mxu0 0.0
  %2812 = vmatpush1.msra.mxu0 %v56
  %2813 = vmatprep.subr.mxu0 0.0
  %2814 = vmatpush1.msra.mxu0 %v57
  %2815 = vmatprep.subr.mxu0 0.0
  %2816 = vmatpush1.msra.mxu0 %v58
  %2817 = vmatprep.subr.mxu0 0.0
  %2818 = vmatpush1.msra.mxu0 %v59
  %2819 = vmatprep.subr.mxu0 0.0
  %2820 = vmatpush1.msra.mxu0 %v60
  %2821 = vmatprep.mubr.f32.mxu0 %v2601
  %2822 = vmatmul.mubr.f32.gmra.mrb[0].mxu0 %v2594
  %v2823 = vpop.f32.mrb[0].mxu0
  %v2824 = vadd.f32 0.0, %v2823
  %v2825 = vpop.f32.mrb[0].mxu0
  %2826 = vdwg.mxu0
  %2827 = vmatprep.subr.mxu0 0.0
  %2828 = vmatpush1.msra.mxu0 %v61
  %2829 = vmatprep.subr.mxu0 0.0
  %2830 = vmatpush1.msra.mxu0 %v62
  %2831 = vmatprep.subr.mxu0 0.0
  %2832 = vmatpush1.msra.mxu0 %v63
  %2833 = vmatprep.subr.mxu0 0.0
  %2834 = vmatpush1.msra.mxu0 %v64
  %2835 = vmatprep.subr.mxu0 0.0
  %2836 = vmatpush1.msra.mxu0 %v65
  %2837 = vmatprep.subr.mxu0 0.0
  %2838 = vmatpush1.msra.mxu0 %v66
  %2839 = vmatprep.subr.mxu0 0.0
  %2840 = vmatpush1.msra.mxu0 %v67
  %2841 = vmatprep.subr.mxu0 0.0
  %2842 = vmatpush1.msra.mxu0 %v68
  %2843 = vmatprep.subr.mxu0 0.0
  %2844 = vmatpush1.msra.mxu0 0.0
  %2845 = vmatprep.subr.mxu0 0.0
  %2846 = vmatpush1.msra.mxu0 0.0
  %2847 = vmatprep.subr.mxu0 0.0
  %2848 = vmatpush1.msra.mxu0 0.0
  %2849 = vmatprep.subr.mxu0 0.0
  %2850 = vmatpush1.msra.mxu0 0.0
  %2851 = vmatprep.subr.mxu0 0.0
  %2852 = vmatpush1.msra.mxu0 0.0
  %2853 = vmatprep.subr.mxu0 0.0
  %2854 = vmatpush1.msra.mxu0 0.0
  %2855 = vmatprep.subr.mxu0 0.0
  %2856 = vmatpush1.msra.mxu0 0.0
  %2857 = vmatprep.subr.mxu0 0.0
  %2858 = vmatpush1.msra.mxu0 0.0
  %2859 = vmatprep.subr.mxu0 0.0
  %2860 = vmatpush1.msra.mxu0 0.0
  %2861 = vmatprep.subr.mxu0 0.0
  %2862 = vmatpush1.msra.mxu0 0.0
  %2863 = vmatprep.subr.mxu0 0.0
  %2864 = vmatpush1.msra.mxu0 0.0
  %2865 = vmatprep.subr.mxu0 0.0
  %2866 = vmatpush1.msra.mxu0 0.0
  %2867 = vmatprep.subr.mxu0 0.0
  %2868 = vmatpush1.msra.mxu0 0.0
  %2869 = vmatprep.subr.mxu0 0.0
  %2870 = vmatpush1.msra.mxu0 0.0
  %2871 = vmatprep.subr.mxu0 0.0
  %2872 = vmatpush1.msra.mxu0 0.0
  %2873 = vmatprep.subr.mxu0 0.0
  %2874 = vmatpush1.msra.mxu0 0.0
  %2875 = vmatprep.subr.mxu0 0.0
  %2876 = vmatpush1.msra.mxu0 0.0
  %2877 = vmatprep.subr.mxu0 0.0
  %2878 = vmatpush1.msra.mxu0 0.0
  %2879 = vmatprep.subr.mxu0 0.0
  %2880 = vmatpush1.msra.mxu0 0.0
  %2881 = vmatprep.subr.mxu0 0.0
  %2882 = vmatpush1.msra.mxu0 0.0
  %2883 = vmatprep.subr.mxu0 0.0
  %2884 = vmatpush1.msra.mxu0 0.0
  %2885 = vmatprep.subr.mxu0 0.0
  %2886 = vmatpush1.msra.mxu0 0.0
  %2887 = vmatprep.subr.mxu0 0.0
  %2888 = vmatpush1.msra.mxu0 0.0
  %2889 = vmatprep.subr.mxu0 0.0
  %2890 = vmatpush1.msra.mxu0 0.0
  %2891 = vmatprep.mubr.f32.mxu0 0.0
  %2892 = vmatmul.mubr.f32.gmra.mrb[0].mxu0 %v2755
  %v2893 = vpop.f32.mrb[0].mxu0
  %v2894 = vadd.f32 %v2824, %v2893
  %v2895 = vpop.f32.mrb[0].mxu0
  %2896 = vdwg.mxu0
  %v2897 = vmul.f32 %v2751, 0.003125
  %v2898 = vmul.f32 %v2894, 0.003125
  %v2899 = vmul.f32 %v2897, %v2897
  %v2900 = vsub.f32 %v2898, %v2899
  %v2901 = vmax.f32 %v2900, 0.0
  %s2902 = scalar_lea.vmem %s4, 2
  %v2903 = vld [vmem:[%s2902] sm:$0x1]
  %v2904 = vadd.f32 %v2901, 1e-05
  %v2905 = vrsqrt.pop %v2904
  %v2906 = vmul.f32 %v2903, %v2905
  %s2907 = scalar_lea.vmem %s5, 2
  %v2908 = vld [vmem:[%s2907] sm:$0x1]
  %v2909 = vmul.f32 %v2897, %v2906
  %v2910 = vsub.f32 %v2908, %v2909
  %v2912 = vsel %vm649, %v2906, 0
  %2914 = vmatprep.subr.mxu0 %v70
  %2915 = vmatpush1.msra.mxu0 %v69
  %2916 = vmatprep.subr.mxu0 %v73
  %2917 = vmatpush1.msra.mxu0 %v72
  %2918 = vmatprep.subr.mxu0 0.0
  %2919 = vmatpush1.msra.mxu0 0.0
  %2920 = vmatprep.subr.mxu0 0.0
  %2921 = vmatpush1.msra.mxu0 0.0
  %2922 = vmatprep.subr.mxu0 0.0
  %2923 = vmatpush1.msra.mxu0 0.0
  %2924 = vmatprep.subr.mxu0 0.0
  %2925 = vmatpush1.msra.mxu0 0.0
  %2926 = vmatprep.subr.mxu0 0.0
  %2927 = vmatpush1.msra.mxu0 0.0
  %2928 = vmatprep.subr.mxu0 0.0
  %2929 = vmatpush1.msra.mxu0 0.0
  %2930 = vmatprep.subr.mxu0 0.0
  %2931 = vmatpush1.msra.mxu0 0.0
  %2932 = vmatprep.subr.mxu0 0.0
  %2933 = vmatpush1.msra.mxu0 0.0
  %2934 = vmatprep.subr.mxu0 0.0
  %2935 = vmatpush1.msra.mxu0 0.0
  %2936 = vmatprep.subr.mxu0 0.0
  %2937 = vmatpush1.msra.mxu0 0.0
  %2938 = vmatprep.subr.mxu0 0.0
  %2939 = vmatpush1.msra.mxu0 0.0
  %2940 = vmatprep.subr.mxu0 0.0
  %2941 = vmatpush1.msra.mxu0 0.0
  %2942 = vmatprep.subr.mxu0 0.0
  %2943 = vmatpush1.msra.mxu0 0.0
  %2944 = vmatprep.subr.mxu0 0.0
  %2945 = vmatpush1.msra.mxu0 0.0
  %2946 = vmatprep.subr.mxu0 0.0
  %2947 = vmatpush1.msra.mxu0 0.0
  %2948 = vmatprep.subr.mxu0 0.0
  %2949 = vmatpush1.msra.mxu0 0.0
  %2950 = vmatprep.subr.mxu0 0.0
  %2951 = vmatpush1.msra.mxu0 0.0
  %2952 = vmatprep.subr.mxu0 0.0
  %2953 = vmatpush1.msra.mxu0 0.0
  %2954 = vmatprep.subr.mxu0 0.0
  %2955 = vmatpush1.msra.mxu0 0.0
  %2956 = vmatprep.subr.mxu0 0.0
  %2957 = vmatpush1.msra.mxu0 0.0
  %2958 = vmatprep.subr.mxu0 0.0
  %2959 = vmatpush1.msra.mxu0 0.0
  %2960 = vmatprep.subr.mxu0 0.0
  %2961 = vmatpush1.msra.mxu0 0.0
  %2962 = vmatprep.subr.mxu0 0.0
  %2963 = vmatpush1.msra.mxu0 0.0
  %2964 = vmatprep.subr.mxu0 0.0
  %2965 = vmatpush1.msra.mxu0 0.0
  %2966 = vmatprep.subr.mxu0 0.0
  %2967 = vmatpush1.msra.mxu0 0.0
  %2968 = vmatprep.subr.mxu0 0.0
  %2969 = vmatpush1.msra.mxu0 0.0
  %2970 = vmatprep.subr.mxu0 0.0
  %2971 = vmatpush1.msra.mxu0 0.0
  %2972 = vmatprep.subr.mxu0 0.0
  %2973 = vmatpush1.msra.mxu0 0.0
  %2974 = vmatprep.subr.mxu0 0.0
  %2975 = vmatpush1.msra.mxu0 0.0
  %2976 = vmatprep.subr.mxu0 0.0
  %2977 = vmatpush1.msra.mxu0 0.0
  %2978 = vmatprep.mubr.f32.mxu0 0.0
  %2979 = vmatmul.mubr.f32.gmra.mrb[0].mxu0 %v2912
  %v2980 = vpop.f32.mrb[0].mxu0
  %v2981 = vadd.f32 0.0, %v2980
  %v2982 = vpop.f32.mrb[0].mxu0
  %v2983 = vadd.f32 0.0, %v2982
  %2984 = vdwg.mxu0
  %2985 = vmatprep.subr.mxu0 0.0
  %2986 = vmatpush1.msra.mxu0 %v71
  %2987 = vmatprep.subr.mxu0 0.0
  %2988 = vmatpush1.msra.mxu0 %v74
  %2989 = vmatprep.subr.mxu0 0.0
  %2990 = vmatpush1.msra.mxu0 0.0
  %2991 = vmatprep.subr.mxu0 0.0
  %2992 = vmatpush1.msra.mxu0 0.0
  %2993 = vmatprep.subr.mxu0 0.0
  %2994 = vmatpush1.msra.mxu0 0.0
  %2995 = vmatprep.subr.mxu0 0.0
  %2996 = vmatpush1.msra.mxu0 0.0
  %2997 = vmatprep.subr.mxu0 0.0
  %2998 = vmatpush1.msra.mxu0 0.0
  %2999 = vmatprep.subr.mxu0 0.0
  %3000 = vmatpush1.msra.mxu0 0.0
  %3001 = vmatprep.subr.mxu0 0.0
  %3002 = vmatpush1.msra.mxu0 0.0
  %3003 = vmatprep.subr.mxu0 0.0
  %3004 = vmatpush1.msra.mxu0 0.0
  %3005 = vmatprep.subr.mxu0 0.0
  %3006 = vmatpush1.msra.mxu0 0.0
  %3007 = vmatprep.subr.mxu0 0.0
  %3008 = vmatpush1.msra.mxu0 0.0
  %3009 = vmatprep.subr.mxu0 0.0
  %3010 = vmatpush1.msra.mxu0 0.0
  %3011 = vmatprep.subr.mxu0 0.0
  %3012 = vmatpush1.msra.mxu0 0.0
  %3013 = vmatprep.subr.mxu0 0.0
  %3014 = vmatpush1.msra.mxu0 0.0
  %3015 = vmatprep.subr.mxu0 0.0
  %3016 = vmatpush1.msra.mxu0 0.0
  %3017 = vmatprep.subr.mxu0 0.0
  %3018 = vmatpush1.msra.mxu0 0.0
  %3019 = vmatprep.subr.mxu0 0.0
  %3020 = vmatpush1.msra.mxu0 0.0
  %3021 = vmatprep.subr.mxu0 0.0
  %3022 = vmatpush1.msra.mxu0 0.0
  %3023 = vmatprep.subr.mxu0 0.0
  %3024 = vmatpush1.msra.mxu0 0.0
  %3025 = vmatprep.subr.mxu0 0.0
  %3026 = vmatpush1.msra.mxu0 0.0
  %3027 = vmatprep.subr.mxu0 0.0
  %3028 = vmatpush1.msra.mxu0 0.0
  %3029 = vmatprep.subr.mxu0 0.0
  %3030 = vmatpush1.msra.mxu0 0.0
  %3031 = vmatprep.subr.mxu0 0.0
  %3032 = vmatpush1.msra.mxu0 0.0
  %3033 = vmatprep.subr.mxu0 0.0
  %3034 = vmatpush1.msra.mxu0 0.0
  %3035 = vmatprep.subr.mxu0 0.0
  %3036 = vmatpush1.msra.mxu0 0.0
  %3037 = vmatprep.subr.mxu0 0.0
  %3038 = vmatpush1.msra.mxu0 0.0
  %3039 = vmatprep.subr.mxu0 0.0
  %3040 = vmatpush1.msra.mxu0 0.0
  %3041 = vmatprep.subr.mxu0 0.0
  %3042 = vmatpush1.msra.mxu0 0.0
  %3043 = vmatprep.subr.mxu0 0.0
  %3044 = vmatpush1.msra.mxu0 0.0
  %3045 = vmatprep.subr.mxu0 0.0
  %3046 = vmatpush1.msra.mxu0 0.0
  %3047 = vmatprep.subr.mxu0 0.0
  %3048 = vmatpush1.msra.mxu0 0.0
  %3049 = vmatprep.mubr.f32.mxu0 0.0
  %3050 = vmatmul.mubr.f32.gmra.mrb[0].mxu0 %v2912
  %v3051 = vpop.f32.mrb[0].mxu0
  %v3052 = vadd.f32 0.0, %v3051
  %v3053 = vpop.f32.mrb[0].mxu0
  %3054 = vdwg.mxu0
  %v3056 = vsel %vm649, %v2910, 0
  %3058 = vmatprep.subr.mxu0 %v70
  %3059 = vmatpush1.msra.mxu0 %v69
  %3060 = vmatprep.subr.mxu0 %v73
  %3061 = vmatpush1.msra.mxu0 %v72
  %3062 = vmatprep.subr.mxu0 0.0
  %3063 = vmatpush1.msra.mxu0 0.0
  %3064 = vmatprep.subr.mxu0 0.0
  %3065 = vmatpush1.msra.mxu0 0.0
  %3066 = vmatprep.subr.mxu0 0.0
  %3067 = vmatpush1.msra.mxu0 0.0
  %3068 = vmatprep.subr.mxu0 0.0
  %3069 = vmatpush1.msra.mxu0 0.0
  %3070 = vmatprep.subr.mxu0 0.0
  %3071 = vmatpush1.msra.mxu0 0.0
  %3072 = vmatprep.subr.mxu0 0.0
  %3073 = vmatpush1.msra.mxu0 0.0
  %3074 = vmatprep.subr.mxu0 0.0
  %3075 = vmatpush1.msra.mxu0 0.0
  %3076 = vmatprep.subr.mxu0 0.0
  %3077 = vmatpush1.msra.mxu0 0.0
  %3078 = vmatprep.subr.mxu0 0.0
  %3079 = vmatpush1.msra.mxu0 0.0
  %3080 = vmatprep.subr.mxu0 0.0
  %3081 = vmatpush1.msra.mxu0 0.0
  %3082 = vmatprep.subr.mxu0 0.0
  %3083 = vmatpush1.msra.mxu0 0.0
  %3084 = vmatprep.subr.mxu0 0.0
  %3085 = vmatpush1.msra.mxu0 0.0
  %3086 = vmatprep.subr.mxu0 0.0
  %3087 = vmatpush1.msra.mxu0 0.0
  %3088 = vmatprep.subr.mxu0 0.0
  %3089 = vmatpush1.msra.mxu0 0.0
  %3090 = vmatprep.subr.mxu0 0.0
  %3091 = vmatpush1.msra.mxu0 0.0
  %3092 = vmatprep.subr.mxu0 0.0
  %3093 = vmatpush1.msra.mxu0 0.0
  %3094 = vmatprep.subr.mxu0 0.0
  %3095 = vmatpush1.msra.mxu0 0.0
  %3096 = vmatprep.subr.mxu0 0.0
  %3097 = vmatpush1.msra.mxu0 0.0
  %3098 = vmatprep.subr.mxu0 0.0
  %3099 = vmatpush1.msra.mxu0 0.0
  %3100 = vmatprep.subr.mxu0 0.0
  %3101 = vmatpush1.msra.mxu0 0.0
  %3102 = vmatprep.subr.mxu0 0.0
  %3103 = vmatpush1.msra.mxu0 0.0
  %3104 = vmatprep.subr.mxu0 0.0
  %3105 = vmatpush1.msra.mxu0 0.0
  %3106 = vmatprep.subr.mxu0 0.0
  %3107 = vmatpush1.msra.mxu0 0.0
  %3108 = vmatprep.subr.mxu0 0.0
  %3109 = vmatpush1.msra.mxu0 0.0
  %3110 = vmatprep.subr.mxu0 0.0
  %3111 = vmatpush1.msra.mxu0 0.0
  %3112 = vmatprep.subr.mxu0 0.0
  %3113 = vmatpush1.msra.mxu0 0.0
  %3114 = vmatprep.subr.mxu0 0.0
  %3115 = vmatpush1.msra.mxu0 0.0
  %3116 = vmatprep.subr.mxu0 0.0
  %3117 = vmatpush1.msra.mxu0 0.0
  %3118 = vmatprep.subr.mxu0 0.0
  %3119 = vmatpush1.msra.mxu0 0.0
  %3120 = vmatprep.subr.mxu0 0.0
  %3121 = vmatpush1.msra.mxu0 0.0
  %3122 = vmatprep.mubr.f32.mxu0 0.0
  %3123 = vmatmul.mubr.f32.gmra.mrb[0].mxu0 %v3056
  %v3124 = vpop.f32.mrb[0].mxu0
  %v3125 = vadd.f32 0.0, %v3124
  %v3126 = vpop.f32.mrb[0].mxu0
  %v3127 = vadd.f32 0.0, %v3126
  %3128 = vdwg.mxu0
  %3129 = vmatprep.subr.mxu0 0.0
  %3130 = vmatpush1.msra.mxu0 %v71
  %3131 = vmatprep.subr.mxu0 0.0
  %3132 = vmatpush1.msra.mxu0 %v74
  %3133 = vmatprep.subr.mxu0 0.0
  %3134 = vmatpush1.msra.mxu0 0.0
  %3135 = vmatprep.subr.mxu0 0.0
  %3136 = vmatpush1.msra.mxu0 0.0
  %3137 = vmatprep.subr.mxu0 0.0
  %3138 = vmatpush1.msra.mxu0 0.0
  %3139 = vmatprep.subr.mxu0 0.0
  %3140 = vmatpush1.msra.mxu0 0.0
  %3141 = vmatprep.subr.mxu0 0.0
  %3142 = vmatpush1.msra.mxu0 0.0
  %3143 = vmatprep.subr.mxu0 0.0
  %3144 = vmatpush1.msra.mxu0 0.0
  %3145 = vmatprep.subr.mxu0 0.0
  %3146 = vmatpush1.msra.mxu0 0.0
  %3147 = vmatprep.subr.mxu0 0.0
  %3148 = vmatpush1.msra.mxu0 0.0
  %3149 = vmatprep.subr.mxu0 0.0
  %3150 = vmatpush1.msra.mxu0 0.0
  %3151 = vmatprep.subr.mxu0 0.0
  %3152 = vmatpush1.msra.mxu0 0.0
  %3153 = vmatprep.subr.mxu0 0.0
  %3154 = vmatpush1.msra.mxu0 0.0
  %3155 = vmatprep.subr.mxu0 0.0
  %3156 = vmatpush1.msra.mxu0 0.0
  %3157 = vmatprep.subr.mxu0 0.0
  %3158 = vmatpush1.msra.mxu0 0.0
  %3159 = vmatprep.subr.mxu0 0.0
  %3160 = vmatpush1.msra.mxu0 0.0
  %3161 = vmatprep.subr.mxu0 0.0
  %3162 = vmatpush1.msra.mxu0 0.0
  %3163 = vmatprep.subr.mxu0 0.0
  %3164 = vmatpush1.msra.mxu0 0.0
  %3165 = vmatprep.subr.mxu0 0.0
  %3166 = vmatpush1.msra.mxu0 0.0
  %3167 = vmatprep.subr.mxu0 0.0
  %3168 = vmatpush1.msra.mxu0 0.0
  %3169 = vmatprep.subr.mxu0 0.0
  %3170 = vmatpush1.msra.mxu0 0.0
  %3171 = vmatprep.subr.mxu0 0.0
  %3172 = vmatpush1.msra.mxu0 0.0
  %3173 = vmatprep.subr.mxu0 0.0
  %3174 = vmatpush1.msra.mxu0 0.0
  %3175 = vmatprep.subr.mxu0 0.0
  %3176 = vmatpush1.msra.mxu0 0.0
  %3177 = vmatprep.subr.mxu0 0.0
  %3178 = vmatpush1.msra.mxu0 0.0
  %3179 = vmatprep.subr.mxu0 0.0
  %3180 = vmatpush1.msra.mxu0 0.0
  %3181 = vmatprep.subr.mxu0 0.0
  %3182 = vmatpush1.msra.mxu0 0.0
  %3183 = vmatprep.subr.mxu0 0.0
  %3184 = vmatpush1.msra.mxu0 0.0
  %3185 = vmatprep.subr.mxu0 0.0
  %3186 = vmatpush1.msra.mxu0 0.0
  %3187 = vmatprep.subr.mxu0 0.0
  %3188 = vmatpush1.msra.mxu0 0.0
  %3189 = vmatprep.subr.mxu0 0.0
  %3190 = vmatpush1.msra.mxu0 0.0
  %3191 = vmatprep.subr.mxu0 0.0
  %3192 = vmatpush1.msra.mxu0 0.0
  %3193 = vmatprep.mubr.f32.mxu0 0.0
  %3194 = vmatmul.mubr.f32.gmra.mrb[0].mxu0 %v3056
  %v3195 = vpop.f32.mrb[0].mxu0
  %v3196 = vadd.f32 0.0, %v3195
  %v3197 = vpop.f32.mrb[0].mxu0
  %3198 = vdwg.mxu0
  %v3199 = vlaneseq
  %v3200 = vshrl.u32 %v3199, 7
  %v3201 = vsub.s32 0, %v3200
  %v3202 = vrot.slane %v2981, %v3201
  %v3203 = vlaneseq
  %v3204 = vshrl.u32 %v3203, 7
  %v3205 = vsub.s32 0, %v3204
  %v3206 = vrot.slane %v2983, %v3205
  %v3207 = vlaneseq
  %v3208 = vshrl.u32 %v3207, 7
  %v3209 = vsub.s32 0, %v3208
  %v3210 = vrot.slane %v3052, %v3209
  %v3211 = vmul.f32 %v2399, %v3202
  %v3212 = vmul.f32 %v2401, %v3206
  %v3213 = vmul.f32 %v2551, %v3210
  %v3214 = vmul.f32 %v2405, %v3202
  %v3215 = vmul.f32 %v2407, %v3206
  %v3216 = vmul.f32 %v2556, %v3210
  %v3217 = vlaneseq
  %v3218 = vshrl.u32 %v3217, 7
  %v3219 = vsub.s32 0, %v3218
  %v3220 = vrot.slane %v3125, %v3219
  %v3221 = vlaneseq
  %v3222 = vshrl.u32 %v3221, 7
  %v3223 = vsub.s32 0, %v3222
  %v3224 = vrot.slane %v3127, %v3223
  %v3225 = vlaneseq
  %v3226 = vshrl.u32 %v3225, 7
  %v3227 = vsub.s32 0, %v3226
  %v3228 = vrot.slane %v3196, %v3227
  %v3229 = vadd.f32 %v3211, %v3220
  %v3230 = vadd.f32 %v3212, %v3224
  %v3231 = vadd.f32 %v3213, %v3228
  %v3232 = vadd.f32 %v3214, %v3220
  %v3233 = vadd.f32 %v3215, %v3224
  %v3234 = vadd.f32 %v3216, %v3228
  %v3235 = vmax.f32 %v3229, 0.0
  %v3236 = vmax.f32 %v3230, 0.0
  %v3237 = vmax.f32 %v3231, 0.0
  %v3238 = vmax.f32 %v3232, 0.0
  %v3239 = vmax.f32 %v3233, 0.0
  %v3240 = vmax.f32 %v3234, 0.0
  %v3241 = vadd.f32 %v3235, %v974
  %v3242 = vadd.f32 %v3236, %v975
  %v3243 = vadd.f32 %v3237, %v976
  %v3244 = vadd.f32 %v3238, %v977
  %v3245 = vadd.f32 %v3239, %v978
  %v3246 = vadd.f32 %v3240, %v979
  %s3247 = scalar_lea.vmem %s2, 1920
  %v3248 = vld [vmem:[%s3247] sm:$0xff]
  %v3249 = vld [vmem:[%s3247 + $0x8] sm:$0xff]
  %v3250 = vld [vmem:[%s3247 + $0x10] sm:$0xff]
  %v3251 = vld [vmem:[%s3247 + $0x18] sm:$0xff]
  %v3252 = vld [vmem:[%s3247 + $0x20] sm:$0xff]
  %v3253 = vld [vmem:[%s3247 + $0x28] sm:$0xff]
  %v3254 = vld [vmem:[%s3247 + $0x30] sm:$0xff]
  %v3255 = vld [vmem:[%s3247 + $0x38] sm:$0xff]
  %v3256 = vld [vmem:[%s3247 + $0x40] sm:$0xff]
  %v3257 = vld [vmem:[%s3247 + $0x48] sm:$0xff]
  %v3258 = vld [vmem:[%s3247 + $0x50] sm:$0xff]
  %v3259 = vld [vmem:[%s3247 + $0x58] sm:$0xff]
  %v3260 = vld [vmem:[%s3247 + $0x60] sm:$0xff]
  %v3261 = vld [vmem:[%s3247 + $0x68] sm:$0xff]
  %v3262 = vld [vmem:[%s3247 + $0x70] sm:$0xff]
  %v3263 = vld [vmem:[%s3247 + $0x78] sm:$0xff]
  %v3264 = vld [vmem:[%s3247 + $0x80] sm:$0xff]
  %v3265 = vld [vmem:[%s3247 + $0x88] sm:$0xff]
  %v3266 = vld [vmem:[%s3247 + $0x90] sm:$0xff]
  %v3267 = vld [vmem:[%s3247 + $0x98] sm:$0xff]
  %v3268 = vld [vmem:[%s3247 + $0xa0] sm:$0xff]
  %v3269 = vld [vmem:[%s3247 + $0xa8] sm:$0xff]
  %v3270 = vld [vmem:[%s3247 + $0xb0] sm:$0xff]
  %v3271 = vld [vmem:[%s3247 + $0xb8] sm:$0xff]
  %v3272 = vld [vmem:[%s3247 + $0xc0] sm:$0xff]
  %v3273 = vld [vmem:[%s3247 + $0xc8] sm:$0xff]
  %v3274 = vld [vmem:[%s3247 + $0xd0] sm:$0xff]
  %v3275 = vld [vmem:[%s3247 + $0xd8] sm:$0xff]
  %v3276 = vld [vmem:[%s3247 + $0xe0] sm:$0xff]
  %v3277 = vld [vmem:[%s3247 + $0xe8] sm:$0xff]
  %v3278 = vld [vmem:[%s3247 + $0xf0] sm:$0xff]
  %v3279 = vld [vmem:[%s3247 + $0xf8] sm:$0xff]
  %v3280 = vld [vmem:[%s3247 + $0x100] sm:$0xff]
  %v3281 = vld [vmem:[%s3247 + $0x108] sm:$0xff]
  %v3282 = vld [vmem:[%s3247 + $0x110] sm:$0xff]
  %v3283 = vld [vmem:[%s3247 + $0x118] sm:$0xff]
  %v3284 = vld [vmem:[%s3247 + $0x120] sm:$0xff]
  %v3285 = vld [vmem:[%s3247 + $0x128] sm:$0xff]
  %v3286 = vld [vmem:[%s3247 + $0x130] sm:$0xff]
  %v3287 = vld [vmem:[%s3247 + $0x138] sm:$0xff]
  %v3288 = vld [vmem:[%s3247 + $0x140] sm:$0xff]
  %v3289 = vld [vmem:[%s3247 + $0x148] sm:$0xff]
  %v3290 = vld [vmem:[%s3247 + $0x150] sm:$0xff]
  %v3291 = vld [vmem:[%s3247 + $0x158] sm:$0xff]
  %v3292 = vld [vmem:[%s3247 + $0x160] sm:$0xff]
  %v3293 = vld [vmem:[%s3247 + $0x168] sm:$0xff]
  %v3294 = vld [vmem:[%s3247 + $0x170] sm:$0xff]
  %v3295 = vld [vmem:[%s3247 + $0x178] sm:$0xff]
  %v3296 = vld [vmem:[%s3247 + $0x180] sm:$0xff]
  %v3297 = vld [vmem:[%s3247 + $0x188] sm:$0xff]
  %v3298 = vld [vmem:[%s3247 + $0x190] sm:$0xff]
  %v3299 = vld [vmem:[%s3247 + $0x198] sm:$0xff]
  %v3300 = vld [vmem:[%s3247 + $0x1a0] sm:$0xff]
  %v3301 = vld [vmem:[%s3247 + $0x1a8] sm:$0xff]
  %v3302 = vld [vmem:[%s3247 + $0x1b0] sm:$0xff]
  %v3303 = vld [vmem:[%s3247 + $0x1b8] sm:$0xff]
  %v3304 = vld [vmem:[%s3247 + $0x1c0] sm:$0xff]
  %v3305 = vld [vmem:[%s3247 + $0x1c8] sm:$0xff]
  %v3306 = vld [vmem:[%s3247 + $0x1d0] sm:$0xff]
  %v3307 = vld [vmem:[%s3247 + $0x1d8] sm:$0xff]
  %v3308 = vld [vmem:[%s3247 + $0x1e0] sm:$0xff]
  %v3309 = vld [vmem:[%s3247 + $0x1e8] sm:$0xff]
  %v3310 = vld [vmem:[%s3247 + $0x1f0] sm:$0xff]
  %v3311 = vld [vmem:[%s3247 + $0x1f8] sm:$0xff]
  %v3312 = vld [vmem:[%s3247 + $0x200] sm:$0xff]
  %v3313 = vld [vmem:[%s3247 + $0x208] sm:$0xff]
  %v3314 = vld [vmem:[%s3247 + $0x210] sm:$0xff]
  %v3315 = vld [vmem:[%s3247 + $0x218] sm:$0xff]
  %v3316 = vld [vmem:[%s3247 + $0x220] sm:$0xff]
  %v3317 = vld [vmem:[%s3247 + $0x228] sm:$0xff]
  %v3318 = vld [vmem:[%s3247 + $0x230] sm:$0xff]
  %v3319 = vld [vmem:[%s3247 + $0x238] sm:$0xff]
  %v3320 = vld [vmem:[%s3247 + $0x240] sm:$0xff]
  %v3321 = vld [vmem:[%s3247 + $0x248] sm:$0xff]
  %v3322 = vld [vmem:[%s3247 + $0x250] sm:$0xff]
  %v3323 = vld [vmem:[%s3247 + $0x258] sm:$0xff]
  %v3324 = vld [vmem:[%s3247 + $0x260] sm:$0xff]
  %v3325 = vld [vmem:[%s3247 + $0x268] sm:$0xff]
  %v3326 = vld [vmem:[%s3247 + $0x270] sm:$0xff]
  %v3327 = vld [vmem:[%s3247 + $0x278] sm:$0xff]
  %v3328 = vld [vmem:[%s3247 + $0x280] sm:$0xff]
  %v3329 = vld [vmem:[%s3247 + $0x288] sm:$0xff]
  %v3330 = vld [vmem:[%s3247 + $0x290] sm:$0xff]
  %v3331 = vld [vmem:[%s3247 + $0x298] sm:$0xff]
  %v3332 = vld [vmem:[%s3247 + $0x2a0] sm:$0xff]
  %v3333 = vld [vmem:[%s3247 + $0x2a8] sm:$0xff]
  %v3334 = vld [vmem:[%s3247 + $0x2b0] sm:$0xff]
  %v3335 = vld [vmem:[%s3247 + $0x2b8] sm:$0xff]
  %v3336 = vld [vmem:[%s3247 + $0x2c0] sm:$0xff]
  %v3337 = vld [vmem:[%s3247 + $0x2c8] sm:$0xff]
  %v3338 = vld [vmem:[%s3247 + $0x2d0] sm:$0xff]
  %v3339 = vld [vmem:[%s3247 + $0x2d8] sm:$0xff]
  %v3340 = vld [vmem:[%s3247 + $0x2e0] sm:$0xff]
  %v3341 = vld [vmem:[%s3247 + $0x2e8] sm:$0xff]
  %v3342 = vld [vmem:[%s3247 + $0x2f0] sm:$0xff]
  %v3343 = vld [vmem:[%s3247 + $0x2f8] sm:$0xff]
  %v3344 = vld [vmem:[%s3247 + $0x300] sm:$0xff]
  %v3345 = vld [vmem:[%s3247 + $0x308] sm:$0xff]
  %v3346 = vld [vmem:[%s3247 + $0x310] sm:$0xff]
  %v3347 = vld [vmem:[%s3247 + $0x318] sm:$0xff]
  %v3348 = vld [vmem:[%s3247 + $0x320] sm:$0xff]
  %v3349 = vld [vmem:[%s3247 + $0x328] sm:$0xff]
  %v3350 = vld [vmem:[%s3247 + $0x330] sm:$0xff]
  %v3351 = vld [vmem:[%s3247 + $0x338] sm:$0xff]
  %v3352 = vld [vmem:[%s3247 + $0x340] sm:$0xff]
  %v3353 = vld [vmem:[%s3247 + $0x348] sm:$0xff]
  %v3354 = vld [vmem:[%s3247 + $0x350] sm:$0xff]
  %v3355 = vld [vmem:[%s3247 + $0x358] sm:$0xff]
  %v3356 = vld [vmem:[%s3247 + $0x360] sm:$0xff]
  %v3357 = vld [vmem:[%s3247 + $0x368] sm:$0xff]
  %v3358 = vld [vmem:[%s3247 + $0x370] sm:$0xff]
  %v3359 = vld [vmem:[%s3247 + $0x378] sm:$0xff]
  %v3360 = vld [vmem:[%s3247 + $0x380] sm:$0xff]
  %v3361 = vld [vmem:[%s3247 + $0x388] sm:$0xff]
  %v3362 = vld [vmem:[%s3247 + $0x390] sm:$0xff]
  %v3363 = vld [vmem:[%s3247 + $0x398] sm:$0xff]
  %v3364 = vld [vmem:[%s3247 + $0x3a0] sm:$0xff]
  %v3365 = vld [vmem:[%s3247 + $0x3a8] sm:$0xff]
  %v3366 = vld [vmem:[%s3247 + $0x3b0] sm:$0xff]
  %v3367 = vld [vmem:[%s3247 + $0x3b8] sm:$0xff]
  %s3368 = scalar_lea.vmem %s3, 9
  %v3369 = vld [vmem:[%s3368] sm:$0x7]
  %v3371 = vlaneseq
  %v3372 = vshrl.u32 %v3371, 7
  %v3373 = vsub.s32 0, %v3372
  %v3374 = vrot.slane %v3369, %v3373
  %v3375 = vlaneseq
  %v3376 = vshrl.u32 %v3375, 7
  %v3377 = vsub.s32 1, %v3376
  %v3378 = vrot.slane %v3369, %v3377
  %v3379 = vlaneseq
  %v3380 = vshrl.u32 %v3379, 7
  %v3381 = vsub.s32 2, %v3380
  %v3382 = vrot.slane %v3369, %v3381
  %v3387 = vsel %vm312, %v3243, 0
  %v3390 = vsel %vm312, %v3246, 0
  %3392 = vmatprep.subr.mxu0 %v3249
  %3393 = vmatpush1.msra.mxu0 %v3248
  %3394 = vmatprep.subr.mxu0 %v3252
  %3395 = vmatpush1.msra.mxu0 %v3251
  %3396 = vmatprep.subr.mxu0 %v3255
  %3397 = vmatpush1.msra.mxu0 %v3254
  %3398 = vmatprep.subr.mxu0 %v3258
  %3399 = vmatpush1.msra.mxu0 %v3257
  %3400 = vmatprep.subr.mxu0 %v3261
  %3401 = vmatpush1.msra.mxu0 %v3260
  %3402 = vmatprep.subr.mxu0 %v3264
  %3403 = vmatpush1.msra.mxu0 %v3263
  %3404 = vmatprep.subr.mxu0 %v3267
  %3405 = vmatpush1.msra.mxu0 %v3266
  %3406 = vmatprep.subr.mxu0 %v3270
  %3407 = vmatpush1.msra.mxu0 %v3269
  %3408 = vmatprep.subr.mxu0 %v3273
  %3409 = vmatpush1.msra.mxu0 %v3272
  %3410 = vmatprep.subr.mxu0 %v3276
  %3411 = vmatpush1.msra.mxu0 %v3275
  %3412 = vmatprep.subr.mxu0 %v3279
  %3413 = vmatpush1.msra.mxu0 %v3278
  %3414 = vmatprep.subr.mxu0 %v3282
  %3415 = vmatpush1.msra.mxu0 %v3281
  %3416 = vmatprep.subr.mxu0 %v3285
  %3417 = vmatpush1.msra.mxu0 %v3284
  %3418 = vmatprep.subr.mxu0 %v3288
  %3419 = vmatpush1.msra.mxu0 %v3287
  %3420 = vmatprep.subr.mxu0 %v3291
  %3421 = vmatpush1.msra.mxu0 %v3290
  %3422 = vmatprep.subr.mxu0 %v3294
  %3423 = vmatpush1.msra.mxu0 %v3293
  %3424 = vmatprep.subr.mxu0 %v3297
  %3425 = vmatpush1.msra.mxu0 %v3296
  %3426 = vmatprep.subr.mxu0 %v3300
  %3427 = vmatpush1.msra.mxu0 %v3299
  %3428 = vmatprep.subr.mxu0 %v3303
  %3429 = vmatpush1.msra.mxu0 %v3302
  %3430 = vmatprep.subr.mxu0 %v3306
  %3431 = vmatpush1.msra.mxu0 %v3305
  %3432 = vmatprep.subr.mxu0 %v3309
  %3433 = vmatpush1.msra.mxu0 %v3308
  %3434 = vmatprep.subr.mxu0 %v3312
  %3435 = vmatpush1.msra.mxu0 %v3311
  %3436 = vmatprep.subr.mxu0 %v3315
  %3437 = vmatpush1.msra.mxu0 %v3314
  %3438 = vmatprep.subr.mxu0 %v3318
  %3439 = vmatpush1.msra.mxu0 %v3317
  %3440 = vmatprep.subr.mxu0 %v3321
  %3441 = vmatpush1.msra.mxu0 %v3320
  %3442 = vmatprep.subr.mxu0 %v3324
  %3443 = vmatpush1.msra.mxu0 %v3323
  %3444 = vmatprep.subr.mxu0 %v3327
  %3445 = vmatpush1.msra.mxu0 %v3326
  %3446 = vmatprep.subr.mxu0 %v3330
  %3447 = vmatpush1.msra.mxu0 %v3329
  %3448 = vmatprep.subr.mxu0 %v3333
  %3449 = vmatpush1.msra.mxu0 %v3332
  %3450 = vmatprep.subr.mxu0 %v3336
  %3451 = vmatpush1.msra.mxu0 %v3335
  %3452 = vmatprep.subr.mxu0 %v3339
  %3453 = vmatpush1.msra.mxu0 %v3338
  %3454 = vmatprep.subr.mxu0 %v3342
  %3455 = vmatpush1.msra.mxu0 %v3341
  %3456 = vmatprep.mubr.f32.mxu0 %v3242
  %3457 = vmatmul.mubr.f32.gmra.mrb[0].mxu0 %v3241
  %v3458 = vpop.f32.mrb[0].mxu0
  %v3459 = vadd.f32 %v3374, %v3458
  %v3460 = vpop.f32.mrb[0].mxu0
  %v3461 = vadd.f32 %v3378, %v3460
  %3462 = vmatprep.mubr.f32.mxu0 %v3245
  %3463 = vmatmul.mubr.f32.gmra.mrb[0].mxu0 %v3244
  %v3464 = vpop.f32.mrb[0].mxu0
  %v3465 = vadd.f32 %v3374, %v3464
  %v3466 = vpop.f32.mrb[0].mxu0
  %v3467 = vadd.f32 %v3378, %v3466
  %3468 = vdwg.mxu0
  %3469 = vmatprep.subr.mxu0 %v3345
  %3470 = vmatpush1.msra.mxu0 %v3344
  %3471 = vmatprep.subr.mxu0 %v3348
  %3472 = vmatpush1.msra.mxu0 %v3347
  %3473 = vmatprep.subr.mxu0 %v3351
  %3474 = vmatpush1.msra.mxu0 %v3350
  %3475 = vmatprep.subr.mxu0 %v3354
  %3476 = vmatpush1.msra.mxu0 %v3353
  %3477 = vmatprep.subr.mxu0 %v3357
  %3478 = vmatpush1.msra.mxu0 %v3356
  %3479 = vmatprep.subr.mxu0 %v3360
  %3480 = vmatpush1.msra.mxu0 %v3359
  %3481 = vmatprep.subr.mxu0 %v3363
  %3482 = vmatpush1.msra.mxu0 %v3362
  %3483 = vmatprep.subr.mxu0 %v3366
  %3484 = vmatpush1.msra.mxu0 %v3365
  %3485 = vmatprep.subr.mxu0 0.0
  %3486 = vmatpush1.msra.mxu0 0.0
  %3487 = vmatprep.subr.mxu0 0.0
  %3488 = vmatpush1.msra.mxu0 0.0
  %3489 = vmatprep.subr.mxu0 0.0
  %3490 = vmatpush1.msra.mxu0 0.0
  %3491 = vmatprep.subr.mxu0 0.0
  %3492 = vmatpush1.msra.mxu0 0.0
  %3493 = vmatprep.subr.mxu0 0.0
  %3494 = vmatpush1.msra.mxu0 0.0
  %3495 = vmatprep.subr.mxu0 0.0
  %3496 = vmatpush1.msra.mxu0 0.0
  %3497 = vmatprep.subr.mxu0 0.0
  %3498 = vmatpush1.msra.mxu0 0.0
  %3499 = vmatprep.subr.mxu0 0.0
  %3500 = vmatpush1.msra.mxu0 0.0
  %3501 = vmatprep.subr.mxu0 0.0
  %3502 = vmatpush1.msra.mxu0 0.0
  %3503 = vmatprep.subr.mxu0 0.0
  %3504 = vmatpush1.msra.mxu0 0.0
  %3505 = vmatprep.subr.mxu0 0.0
  %3506 = vmatpush1.msra.mxu0 0.0
  %3507 = vmatprep.subr.mxu0 0.0
  %3508 = vmatpush1.msra.mxu0 0.0
  %3509 = vmatprep.subr.mxu0 0.0
  %3510 = vmatpush1.msra.mxu0 0.0
  %3511 = vmatprep.subr.mxu0 0.0
  %3512 = vmatpush1.msra.mxu0 0.0
  %3513 = vmatprep.subr.mxu0 0.0
  %3514 = vmatpush1.msra.mxu0 0.0
  %3515 = vmatprep.subr.mxu0 0.0
  %3516 = vmatpush1.msra.mxu0 0.0
  %3517 = vmatprep.subr.mxu0 0.0
  %3518 = vmatpush1.msra.mxu0 0.0
  %3519 = vmatprep.subr.mxu0 0.0
  %3520 = vmatpush1.msra.mxu0 0.0
  %3521 = vmatprep.subr.mxu0 0.0
  %3522 = vmatpush1.msra.mxu0 0.0
  %3523 = vmatprep.subr.mxu0 0.0
  %3524 = vmatpush1.msra.mxu0 0.0
  %3525 = vmatprep.subr.mxu0 0.0
  %3526 = vmatpush1.msra.mxu0 0.0
  %3527 = vmatprep.subr.mxu0 0.0
  %3528 = vmatpush1.msra.mxu0 0.0
  %3529 = vmatprep.subr.mxu0 0.0
  %3530 = vmatpush1.msra.mxu0 0.0
  %3531 = vmatprep.subr.mxu0 0.0
  %3532 = vmatpush1.msra.mxu0 0.0
  %3533 = vmatprep.mubr.f32.mxu0 0.0
  %3534 = vmatmul.mubr.f32.gmra.mrb[0].mxu0 %v3387
  %v3535 = vpop.f32.mrb[0].mxu0
  %v3536 = vadd.f32 %v3459, %v3535
  %v3537 = vpop.f32.mrb[0].mxu0
  %v3538 = vadd.f32 %v3461, %v3537
  %3539 = vmatprep.mubr.f32.mxu0 0.0
  %3540 = vmatmul.mubr.f32.gmra.mrb[0].mxu0 %v3390
  %v3541 = vpop.f32.mrb[0].mxu0
  %v3542 = vadd.f32 %v3465, %v3541
  %v3543 = vpop.f32.mrb[0].mxu0
  %v3544 = vadd.f32 %v3467, %v3543
  %3545 = vdwg.mxu0
  %3546 = vmatprep.subr.mxu0 0.0
  %3547 = vmatpush1.msra.mxu0 %v3250
  %3548 = vmatprep.subr.mxu0 0.0
  %3549 = vmatpush1.msra.mxu0 %v3253
  %3550 = vmatprep.subr.mxu0 0.0
  %3551 = vmatpush1.msra.mxu0 %v3256
  %3552 = vmatprep.subr.mxu0 0.0
  %3553 = vmatpush1.msra.mxu0 %v3259
  %3554 = vmatprep.subr.mxu0 0.0
  %3555 = vmatpush1.msra.mxu0 %v3262
  %3556 = vmatprep.subr.mxu0 0.0
  %3557 = vmatpush1.msra.mxu0 %v3265
  %3558 = vmatprep.subr.mxu0 0.0
  %3559 = vmatpush1.msra.mxu0 %v3268
  %3560 = vmatprep.subr.mxu0 0.0
  %3561 = vmatpush1.msra.mxu0 %v3271
  %3562 = vmatprep.subr.mxu0 0.0
  %3563 = vmatpush1.msra.mxu0 %v3274
  %3564 = vmatprep.subr.mxu0 0.0
  %3565 = vmatpush1.msra.mxu0 %v3277
  %3566 = vmatprep.subr.mxu0 0.0
  %3567 = vmatpush1.msra.mxu0 %v3280
  %3568 = vmatprep.subr.mxu0 0.0
  %3569 = vmatpush1.msra.mxu0 %v3283
  %3570 = vmatprep.subr.mxu0 0.0
  %3571 = vmatpush1.msra.mxu0 %v3286
  %3572 = vmatprep.subr.mxu0 0.0
  %3573 = vmatpush1.msra.mxu0 %v3289
  %3574 = vmatprep.subr.mxu0 0.0
  %3575 = vmatpush1.msra.mxu0 %v3292
  %3576 = vmatprep.subr.mxu0 0.0
  %3577 = vmatpush1.msra.mxu0 %v3295
  %3578 = vmatprep.subr.mxu0 0.0
  %3579 = vmatpush1.msra.mxu0 %v3298
  %3580 = vmatprep.subr.mxu0 0.0
  %3581 = vmatpush1.msra.mxu0 %v3301
  %3582 = vmatprep.subr.mxu0 0.0
  %3583 = vmatpush1.msra.mxu0 %v3304
  %3584 = vmatprep.subr.mxu0 0.0
  %3585 = vmatpush1.msra.mxu0 %v3307
  %3586 = vmatprep.subr.mxu0 0.0
  %3587 = vmatpush1.msra.mxu0 %v3310
  %3588 = vmatprep.subr.mxu0 0.0
  %3589 = vmatpush1.msra.mxu0 %v3313
  %3590 = vmatprep.subr.mxu0 0.0
  %3591 = vmatpush1.msra.mxu0 %v3316
  %3592 = vmatprep.subr.mxu0 0.0
  %3593 = vmatpush1.msra.mxu0 %v3319
  %3594 = vmatprep.subr.mxu0 0.0
  %3595 = vmatpush1.msra.mxu0 %v3322
  %3596 = vmatprep.subr.mxu0 0.0
  %3597 = vmatpush1.msra.mxu0 %v3325
  %3598 = vmatprep.subr.mxu0 0.0
  %3599 = vmatpush1.msra.mxu0 %v3328
  %3600 = vmatprep.subr.mxu0 0.0
  %3601 = vmatpush1.msra.mxu0 %v3331
  %3602 = vmatprep.subr.mxu0 0.0
  %3603 = vmatpush1.msra.mxu0 %v3334
  %3604 = vmatprep.subr.mxu0 0.0
  %3605 = vmatpush1.msra.mxu0 %v3337
  %3606 = vmatprep.subr.mxu0 0.0
  %3607 = vmatpush1.msra.mxu0 %v3340
  %3608 = vmatprep.subr.mxu0 0.0
  %3609 = vmatpush1.msra.mxu0 %v3343
  %3610 = vmatprep.mubr.f32.mxu0 %v3242
  %3611 = vmatmul.mubr.f32.gmra.mrb[0].mxu0 %v3241
  %v3612 = vpop.f32.mrb[0].mxu0
  %v3613 = vadd.f32 %v3382, %v3612
  %v3614 = vpop.f32.mrb[0].mxu0
  %3615 = vmatprep.mubr.f32.mxu0 %v3245
  %3616 = vmatmul.mubr.f32.gmra.mrb[0].mxu0 %v3244
  %v3617 = vpop.f32.mrb[0].mxu0
  %v3618 = vadd.f32 %v3382, %v3617
  %v3619 = vpop.f32.mrb[0].mxu0
  %3620 = vdwg.mxu0
  %3621 = vmatprep.subr.mxu0 0.0
  %3622 = vmatpush1.msra.mxu0 %v3346
  %3623 = vmatprep.subr.mxu0 0.0
  %3624 = vmatpush1.msra.mxu0 %v3349
  %3625 = vmatprep.subr.mxu0 0.0
  %3626 = vmatpush1.msra.mxu0 %v3352
  %3627 = vmatprep.subr.mxu0 0.0
  %3628 = vmatpush1.msra.mxu0 %v3355
  %3629 = vmatprep.subr.mxu0 0.0
  %3630 = vmatpush1.msra.mxu0 %v3358
  %3631 = vmatprep.subr.mxu0 0.0
  %3632 = vmatpush1.msra.mxu0 %v3361
  %3633 = vmatprep.subr.mxu0 0.0
  %3634 = vmatpush1.msra.mxu0 %v3364
  %3635 = vmatprep.subr.mxu0 0.0
  %3636 = vmatpush1.msra.mxu0 %v3367
  %3637 = vmatprep.subr.mxu0 0.0
  %3638 = vmatpush1.msra.mxu0 0.0
  %3639 = vmatprep.subr.mxu0 0.0
  %3640 = vmatpush1.msra.mxu0 0.0
  %3641 = vmatprep.subr.mxu0 0.0
  %3642 = vmatpush1.msra.mxu0 0.0
  %3643 = vmatprep.subr.mxu0 0.0
  %3644 = vmatpush1.msra.mxu0 0.0
  %3645 = vmatprep.subr.mxu0 0.0
  %3646 = vmatpush1.msra.mxu0 0.0
  %3647 = vmatprep.subr.mxu0 0.0
  %3648 = vmatpush1.msra.mxu0 0.0
  %3649 = vmatprep.subr.mxu0 0.0
  %3650 = vmatpush1.msra.mxu0 0.0
  %3651 = vmatprep.subr.mxu0 0.0
  %3652 = vmatpush1.msra.mxu0 0.0
  %3653 = vmatprep.subr.mxu0 0.0
  %3654 = vmatpush1.msra.mxu0 0.0
  %3655 = vmatprep.subr.mxu0 0.0
  %3656 = vmatpush1.msra.mxu0 0.0
  %3657 = vmatprep.subr.mxu0 0.0
  %3658 = vmatpush1.msra.mxu0 0.0
  %3659 = vmatprep.subr.mxu0 0.0
  %3660 = vmatpush1.msra.mxu0 0.0
  %3661 = vmatprep.subr.mxu0 0.0
  %3662 = vmatpush1.msra.mxu0 0.0
  %3663 = vmatprep.subr.mxu0 0.0
  %3664 = vmatpush1.msra.mxu0 0.0
  %3665 = vmatprep.subr.mxu0 0.0
  %3666 = vmatpush1.msra.mxu0 0.0
  %3667 = vmatprep.subr.mxu0 0.0
  %3668 = vmatpush1.msra.mxu0 0.0
  %3669 = vmatprep.subr.mxu0 0.0
  %3670 = vmatpush1.msra.mxu0 0.0
  %3671 = vmatprep.subr.mxu0 0.0
  %3672 = vmatpush1.msra.mxu0 0.0
  %3673 = vmatprep.subr.mxu0 0.0
  %3674 = vmatpush1.msra.mxu0 0.0
  %3675 = vmatprep.subr.mxu0 0.0
  %3676 = vmatpush1.msra.mxu0 0.0
  %3677 = vmatprep.subr.mxu0 0.0
  %3678 = vmatpush1.msra.mxu0 0.0
  %3679 = vmatprep.subr.mxu0 0.0
  %3680 = vmatpush1.msra.mxu0 0.0
  %3681 = vmatprep.subr.mxu0 0.0
  %3682 = vmatpush1.msra.mxu0 0.0
  %3683 = vmatprep.subr.mxu0 0.0
  %3684 = vmatpush1.msra.mxu0 0.0
  %3685 = vmatprep.mubr.f32.mxu0 0.0
  %3686 = vmatmul.mubr.f32.gmra.mrb[0].mxu0 %v3387
  %v3687 = vpop.f32.mrb[0].mxu0
  %v3688 = vadd.f32 %v3613, %v3687
  %v3689 = vpop.f32.mrb[0].mxu0
  %3690 = vmatprep.mubr.f32.mxu0 0.0
  %3691 = vmatmul.mubr.f32.gmra.mrb[0].mxu0 %v3390
  %v3692 = vpop.f32.mrb[0].mxu0
  %v3693 = vadd.f32 %v3618, %v3692
  %v3694 = vpop.f32.mrb[0].mxu0
  %3695 = vdwg.mxu0
  %v3696 = vadd.f32 %v3536, %v3542
  %v3697 = vrot.slane %v3696, 4
  %v3698 = vadd.f32 %v3696, %v3697
  %v3699 = vrot.slane %v3698, 2
  %v3700 = vadd.f32 %v3698, %v3699
  %v3701 = vrot.slane %v3700, 1
  %v3702 = vadd.f32 %v3700, %v3701
  %v3703 = vadd.f32 %v3538, %v3544
  %v3704 = vrot.slane %v3703, 4
  %v3705 = vadd.f32 %v3703, %v3704
  %v3706 = vrot.slane %v3705, 2
  %v3707 = vadd.f32 %v3705, %v3706
  %v3708 = vrot.slane %v3707, 1
  %v3709 = vadd.f32 %v3707, %v3708
  %v3710 = vsel %vm312, %v3688, 0.0
  %v3711 = vsel %vm312, %v3693, 0.0
  %v3712 = vadd.f32 %v3710, %v3711
  %v3713 = vrot.slane %v3712, 4
  %v3714 = vadd.f32 %v3712, %v3713
  %v3715 = vrot.slane %v3714, 2
  %v3716 = vadd.f32 %v3714, %v3715
  %v3717 = vrot.slane %v3716, 1
  %v3718 = vadd.f32 %v3716, %v3717
  %v3719 = vmul.f32 %v3536, %v3536
  %v3720 = vmul.f32 %v3538, %v3538
  %v3721 = vmul.f32 %v3688, %v3688
  %v3722 = vmul.f32 %v3542, %v3542
  %v3723 = vmul.f32 %v3544, %v3544
  %v3724 = vmul.f32 %v3693, %v3693
  %v3725 = vadd.f32 %v3719, %v3722
  %v3726 = vrot.slane %v3725, 4
  %v3727 = vadd.f32 %v3725, %v3726
  %v3728 = vrot.slane %v3727, 2
  %v3729 = vadd.f32 %v3727, %v3728
  %v3730 = vrot.slane %v3729, 1
  %v3731 = vadd.f32 %v3729, %v3730
  %v3732 = vadd.f32 %v3720, %v3723
  %v3733 = vrot.slane %v3732, 4
  %v3734 = vadd.f32 %v3732, %v3733
  %v3735 = vrot.slane %v3734, 2
  %v3736 = vadd.f32 %v3734, %v3735
  %v3737 = vrot.slane %v3736, 1
  %v3738 = vadd.f32 %v3736, %v3737
  %v3739 = vsel %vm312, %v3721, 0.0
  %v3740 = vsel %vm312, %v3724, 0.0
  %v3741 = vadd.f32 %v3739, %v3740
  %v3742 = vrot.slane %v3741, 4
  %v3743 = vadd.f32 %v3741, %v3742
  %v3744 = vrot.slane %v3743, 2
  %v3745 = vadd.f32 %v3743, %v3744
  %v3746 = vrot.slane %v3745, 1
  %v3747 = vadd.f32 %v3745, %v3746
  %v3749 = vsel %vm312, %v3718, 0
  %3751 = vmatprep.subr.mxu0 0.0
  %3752 = vmatpush1.msra.mxu0 %v29
  %3753 = vmatprep.subr.mxu0 0.0
  %3754 = vmatpush1.msra.mxu0 %v30
  %3755 = vmatprep.subr.mxu0 0.0
  %3756 = vmatpush1.msra.mxu0 %v31
  %3757 = vmatprep.subr.mxu0 0.0
  %3758 = vmatpush1.msra.mxu0 %v32
  %3759 = vmatprep.subr.mxu0 0.0
  %3760 = vmatpush1.msra.mxu0 %v33
  %3761 = vmatprep.subr.mxu0 0.0
  %3762 = vmatpush1.msra.mxu0 %v34
  %3763 = vmatprep.subr.mxu0 0.0
  %3764 = vmatpush1.msra.mxu0 %v35
  %3765 = vmatprep.subr.mxu0 0.0
  %3766 = vmatpush1.msra.mxu0 %v36
  %3767 = vmatprep.subr.mxu0 0.0
  %3768 = vmatpush1.msra.mxu0 %v37
  %3769 = vmatprep.subr.mxu0 0.0
  %3770 = vmatpush1.msra.mxu0 %v38
  %3771 = vmatprep.subr.mxu0 0.0
  %3772 = vmatpush1.msra.mxu0 %v39
  %3773 = vmatprep.subr.mxu0 0.0
  %3774 = vmatpush1.msra.mxu0 %v40
  %3775 = vmatprep.subr.mxu0 0.0
  %3776 = vmatpush1.msra.mxu0 %v41
  %3777 = vmatprep.subr.mxu0 0.0
  %3778 = vmatpush1.msra.mxu0 %v42
  %3779 = vmatprep.subr.mxu0 0.0
  %3780 = vmatpush1.msra.mxu0 %v43
  %3781 = vmatprep.subr.mxu0 0.0
  %3782 = vmatpush1.msra.mxu0 %v44
  %3783 = vmatprep.subr.mxu0 0.0
  %3784 = vmatpush1.msra.mxu0 %v45
  %3785 = vmatprep.subr.mxu0 0.0
  %3786 = vmatpush1.msra.mxu0 %v46
  %3787 = vmatprep.subr.mxu0 0.0
  %3788 = vmatpush1.msra.mxu0 %v47
  %3789 = vmatprep.subr.mxu0 0.0
  %3790 = vmatpush1.msra.mxu0 %v48
  %3791 = vmatprep.subr.mxu0 0.0
  %3792 = vmatpush1.msra.mxu0 %v49
  %3793 = vmatprep.subr.mxu0 0.0
  %3794 = vmatpush1.msra.mxu0 %v50
  %3795 = vmatprep.subr.mxu0 0.0
  %3796 = vmatpush1.msra.mxu0 %v51
  %3797 = vmatprep.subr.mxu0 0.0
  %3798 = vmatpush1.msra.mxu0 %v52
  %3799 = vmatprep.subr.mxu0 0.0
  %3800 = vmatpush1.msra.mxu0 %v53
  %3801 = vmatprep.subr.mxu0 0.0
  %3802 = vmatpush1.msra.mxu0 %v54
  %3803 = vmatprep.subr.mxu0 0.0
  %3804 = vmatpush1.msra.mxu0 %v55
  %3805 = vmatprep.subr.mxu0 0.0
  %3806 = vmatpush1.msra.mxu0 %v56
  %3807 = vmatprep.subr.mxu0 0.0
  %3808 = vmatpush1.msra.mxu0 %v57
  %3809 = vmatprep.subr.mxu0 0.0
  %3810 = vmatpush1.msra.mxu0 %v58
  %3811 = vmatprep.subr.mxu0 0.0
  %3812 = vmatpush1.msra.mxu0 %v59
  %3813 = vmatprep.subr.mxu0 0.0
  %3814 = vmatpush1.msra.mxu0 %v60
  %3815 = vmatprep.mubr.f32.mxu0 %v3709
  %3816 = vmatmul.mubr.f32.gmra.mrb[0].mxu0 %v3702
  %v3817 = vpop.f32.mrb[0].mxu0
  %v3818 = vadd.f32 0.0, %v3817
  %v3819 = vpop.f32.mrb[0].mxu0
  %3820 = vdwg.mxu0
  %3821 = vmatprep.subr.mxu0 0.0
  %3822 = vmatpush1.msra.mxu0 %v61
  %3823 = vmatprep.subr.mxu0 0.0
  %3824 = vmatpush1.msra.mxu0 %v62
  %3825 = vmatprep.subr.mxu0 0.0
  %3826 = vmatpush1.msra.mxu0 %v63
  %3827 = vmatprep.subr.mxu0 0.0
  %3828 = vmatpush1.msra.mxu0 %v64
  %3829 = vmatprep.subr.mxu0 0.0
  %3830 = vmatpush1.msra.mxu0 %v65
  %3831 = vmatprep.subr.mxu0 0.0
  %3832 = vmatpush1.msra.mxu0 %v66
  %3833 = vmatprep.subr.mxu0 0.0
  %3834 = vmatpush1.msra.mxu0 %v67
  %3835 = vmatprep.subr.mxu0 0.0
  %3836 = vmatpush1.msra.mxu0 %v68
  %3837 = vmatprep.subr.mxu0 0.0
  %3838 = vmatpush1.msra.mxu0 0.0
  %3839 = vmatprep.subr.mxu0 0.0
  %3840 = vmatpush1.msra.mxu0 0.0
  %3841 = vmatprep.subr.mxu0 0.0
  %3842 = vmatpush1.msra.mxu0 0.0
  %3843 = vmatprep.subr.mxu0 0.0
  %3844 = vmatpush1.msra.mxu0 0.0
  %3845 = vmatprep.subr.mxu0 0.0
  %3846 = vmatpush1.msra.mxu0 0.0
  %3847 = vmatprep.subr.mxu0 0.0
  %3848 = vmatpush1.msra.mxu0 0.0
  %3849 = vmatprep.subr.mxu0 0.0
  %3850 = vmatpush1.msra.mxu0 0.0
  %3851 = vmatprep.subr.mxu0 0.0
  %3852 = vmatpush1.msra.mxu0 0.0
  %3853 = vmatprep.subr.mxu0 0.0
  %3854 = vmatpush1.msra.mxu0 0.0
  %3855 = vmatprep.subr.mxu0 0.0
  %3856 = vmatpush1.msra.mxu0 0.0
  %3857 = vmatprep.subr.mxu0 0.0
  %3858 = vmatpush1.msra.mxu0 0.0
  %3859 = vmatprep.subr.mxu0 0.0
  %3860 = vmatpush1.msra.mxu0 0.0
  %3861 = vmatprep.subr.mxu0 0.0
  %3862 = vmatpush1.msra.mxu0 0.0
  %3863 = vmatprep.subr.mxu0 0.0
  %3864 = vmatpush1.msra.mxu0 0.0
  %3865 = vmatprep.subr.mxu0 0.0
  %3866 = vmatpush1.msra.mxu0 0.0
  %3867 = vmatprep.subr.mxu0 0.0
  %3868 = vmatpush1.msra.mxu0 0.0
  %3869 = vmatprep.subr.mxu0 0.0
  %3870 = vmatpush1.msra.mxu0 0.0
  %3871 = vmatprep.subr.mxu0 0.0
  %3872 = vmatpush1.msra.mxu0 0.0
  %3873 = vmatprep.subr.mxu0 0.0
  %3874 = vmatpush1.msra.mxu0 0.0
  %3875 = vmatprep.subr.mxu0 0.0
  %3876 = vmatpush1.msra.mxu0 0.0
  %3877 = vmatprep.subr.mxu0 0.0
  %3878 = vmatpush1.msra.mxu0 0.0
  %3879 = vmatprep.subr.mxu0 0.0
  %3880 = vmatpush1.msra.mxu0 0.0
  %3881 = vmatprep.subr.mxu0 0.0
  %3882 = vmatpush1.msra.mxu0 0.0
  %3883 = vmatprep.subr.mxu0 0.0
  %3884 = vmatpush1.msra.mxu0 0.0
  %3885 = vmatprep.mubr.f32.mxu0 0.0
  %3886 = vmatmul.mubr.f32.gmra.mrb[0].mxu0 %v3749
  %v3887 = vpop.f32.mrb[0].mxu0
  %v3888 = vadd.f32 %v3818, %v3887
  %v3889 = vpop.f32.mrb[0].mxu0
  %3890 = vdwg.mxu0
  %v3892 = vsel %vm312, %v3747, 0
  %3894 = vmatprep.subr.mxu0 0.0
  %3895 = vmatpush1.msra.mxu0 %v29
  %3896 = vmatprep.subr.mxu0 0.0
  %3897 = vmatpush1.msra.mxu0 %v30
  %3898 = vmatprep.subr.mxu0 0.0
  %3899 = vmatpush1.msra.mxu0 %v31
  %3900 = vmatprep.subr.mxu0 0.0
  %3901 = vmatpush1.msra.mxu0 %v32
  %3902 = vmatprep.subr.mxu0 0.0
  %3903 = vmatpush1.msra.mxu0 %v33
  %3904 = vmatprep.subr.mxu0 0.0
  %3905 = vmatpush1.msra.mxu0 %v34
  %3906 = vmatprep.subr.mxu0 0.0
  %3907 = vmatpush1.msra.mxu0 %v35
  %3908 = vmatprep.subr.mxu0 0.0
  %3909 = vmatpush1.msra.mxu0 %v36
  %3910 = vmatprep.subr.mxu0 0.0
  %3911 = vmatpush1.msra.mxu0 %v37
  %3912 = vmatprep.subr.mxu0 0.0
  %3913 = vmatpush1.msra.mxu0 %v38
  %3914 = vmatprep.subr.mxu0 0.0
  %3915 = vmatpush1.msra.mxu0 %v39
  %3916 = vmatprep.subr.mxu0 0.0
  %3917 = vmatpush1.msra.mxu0 %v40
  %3918 = vmatprep.subr.mxu0 0.0
  %3919 = vmatpush1.msra.mxu0 %v41
  %3920 = vmatprep.subr.mxu0 0.0
  %3921 = vmatpush1.msra.mxu0 %v42
  %3922 = vmatprep.subr.mxu0 0.0
  %3923 = vmatpush1.msra.mxu0 %v43
  %3924 = vmatprep.subr.mxu0 0.0
  %3925 = vmatpush1.msra.mxu0 %v44
  %3926 = vmatprep.subr.mxu0 0.0
  %3927 = vmatpush1.msra.mxu0 %v45
  %3928 = vmatprep.subr.mxu0 0.0
  %3929 = vmatpush1.msra.mxu0 %v46
  %3930 = vmatprep.subr.mxu0 0.0
  %3931 = vmatpush1.msra.mxu0 %v47
  %3932 = vmatprep.subr.mxu0 0.0
  %3933 = vmatpush1.msra.mxu0 %v48
  %3934 = vmatprep.subr.mxu0 0.0
  %3935 = vmatpush1.msra.mxu0 %v49
  %3936 = vmatprep.subr.mxu0 0.0
  %3937 = vmatpush1.msra.mxu0 %v50
  %3938 = vmatprep.subr.mxu0 0.0
  %3939 = vmatpush1.msra.mxu0 %v51
  %3940 = vmatprep.subr.mxu0 0.0
  %3941 = vmatpush1.msra.mxu0 %v52
  %3942 = vmatprep.subr.mxu0 0.0
  %3943 = vmatpush1.msra.mxu0 %v53
  %3944 = vmatprep.subr.mxu0 0.0
  %3945 = vmatpush1.msra.mxu0 %v54
  %3946 = vmatprep.subr.mxu0 0.0
  %3947 = vmatpush1.msra.mxu0 %v55
  %3948 = vmatprep.subr.mxu0 0.0
  %3949 = vmatpush1.msra.mxu0 %v56
  %3950 = vmatprep.subr.mxu0 0.0
  %3951 = vmatpush1.msra.mxu0 %v57
  %3952 = vmatprep.subr.mxu0 0.0
  %3953 = vmatpush1.msra.mxu0 %v58
  %3954 = vmatprep.subr.mxu0 0.0
  %3955 = vmatpush1.msra.mxu0 %v59
  %3956 = vmatprep.subr.mxu0 0.0
  %3957 = vmatpush1.msra.mxu0 %v60
  %3958 = vmatprep.mubr.f32.mxu0 %v3738
  %3959 = vmatmul.mubr.f32.gmra.mrb[0].mxu0 %v3731
  %v3960 = vpop.f32.mrb[0].mxu0
  %v3961 = vadd.f32 0.0, %v3960
  %v3962 = vpop.f32.mrb[0].mxu0
  %3963 = vdwg.mxu0
  %3964 = vmatprep.subr.mxu0 0.0
  %3965 = vmatpush1.msra.mxu0 %v61
  %3966 = vmatprep.subr.mxu0 0.0
  %3967 = vmatpush1.msra.mxu0 %v62
  %3968 = vmatprep.subr.mxu0 0.0
  %3969 = vmatpush1.msra.mxu0 %v63
  %3970 = vmatprep.subr.mxu0 0.0
  %3971 = vmatpush1.msra.mxu0 %v64
  %3972 = vmatprep.subr.mxu0 0.0
  %3973 = vmatpush1.msra.mxu0 %v65
  %3974 = vmatprep.subr.mxu0 0.0
  %3975 = vmatpush1.msra.mxu0 %v66
  %3976 = vmatprep.subr.mxu0 0.0
  %3977 = vmatpush1.msra.mxu0 %v67
  %3978 = vmatprep.subr.mxu0 0.0
  %3979 = vmatpush1.msra.mxu0 %v68
  %3980 = vmatprep.subr.mxu0 0.0
  %3981 = vmatpush1.msra.mxu0 0.0
  %3982 = vmatprep.subr.mxu0 0.0
  %3983 = vmatpush1.msra.mxu0 0.0
  %3984 = vmatprep.subr.mxu0 0.0
  %3985 = vmatpush1.msra.mxu0 0.0
  %3986 = vmatprep.subr.mxu0 0.0
  %3987 = vmatpush1.msra.mxu0 0.0
  %3988 = vmatprep.subr.mxu0 0.0
  %3989 = vmatpush1.msra.mxu0 0.0
  %3990 = vmatprep.subr.mxu0 0.0
  %3991 = vmatpush1.msra.mxu0 0.0
  %3992 = vmatprep.subr.mxu0 0.0
  %3993 = vmatpush1.msra.mxu0 0.0
  %3994 = vmatprep.subr.mxu0 0.0
  %3995 = vmatpush1.msra.mxu0 0.0
  %3996 = vmatprep.subr.mxu0 0.0
  %3997 = vmatpush1.msra.mxu0 0.0
  %3998 = vmatprep.subr.mxu0 0.0
  %3999 = vmatpush1.msra.mxu0 0.0
  %4000 = vmatprep.subr.mxu0 0.0
  %4001 = vmatpush1.msra.mxu0 0.0
  %4002 = vmatprep.subr.mxu0 0.0
  %4003 = vmatpush1.msra.mxu0 0.0
  %4004 = vmatprep.subr.mxu0 0.0
  %4005 = vmatpush1.msra.mxu0 0.0
  %4006 = vmatprep.subr.mxu0 0.0
  %4007 = vmatpush1.msra.mxu0 0.0
  %4008 = vmatprep.subr.mxu0 0.0
  %4009 = vmatpush1.msra.mxu0 0.0
  %4010 = vmatprep.subr.mxu0 0.0
  %4011 = vmatpush1.msra.mxu0 0.0
  %4012 = vmatprep.subr.mxu0 0.0
  %4013 = vmatpush1.msra.mxu0 0.0
  %4014 = vmatprep.subr.mxu0 0.0
  %4015 = vmatpush1.msra.mxu0 0.0
  %4016 = vmatprep.subr.mxu0 0.0
  %4017 = vmatpush1.msra.mxu0 0.0
  %4018 = vmatprep.subr.mxu0 0.0
  %4019 = vmatpush1.msra.mxu0 0.0
  %4020 = vmatprep.subr.mxu0 0.0
  %4021 = vmatpush1.msra.mxu0 0.0
  %4022 = vmatprep.subr.mxu0 0.0
  %4023 = vmatpush1.msra.mxu0 0.0
  %4024 = vmatprep.subr.mxu0 0.0
  %4025 = vmatpush1.msra.mxu0 0.0
  %4026 = vmatprep.subr.mxu0 0.0
  %4027 = vmatpush1.msra.mxu0 0.0
  %4028 = vmatprep.mubr.f32.mxu0 0.0
  %4029 = vmatmul.mubr.f32.gmra.mrb[0].mxu0 %v3892
  %v4030 = vpop.f32.mrb[0].mxu0
  %v4031 = vadd.f32 %v3961, %v4030
  %v4032 = vpop.f32.mrb[0].mxu0
  %4033 = vdwg.mxu0
  %v4034 = vmul.f32 %v3888, 0.003125
  %v4035 = vmul.f32 %v4031, 0.003125
  %v4036 = vmul.f32 %v4034, %v4034
  %v4037 = vsub.f32 %v4035, %v4036
  %v4038 = vmax.f32 %v4037, 0.0
  %s4039 = scalar_lea.vmem %s4, 3
  %v4040 = vld [vmem:[%s4039] sm:$0x1]
  %v4041 = vadd.f32 %v4038, 1e-05
  %v4042 = vrsqrt.pop %v4041
  %v4043 = vmul.f32 %v4040, %v4042
  %s4044 = scalar_lea.vmem %s5, 3
  %v4045 = vld [vmem:[%s4044] sm:$0x1]
  %v4046 = vmul.f32 %v4034, %v4043
  %v4047 = vsub.f32 %v4045, %v4046
  %v4049 = vsel %vm649, %v4043, 0
  %4051 = vmatprep.subr.mxu0 %v70
  %4052 = vmatpush1.msra.mxu0 %v69
  %4053 = vmatprep.subr.mxu0 %v73
  %4054 = vmatpush1.msra.mxu0 %v72
  %4055 = vmatprep.subr.mxu0 0.0
  %4056 = vmatpush1.msra.mxu0 0.0
  %4057 = vmatprep.subr.mxu0 0.0
  %4058 = vmatpush1.msra.mxu0 0.0
  %4059 = vmatprep.subr.mxu0 0.0
  %4060 = vmatpush1.msra.mxu0 0.0
  %4061 = vmatprep.subr.mxu0 0.0
  %4062 = vmatpush1.msra.mxu0 0.0
  %4063 = vmatprep.subr.mxu0 0.0
  %4064 = vmatpush1.msra.mxu0 0.0
  %4065 = vmatprep.subr.mxu0 0.0
  %4066 = vmatpush1.msra.mxu0 0.0
  %4067 = vmatprep.subr.mxu0 0.0
  %4068 = vmatpush1.msra.mxu0 0.0
  %4069 = vmatprep.subr.mxu0 0.0
  %4070 = vmatpush1.msra.mxu0 0.0
  %4071 = vmatprep.subr.mxu0 0.0
  %4072 = vmatpush1.msra.mxu0 0.0
  %4073 = vmatprep.subr.mxu0 0.0
  %4074 = vmatpush1.msra.mxu0 0.0
  %4075 = vmatprep.subr.mxu0 0.0
  %4076 = vmatpush1.msra.mxu0 0.0
  %4077 = vmatprep.subr.mxu0 0.0
  %4078 = vmatpush1.msra.mxu0 0.0
  %4079 = vmatprep.subr.mxu0 0.0
  %4080 = vmatpush1.msra.mxu0 0.0
  %4081 = vmatprep.subr.mxu0 0.0
  %4082 = vmatpush1.msra.mxu0 0.0
  %4083 = vmatprep.subr.mxu0 0.0
  %4084 = vmatpush1.msra.mxu0 0.0
  %4085 = vmatprep.subr.mxu0 0.0
  %4086 = vmatpush1.msra.mxu0 0.0
  %4087 = vmatprep.subr.mxu0 0.0
  %4088 = vmatpush1.msra.mxu0 0.0
  %4089 = vmatprep.subr.mxu0 0.0
  %4090 = vmatpush1.msra.mxu0 0.0
  %4091 = vmatprep.subr.mxu0 0.0
  %4092 = vmatpush1.msra.mxu0 0.0
  %4093 = vmatprep.subr.mxu0 0.0
  %4094 = vmatpush1.msra.mxu0 0.0
  %4095 = vmatprep.subr.mxu0 0.0
  %4096 = vmatpush1.msra.mxu0 0.0
  %4097 = vmatprep.subr.mxu0 0.0
  %4098 = vmatpush1.msra.mxu0 0.0
  %4099 = vmatprep.subr.mxu0 0.0
  %4100 = vmatpush1.msra.mxu0 0.0
  %4101 = vmatprep.subr.mxu0 0.0
  %4102 = vmatpush1.msra.mxu0 0.0
  %4103 = vmatprep.subr.mxu0 0.0
  %4104 = vmatpush1.msra.mxu0 0.0
  %4105 = vmatprep.subr.mxu0 0.0
  %4106 = vmatpush1.msra.mxu0 0.0
  %4107 = vmatprep.subr.mxu0 0.0
  %4108 = vmatpush1.msra.mxu0 0.0
  %4109 = vmatprep.subr.mxu0 0.0
  %4110 = vmatpush1.msra.mxu0 0.0
  %4111 = vmatprep.subr.mxu0 0.0
  %4112 = vmatpush1.msra.mxu0 0.0
  %4113 = vmatprep.subr.mxu0 0.0
  %4114 = vmatpush1.msra.mxu0 0.0
  %4115 = vmatprep.mubr.f32.mxu0 0.0
  %4116 = vmatmul.mubr.f32.gmra.mrb[0].mxu0 %v4049
  %v4117 = vpop.f32.mrb[0].mxu0
  %v4118 = vadd.f32 0.0, %v4117
  %v4119 = vpop.f32.mrb[0].mxu0
  %v4120 = vadd.f32 0.0, %v4119
  %4121 = vdwg.mxu0
  %4122 = vmatprep.subr.mxu0 0.0
  %4123 = vmatpush1.msra.mxu0 %v71
  %4124 = vmatprep.subr.mxu0 0.0
  %4125 = vmatpush1.msra.mxu0 %v74
  %4126 = vmatprep.subr.mxu0 0.0
  %4127 = vmatpush1.msra.mxu0 0.0
  %4128 = vmatprep.subr.mxu0 0.0
  %4129 = vmatpush1.msra.mxu0 0.0
  %4130 = vmatprep.subr.mxu0 0.0
  %4131 = vmatpush1.msra.mxu0 0.0
  %4132 = vmatprep.subr.mxu0 0.0
  %4133 = vmatpush1.msra.mxu0 0.0
  %4134 = vmatprep.subr.mxu0 0.0
  %4135 = vmatpush1.msra.mxu0 0.0
  %4136 = vmatprep.subr.mxu0 0.0
  %4137 = vmatpush1.msra.mxu0 0.0
  %4138 = vmatprep.subr.mxu0 0.0
  %4139 = vmatpush1.msra.mxu0 0.0
  %4140 = vmatprep.subr.mxu0 0.0
  %4141 = vmatpush1.msra.mxu0 0.0
  %4142 = vmatprep.subr.mxu0 0.0
  %4143 = vmatpush1.msra.mxu0 0.0
  %4144 = vmatprep.subr.mxu0 0.0
  %4145 = vmatpush1.msra.mxu0 0.0
  %4146 = vmatprep.subr.mxu0 0.0
  %4147 = vmatpush1.msra.mxu0 0.0
  %4148 = vmatprep.subr.mxu0 0.0
  %4149 = vmatpush1.msra.mxu0 0.0
  %4150 = vmatprep.subr.mxu0 0.0
  %4151 = vmatpush1.msra.mxu0 0.0
  %4152 = vmatprep.subr.mxu0 0.0
  %4153 = vmatpush1.msra.mxu0 0.0
  %4154 = vmatprep.subr.mxu0 0.0
  %4155 = vmatpush1.msra.mxu0 0.0
  %4156 = vmatprep.subr.mxu0 0.0
  %4157 = vmatpush1.msra.mxu0 0.0
  %4158 = vmatprep.subr.mxu0 0.0
  %4159 = vmatpush1.msra.mxu0 0.0
  %4160 = vmatprep.subr.mxu0 0.0
  %4161 = vmatpush1.msra.mxu0 0.0
  %4162 = vmatprep.subr.mxu0 0.0
  %4163 = vmatpush1.msra.mxu0 0.0
  %4164 = vmatprep.subr.mxu0 0.0
  %4165 = vmatpush1.msra.mxu0 0.0
  %4166 = vmatprep.subr.mxu0 0.0
  %4167 = vmatpush1.msra.mxu0 0.0
  %4168 = vmatprep.subr.mxu0 0.0
  %4169 = vmatpush1.msra.mxu0 0.0
  %4170 = vmatprep.subr.mxu0 0.0
  %4171 = vmatpush1.msra.mxu0 0.0
  %4172 = vmatprep.subr.mxu0 0.0
  %4173 = vmatpush1.msra.mxu0 0.0
  %4174 = vmatprep.subr.mxu0 0.0
  %4175 = vmatpush1.msra.mxu0 0.0
  %4176 = vmatprep.subr.mxu0 0.0
  %4177 = vmatpush1.msra.mxu0 0.0
  %4178 = vmatprep.subr.mxu0 0.0
  %4179 = vmatpush1.msra.mxu0 0.0
  %4180 = vmatprep.subr.mxu0 0.0
  %4181 = vmatpush1.msra.mxu0 0.0
  %4182 = vmatprep.subr.mxu0 0.0
  %4183 = vmatpush1.msra.mxu0 0.0
  %4184 = vmatprep.subr.mxu0 0.0
  %4185 = vmatpush1.msra.mxu0 0.0
  %4186 = vmatprep.mubr.f32.mxu0 0.0
  %4187 = vmatmul.mubr.f32.gmra.mrb[0].mxu0 %v4049
  %v4188 = vpop.f32.mrb[0].mxu0
  %v4189 = vadd.f32 0.0, %v4188
  %v4190 = vpop.f32.mrb[0].mxu0
  %4191 = vdwg.mxu0
  %v4193 = vsel %vm649, %v4047, 0
  %4195 = vmatprep.subr.mxu0 %v70
  %4196 = vmatpush1.msra.mxu0 %v69
  %4197 = vmatprep.subr.mxu0 %v73
  %4198 = vmatpush1.msra.mxu0 %v72
  %4199 = vmatprep.subr.mxu0 0.0
  %4200 = vmatpush1.msra.mxu0 0.0
  %4201 = vmatprep.subr.mxu0 0.0
  %4202 = vmatpush1.msra.mxu0 0.0
  %4203 = vmatprep.subr.mxu0 0.0
  %4204 = vmatpush1.msra.mxu0 0.0
  %4205 = vmatprep.subr.mxu0 0.0
  %4206 = vmatpush1.msra.mxu0 0.0
  %4207 = vmatprep.subr.mxu0 0.0
  %4208 = vmatpush1.msra.mxu0 0.0
  %4209 = vmatprep.subr.mxu0 0.0
  %4210 = vmatpush1.msra.mxu0 0.0
  %4211 = vmatprep.subr.mxu0 0.0
  %4212 = vmatpush1.msra.mxu0 0.0
  %4213 = vmatprep.subr.mxu0 0.0
  %4214 = vmatpush1.msra.mxu0 0.0
  %4215 = vmatprep.subr.mxu0 0.0
  %4216 = vmatpush1.msra.mxu0 0.0
  %4217 = vmatprep.subr.mxu0 0.0
  %4218 = vmatpush1.msra.mxu0 0.0
  %4219 = vmatprep.subr.mxu0 0.0
  %4220 = vmatpush1.msra.mxu0 0.0
  %4221 = vmatprep.subr.mxu0 0.0
  %4222 = vmatpush1.msra.mxu0 0.0
  %4223 = vmatprep.subr.mxu0 0.0
  %4224 = vmatpush1.msra.mxu0 0.0
  %4225 = vmatprep.subr.mxu0 0.0
  %4226 = vmatpush1.msra.mxu0 0.0
  %4227 = vmatprep.subr.mxu0 0.0
  %4228 = vmatpush1.msra.mxu0 0.0
  %4229 = vmatprep.subr.mxu0 0.0
  %4230 = vmatpush1.msra.mxu0 0.0
  %4231 = vmatprep.subr.mxu0 0.0
  %4232 = vmatpush1.msra.mxu0 0.0
  %4233 = vmatprep.subr.mxu0 0.0
  %4234 = vmatpush1.msra.mxu0 0.0
  %4235 = vmatprep.subr.mxu0 0.0
  %4236 = vmatpush1.msra.mxu0 0.0
  %4237 = vmatprep.subr.mxu0 0.0
  %4238 = vmatpush1.msra.mxu0 0.0
  %4239 = vmatprep.subr.mxu0 0.0
  %4240 = vmatpush1.msra.mxu0 0.0
  %4241 = vmatprep.subr.mxu0 0.0
  %4242 = vmatpush1.msra.mxu0 0.0
  %4243 = vmatprep.subr.mxu0 0.0
  %4244 = vmatpush1.msra.mxu0 0.0
  %4245 = vmatprep.subr.mxu0 0.0
  %4246 = vmatpush1.msra.mxu0 0.0
  %4247 = vmatprep.subr.mxu0 0.0
  %4248 = vmatpush1.msra.mxu0 0.0
  %4249 = vmatprep.subr.mxu0 0.0
  %4250 = vmatpush1.msra.mxu0 0.0
  %4251 = vmatprep.subr.mxu0 0.0
  %4252 = vmatpush1.msra.mxu0 0.0
  %4253 = vmatprep.subr.mxu0 0.0
  %4254 = vmatpush1.msra.mxu0 0.0
  %4255 = vmatprep.subr.mxu0 0.0
  %4256 = vmatpush1.msra.mxu0 0.0
  %4257 = vmatprep.subr.mxu0 0.0
  %4258 = vmatpush1.msra.mxu0 0.0
  %4259 = vmatprep.mubr.f32.mxu0 0.0
  %4260 = vmatmul.mubr.f32.gmra.mrb[0].mxu0 %v4193
  %v4261 = vpop.f32.mrb[0].mxu0
  %v4262 = vadd.f32 0.0, %v4261
  %v4263 = vpop.f32.mrb[0].mxu0
  %v4264 = vadd.f32 0.0, %v4263
  %4265 = vdwg.mxu0
  %4266 = vmatprep.subr.mxu0 0.0
  %4267 = vmatpush1.msra.mxu0 %v71
  %4268 = vmatprep.subr.mxu0 0.0
  %4269 = vmatpush1.msra.mxu0 %v74
  %4270 = vmatprep.subr.mxu0 0.0
  %4271 = vmatpush1.msra.mxu0 0.0
  %4272 = vmatprep.subr.mxu0 0.0
  %4273 = vmatpush1.msra.mxu0 0.0
  %4274 = vmatprep.subr.mxu0 0.0
  %4275 = vmatpush1.msra.mxu0 0.0
  %4276 = vmatprep.subr.mxu0 0.0
  %4277 = vmatpush1.msra.mxu0 0.0
  %4278 = vmatprep.subr.mxu0 0.0
  %4279 = vmatpush1.msra.mxu0 0.0
  %4280 = vmatprep.subr.mxu0 0.0
  %4281 = vmatpush1.msra.mxu0 0.0
  %4282 = vmatprep.subr.mxu0 0.0
  %4283 = vmatpush1.msra.mxu0 0.0
  %4284 = vmatprep.subr.mxu0 0.0
  %4285 = vmatpush1.msra.mxu0 0.0
  %4286 = vmatprep.subr.mxu0 0.0
  %4287 = vmatpush1.msra.mxu0 0.0
  %4288 = vmatprep.subr.mxu0 0.0
  %4289 = vmatpush1.msra.mxu0 0.0
  %4290 = vmatprep.subr.mxu0 0.0
  %4291 = vmatpush1.msra.mxu0 0.0
  %4292 = vmatprep.subr.mxu0 0.0
  %4293 = vmatpush1.msra.mxu0 0.0
  %4294 = vmatprep.subr.mxu0 0.0
  %4295 = vmatpush1.msra.mxu0 0.0
  %4296 = vmatprep.subr.mxu0 0.0
  %4297 = vmatpush1.msra.mxu0 0.0
  %4298 = vmatprep.subr.mxu0 0.0
  %4299 = vmatpush1.msra.mxu0 0.0
  %4300 = vmatprep.subr.mxu0 0.0
  %4301 = vmatpush1.msra.mxu0 0.0
  %4302 = vmatprep.subr.mxu0 0.0
  %4303 = vmatpush1.msra.mxu0 0.0
  %4304 = vmatprep.subr.mxu0 0.0
  %4305 = vmatpush1.msra.mxu0 0.0
  %4306 = vmatprep.subr.mxu0 0.0
  %4307 = vmatpush1.msra.mxu0 0.0
  %4308 = vmatprep.subr.mxu0 0.0
  %4309 = vmatpush1.msra.mxu0 0.0
  %4310 = vmatprep.subr.mxu0 0.0
  %4311 = vmatpush1.msra.mxu0 0.0
  %4312 = vmatprep.subr.mxu0 0.0
  %4313 = vmatpush1.msra.mxu0 0.0
  %4314 = vmatprep.subr.mxu0 0.0
  %4315 = vmatpush1.msra.mxu0 0.0
  %4316 = vmatprep.subr.mxu0 0.0
  %4317 = vmatpush1.msra.mxu0 0.0
  %4318 = vmatprep.subr.mxu0 0.0
  %4319 = vmatpush1.msra.mxu0 0.0
  %4320 = vmatprep.subr.mxu0 0.0
  %4321 = vmatpush1.msra.mxu0 0.0
  %4322 = vmatprep.subr.mxu0 0.0
  %4323 = vmatpush1.msra.mxu0 0.0
  %4324 = vmatprep.subr.mxu0 0.0
  %4325 = vmatpush1.msra.mxu0 0.0
  %4326 = vmatprep.subr.mxu0 0.0
  %4327 = vmatpush1.msra.mxu0 0.0
  %4328 = vmatprep.subr.mxu0 0.0
  %4329 = vmatpush1.msra.mxu0 0.0
  %4330 = vmatprep.mubr.f32.mxu0 0.0
  %4331 = vmatmul.mubr.f32.gmra.mrb[0].mxu0 %v4193
  %v4332 = vpop.f32.mrb[0].mxu0
  %v4333 = vadd.f32 0.0, %v4332
  %v4334 = vpop.f32.mrb[0].mxu0
  %4335 = vdwg.mxu0
  %v4336 = vlaneseq
  %v4337 = vshrl.u32 %v4336, 7
  %v4338 = vsub.s32 0, %v4337
  %v4339 = vrot.slane %v4118, %v4338
  %v4340 = vlaneseq
  %v4341 = vshrl.u32 %v4340, 7
  %v4342 = vsub.s32 0, %v4341
  %v4343 = vrot.slane %v4120, %v4342
  %v4344 = vlaneseq
  %v4345 = vshrl.u32 %v4344, 7
  %v4346 = vsub.s32 0, %v4345
  %v4347 = vrot.slane %v4189, %v4346
  %v4348 = vmul.f32 %v3536, %v4339
  %v4349 = vmul.f32 %v3538, %v4343
  %v4350 = vmul.f32 %v3688, %v4347
  %v4351 = vmul.f32 %v3542, %v4339
  %v4352 = vmul.f32 %v3544, %v4343
  %v4353 = vmul.f32 %v3693, %v4347
  %v4354 = vlaneseq
  %v4355 = vshrl.u32 %v4354, 7
  %v4356 = vsub.s32 0, %v4355
  %v4357 = vrot.slane %v4262, %v4356
  %v4358 = vlaneseq
  %v4359 = vshrl.u32 %v4358, 7
  %v4360 = vsub.s32 0, %v4359
  %v4361 = vrot.slane %v4264, %v4360
  %v4362 = vlaneseq
  %v4363 = vshrl.u32 %v4362, 7
  %v4364 = vsub.s32 0, %v4363
  %v4365 = vrot.slane %v4333, %v4364
  %v4366 = vadd.f32 %v4348, %v4357
  %v4367 = vadd.f32 %v4349, %v4361
  %v4368 = vadd.f32 %v4350, %v4365
  %v4369 = vadd.f32 %v4351, %v4357
  %v4370 = vadd.f32 %v4352, %v4361
  %v4371 = vadd.f32 %v4353, %v4365
  %v4372 = vmax.f32 %v4366, 0.0
  %v4373 = vmax.f32 %v4367, 0.0
  %v4374 = vmax.f32 %v4368, 0.0
  %v4375 = vmax.f32 %v4369, 0.0
  %v4376 = vmax.f32 %v4370, 0.0
  %v4377 = vmax.f32 %v4371, 0.0
  %v4378 = vadd.f32 %v4372, %v2104
  %v4379 = vadd.f32 %v4373, %v2105
  %v4380 = vadd.f32 %v4374, %v2106
  %v4381 = vadd.f32 %v4375, %v2107
  %v4382 = vadd.f32 %v4376, %v2108
  %v4383 = vadd.f32 %v4377, %v2109
  %4384 = vst [vmem:[%s8] sm:$0xff] %v4378
  %4385 = vst [vmem:[%s8 + $0x8] sm:$0xff] %v4379
  %4386 = vst.msk [vmem:[%s8 + $0x10] sm:$0xff] %vm312, %v4380
  %4387 = vst [vmem:[%s8 + $0x18] sm:$0xff] %v4381
  %4388 = vst [vmem:[%s8 + $0x20] sm:$0xff] %v4382
  %4389 = vst.msk [vmem:[%s8 + $0x28] sm:$0xff] %vm312, %v4383
  // Predicated region
  $region34: #{gclayers_forward.1} parent=0 // pred_check
    _
  $region35: #{gclayers_forward.1} parent=0 // pred_check_branch
    %4391 = sbr.rel (0) target = $region37
  $region36: #{gclayers_forward.1} parent=0 // pred_region
    _
  $region37: #{gclayers_forward.1} parent=0 // pred_fallthru
    _
  // Predicated region
  $region38: #{gclayers_forward.1} parent=0 // pred_check
    _
  $region39: #{gclayers_forward.1} parent=0 // pred_check_branch
    %4393 = sbr.rel (0) target = $region41
  $region40: #{gclayers_forward.1} parent=0 // pred_region
    _
  $region41: #{gclayers_forward.1} parent=0 // pred_fallthru
    _

</llo_original>
